<compile_context>
chip_gen: v7x
topology: tpu7x:2x2x1
jax: 0.10.0
libtpu: 0.0.40
codegen_flags: <defaults>
</compile_context>

<pallas_src>
import functools

import jax
import jax.numpy as jnp
from jax.experimental import pallas as pl
from jax.experimental.pallas import tpu as pltpu


def _apply_act(h, name):
    if name == "silu":
        return h * jax.nn.sigmoid(h)
    if name == "tanh":
        return jnp.tanh(h)
    if name == "none":
        return h
    raise ValueError(name)


def _autoencoder_kernel(acts, act_dtype, x_ref, *refs):
    """Fused channels-first MLP chain for one (batch, row-tile) block.

    refs = (w0_t, b0, w1_t, b1, ..., out_ref); wi_t is (Cout_i, Cin_i) bf16,
    bi is (Cout_i, 1) f32; x_ref is (1, C, T) bf16, out_ref is (1, c_out, T) f32.
    """
    out_ref = refs[-1]
    param_refs = refs[:-1]
    n_layers = len(param_refs) // 2

    h = x_ref[0]                                              # (Cin, T) bf16, lane-dense
    for li in range(n_layers):
        w_t = param_refs[2 * li][...]                         # (Cout, Cin) bf16
        b = param_refs[2 * li + 1][...]                       # (Cout, 1)  f32
        # TODO(synk): the Cin<8 layers (3->128 / 2->256) could be VPU broadcast-FMA outer
        # products instead of MXU matmuls; verify on a bundle dump before committing.
        z = jnp.dot(w_t, h.astype(jnp.bfloat16),
                    preferred_element_type=jnp.float32)       # MXU bf16 operands, f32 acc
        h = _apply_act((z + b).astype(act_dtype), acts[li])   # VPU/EUP in act_dtype
    out_ref[0] = h.astype(out_ref.dtype)                      # lane-dense store


def _round_up(x, m):
    return ((x + m - 1) // m) * m


def _param_block_spec(shape):
    idx = lambda b, i: (0, 0)   # grid-invariant block
    try:
        # Constant block index never needs a second pipeline buffer.
        return pl.BlockSpec(shape, idx, pipeline_mode=pl.Buffered(1))
    except TypeError:
        return pl.BlockSpec(shape, idx)


def default_activation_dtype():
    """bf16 VPU/EUP exists on v6e/v7x; v5e (and older) must do activations in f32."""
    try:
        kind = jax.devices()[0].device_kind.lower()
    except Exception:
        return jnp.float32
    return jnp.bfloat16 if ("v6" in kind or "v7" in kind) else jnp.float32


def autoencoder_pallas(x_nchw, weights, biases, acts, *, tile_rows=2048, act_dtype=None):
    """x_nchw: (B, C, H, W) f32. weights[i]: (Cin_i, Cout_i). biases[i]: (1, Cout_i)."""
    B, C, H, W = x_nchw.shape
    assert weights[0].shape[0] == C
    c_out = weights[-1].shape[1]
    if act_dtype is None:
        act_dtype = default_activation_dtype()

    hw = H * W
    tile_rows = max(128, _round_up(tile_rows, 128))
    tile = min(tile_rows, _round_up(hw, 128))     # lane-dense row tile
    hw_pad = _round_up(hw, tile)
    n_tiles = hw_pad // tile

    # NCHW is already channels-first per sample: (B, C, H*W) is a free view.
    # Only a small, cast-fused zero-pad of the last dim remains (no transposes).
    x_t = x_nchw.reshape(B, C, hw).astype(jnp.bfloat16)
    if hw_pad != hw:
        x_t = jnp.pad(x_t, ((0, 0), (0, 0), (0, hw_pad - hw)))

    grid = (B, n_tiles)
    in_specs = [pl.BlockSpec((1, C, tile), lambda b, i: (b, 0, i))]

    params = []
    flops = 0
    transcendentals = 0
    bytes_accessed = x_t.size * 2 + B * c_out * hw_pad * 4
    for w, bia in zip(weights, biases):
        cin, cout = w.shape
        w_t = jnp.transpose(w).astype(jnp.bfloat16)            # (Cout, Cin) bf16, half DMA
        b_c = jnp.reshape(bia, (cout, 1)).astype(jnp.float32)  # (Cout, 1) f32
        in_specs.append(_param_block_spec(w_t.shape))
        in_specs.append(_param_block_spec(b_c.shape))
        params.extend([w_t, b_c])
        flops += 2 * B * hw_pad * cin * cout
        transcendentals += B * hw_pad * cout
        bytes_accessed += w_t.size * 2 + b_c.size * 4

    out_spec = pl.BlockSpec((1, c_out, tile), lambda b, i: (b, 0, i))

    kernel = functools.partial(_autoencoder_kernel, tuple(acts), act_dtype)

    y_t = pl.pallas_call(
        kernel,
        out_shape=jax.ShapeDtypeStruct((B, c_out, hw_pad), jnp.float32),
        grid_spec=pltpu.PrefetchScalarGridSpec(
            num_scalar_prefetch=0,
            grid=grid,
            in_specs=in_specs,
            out_specs=out_spec,
        ),
        compiler_params=pltpu.CompilerParams(
            # (batch, row-tile) blocks are independent -> shards across v7x's 2 TCs.
            dimension_semantics=("parallel", "parallel"),
            # ~10 MiB actually live at tile=2048; 48 MiB clears v5e's 16 MiB scoped
            # default and stays under v7x's 64 MiB physical VMEM per TensorCore.
            vmem_limit_bytes=48 * 1024 * 1024,
        ),
        cost_estimate=pl.CostEstimate(
            flops=int(flops),
            transcendentals=int(transcendentals),
            bytes_accessed=int(bytes_accessed),
        ),
    )(x_t, *params)

    y = y_t[:, :, :hw] if hw_pad != hw else y_t
    return y.reshape(B, c_out, H, W)


def build_params(key, num_layers=2, image_channel=3, min_channel=128,
                 max_channel=512, latent_channel=2):
    """Deterministic synthetic parameters for encoder + decoder MLP chains."""
    hidden = [min(min_channel * (2 ** i), max_channel) for i in range(num_layers)]
    enc_dims = [image_channel] + hidden + [latent_channel]
    dec_dims = [latent_channel] + hidden[::-1] + [image_channel]

    dims = []
    for d in (enc_dims, dec_dims):
        dims += list(zip(d[:-1], d[1:]))

    weights, biases = [], []
    for (cin, cout) in dims:
        key, kw, kb = jax.random.split(key, 3)
        scale = 1.0 / jnp.sqrt(jnp.float32(cin))
        weights.append(jax.random.normal(kw, (cin, cout), jnp.float32) * scale)
        biases.append(jax.random.normal(kb, (1, cout), jnp.float32) * 0.01)

    n_enc = len(enc_dims) - 1
    acts = ["silu"] * (n_enc - 1) + ["silu"]           # encoder (final SiLU)
    acts += ["silu"] * (len(dec_dims) - 2) + ["tanh"]  # decoder (final Tanh)
    return weights, biases, acts


def reference_forward(x_nchw, weights, biases, acts, *, act_dtype=jnp.float32):
    """Pure-JAX reference mirroring the kernel numerics (bf16 MXU operands, f32 acc,
    activations computed in act_dtype). Weights/activations are bf16 by design; use a
    full-f32 path only if the real FC_Encoder/FC_Decoder requires it."""
    B, C, H, W = x_nchw.shape
    h = jnp.transpose(x_nchw, (0, 2, 3, 1)).reshape(B * H * W, C).astype(jnp.bfloat16)
    for w, b, a in zip(weights, biases, acts):
        z = jnp.dot(h.astype(jnp.bfloat16), w.astype(jnp.bfloat16),
                    preferred_element_type=jnp.float32)
        h = _apply_act((z + b).astype(act_dtype), a)
    h = h.astype(jnp.float32)
    return jnp.transpose(h.reshape(B, H, W, h.shape[-1]), (0, 3, 1, 2))


if __name__ == "__main__":
    key = jax.random.PRNGKey(0)
    key, kx = jax.random.split(key)

    # Small shapes: batch=2, image_channel=3, spatial=16x16 -> H*W = 256 rows per sample.
    # Grid is (B=2, 1): two parallel steps, no padding needed.
    B, C, H, W = 2, 3, 16, 16
    x = jax.random.normal(kx, (B, C, H, W), jnp.float32)

    weights, biases, acts = build_params(
        key, num_layers=2, image_channel=C, min_channel=128,
        max_channel=512, latent_channel=2)

    act_dtype = default_activation_dtype()
    out = autoencoder_pallas(x, weights, biases, acts, tile_rows=2048, act_dtype=act_dtype)
    out = jax.block_until_ready(out)
    assert out.shape == (B, C, H, W), out.shape

    ref = reference_forward(x, weights, biases, acts, act_dtype=act_dtype)
    tol = 3e-2 if act_dtype == jnp.bfloat16 else 2e-3
    max_err = float(jnp.max(jnp.abs(out - ref)))
    assert jnp.allclose(out, ref, atol=tol, rtol=tol), max_err

    print("KERNEL_OK")
</pallas_src>

<mosaic_0001>
module attributes {stable_mosaic.version = 11 : i64} {
  func.func @_autoencoder_kernel(%arg0: i32, %arg1: i32, %arg2: memref<1x3x256xbf16, #tpu.memory_space<vmem>>, %arg3: memref<128x3xbf16, #tpu.memory_space<vmem>>, %arg4: memref<128x1xf32, #tpu.memory_space<vmem>>, %arg5: memref<256x128xbf16, #tpu.memory_space<vmem>>, %arg6: memref<256x1xf32, #tpu.memory_space<vmem>>, %arg7: memref<2x256xbf16, #tpu.memory_space<vmem>>, %arg8: memref<2x1xf32, #tpu.memory_space<vmem>>, %arg9: memref<256x2xbf16, #tpu.memory_space<vmem>>, %arg10: memref<256x1xf32, #tpu.memory_space<vmem>>, %arg11: memref<128x256xbf16, #tpu.memory_space<vmem>>, %arg12: memref<128x1xf32, #tpu.memory_space<vmem>>, %arg13: memref<3x128xbf16, #tpu.memory_space<vmem>>, %arg14: memref<3x1xf32, #tpu.memory_space<vmem>>, %arg15: memref<1x3x256xf32, #tpu.memory_space<vmem>>) attributes {dimension_semantics = [#tpu.dimension_semantics<parallel>, #tpu.dimension_semantics<parallel>], iteration_bounds = array<i64: 2, 1>, scalar_prefetch = 0 : i64, scratch_operands = 0 : i64, tpu.core_type = #tpu.core_type<tc>, window_params = [{transform_indices = @transform_0, window_bounds = array<i64: 1, 3, 256>}, {pipeline_mode = #tpu.pipeline_mode<synchronous>, transform_indices = @transform_1, window_bounds = array<i64: 128, 3>}, {pipeline_mode = #tpu.pipeline_mode<synchronous>, transform_indices = @transform_2, window_bounds = array<i64: 128, 1>}, {pipeline_mode = #tpu.pipeline_mode<synchronous>, transform_indices = @transform_3, window_bounds = array<i64: 256, 128>}, {pipeline_mode = #tpu.pipeline_mode<synchronous>, transform_indices = @transform_4, window_bounds = array<i64: 256, 1>}, {pipeline_mode = #tpu.pipeline_mode<synchronous>, transform_indices = @transform_5, window_bounds = array<i64: 2, 256>}, {pipeline_mode = #tpu.pipeline_mode<synchronous>, transform_indices = @transform_6, window_bounds = array<i64: 2, 1>}, {pipeline_mode = #tpu.pipeline_mode<synchronous>, transform_indices = @transform_7, window_bounds = array<i64: 256, 2>}, {pipeline_mode = #tpu.pipeline_mode<synchronous>, transform_indices = @transform_8, window_bounds = array<i64: 256, 1>}, {pipeline_mode = #tpu.pipeline_mode<synchronous>, transform_indices = @transform_9, window_bounds = array<i64: 128, 256>}, {pipeline_mode = #tpu.pipeline_mode<synchronous>, transform_indices = @transform_10, window_bounds = array<i64: 128, 1>}, {pipeline_mode = #tpu.pipeline_mode<synchronous>, transform_indices = @transform_11, window_bounds = array<i64: 3, 128>}, {pipeline_mode = #tpu.pipeline_mode<synchronous>, transform_indices = @transform_12, window_bounds = array<i64: 3, 1>}, {transform_indices = @transform_13, window_bounds = array<i64: 1, 3, 256>}]} {
    %c0 = arith.constant 0 : index
    %c0_0 = arith.constant 0 : index
    %c0_1 = arith.constant 0 : index
    %0 = vector.load %arg2[%c0, %c0_0, %c0_1] : memref<1x3x256xbf16, #tpu.memory_space<vmem>>, vector<1x3x256xbf16>
    %1 = vector.shape_cast %0 : vector<1x3x256xbf16> to vector<3x256xbf16>
    %c0_2 = arith.constant 0 : index
    %c0_3 = arith.constant 0 : index
    %2 = vector.load %arg3[%c0_2, %c0_3] : memref<128x3xbf16, #tpu.memory_space<vmem>>, vector<128x3xbf16>
    %c0_4 = arith.constant 0 : index
    %c0_5 = arith.constant 0 : index
    %3 = vector.load %arg4[%c0_4, %c0_5] : memref<128x1xf32, #tpu.memory_space<vmem>>, vector<128x1xf32>
    %cst = arith.constant dense<0.000000e+00> : vector<128x256xf32>
    %4 = tpu.matmul %2, %1, %cst {dimension_numbers = #tpu.dot_dimension_numbers<[1], [0], [0], [1], [0, 0, 1, 1], [], []>} : vector<128x3xbf16>, vector<3x256xbf16>, vector<128x256xf32> -> vector<128x256xf32>
    %5 = vector.broadcast %3 : vector<128x1xf32> to vector<128x256xf32>
    %6 = arith.addf %4, %5 : vector<128x256xf32>
    %7 = arith.negf %6 : vector<128x256xf32>
    %8 = math.exp %7 : vector<128x256xf32>
    %cst_6 = arith.constant 1.000000e+00 : f32
    %9 = vector.broadcast %cst_6 : f32 to vector<128x256xf32>
    %10 = arith.addf %9, %8 : vector<128x256xf32>
    %11 = arith.divf %9, %10 : vector<128x256xf32>
    %12 = arith.mulf %6, %11 : vector<128x256xf32>
    %c0_7 = arith.constant 0 : index
    %c0_8 = arith.constant 0 : index
    %13 = vector.load %arg5[%c0_7, %c0_8] : memref<256x128xbf16, #tpu.memory_space<vmem>>, vector<256x128xbf16>
    %c0_9 = arith.constant 0 : index
    %c0_10 = arith.constant 0 : index
    %14 = vector.load %arg6[%c0_9, %c0_10] : memref<256x1xf32, #tpu.memory_space<vmem>>, vector<256x1xf32>
    %15 = arith.truncf %12 : vector<128x256xf32> to vector<128x256xbf16>
    %cst_11 = arith.constant dense<0.000000e+00> : vector<256x256xf32>
    %16 = tpu.matmul %13, %15, %cst_11 {dimension_numbers = #tpu.dot_dimension_numbers<[1], [0], [0], [1], [0, 0, 1, 1], [], []>} : vector<256x128xbf16>, vector<128x256xbf16>, vector<256x256xf32> -> vector<256x256xf32>
    %17 = vector.broadcast %14 : vector<256x1xf32> to vector<256x256xf32>
    %18 = arith.addf %16, %17 : vector<256x256xf32>
    %19 = arith.negf %18 : vector<256x256xf32>
    %20 = math.exp %19 : vector<256x256xf32>
    %cst_12 = arith.constant 1.000000e+00 : f32
    %21 = vector.broadcast %cst_12 : f32 to vector<256x256xf32>
    %22 = arith.addf %21, %20 : vector<256x256xf32>
    %23 = arith.divf %21, %22 : vector<256x256xf32>
    %24 = arith.mulf %18, %23 : vector<256x256xf32>
    %c0_13 = arith.constant 0 : index
    %c0_14 = arith.constant 0 : index
    %25 = vector.load %arg7[%c0_13, %c0_14] : memref<2x256xbf16, #tpu.memory_space<vmem>>, vector<2x256xbf16>
    %c0_15 = arith.constant 0 : index
    %c0_16 = arith.constant 0 : index
    %26 = vector.load %arg8[%c0_15, %c0_16] : memref<2x1xf32, #tpu.memory_space<vmem>>, vector<2x1xf32>
    %27 = arith.truncf %24 : vector<256x256xf32> to vector<256x256xbf16>
    %cst_17 = arith.constant dense<0.000000e+00> : vector<2x256xf32>
    %28 = tpu.matmul %25, %27, %cst_17 {dimension_numbers = #tpu.dot_dimension_numbers<[1], [0], [0], [1], [0, 0, 1, 1], [], []>} : vector<2x256xbf16>, vector<256x256xbf16>, vector<2x256xf32> -> vector<2x256xf32>
    %29 = vector.broadcast %26 : vector<2x1xf32> to vector<2x256xf32>
    %30 = arith.addf %28, %29 : vector<2x256xf32>
    %31 = arith.negf %30 : vector<2x256xf32>
    %32 = math.exp %31 : vector<2x256xf32>
    %cst_18 = arith.constant 1.000000e+00 : f32
    %33 = vector.broadcast %cst_18 : f32 to vector<2x256xf32>
    %34 = arith.addf %33, %32 : vector<2x256xf32>
    %35 = arith.divf %33, %34 : vector<2x256xf32>
    %36 = arith.mulf %30, %35 : vector<2x256xf32>
    %c0_19 = arith.constant 0 : index
    %c0_20 = arith.constant 0 : index
    %37 = vector.load %arg9[%c0_19, %c0_20] : memref<256x2xbf16, #tpu.memory_space<vmem>>, vector<256x2xbf16>
    %c0_21 = arith.constant 0 : index
    %c0_22 = arith.constant 0 : index
    %38 = vector.load %arg10[%c0_21, %c0_22] : memref<256x1xf32, #tpu.memory_space<vmem>>, vector<256x1xf32>
    %39 = arith.truncf %36 : vector<2x256xf32> to vector<2x256xbf16>
    %cst_23 = arith.constant dense<0.000000e+00> : vector<256x256xf32>
    %40 = tpu.matmul %37, %39, %cst_23 {dimension_numbers = #tpu.dot_dimension_numbers<[1], [0], [0], [1], [0, 0, 1, 1], [], []>} : vector<256x2xbf16>, vector<2x256xbf16>, vector<256x256xf32> -> vector<256x256xf32>
    %41 = vector.broadcast %38 : vector<256x1xf32> to vector<256x256xf32>
    %42 = arith.addf %40, %41 : vector<256x256xf32>
    %43 = arith.negf %42 : vector<256x256xf32>
    %44 = math.exp %43 : vector<256x256xf32>
    %cst_24 = arith.constant 1.000000e+00 : f32
    %45 = vector.broadcast %cst_24 : f32 to vector<256x256xf32>
    %46 = arith.addf %45, %44 : vector<256x256xf32>
    %47 = arith.divf %45, %46 : vector<256x256xf32>
    %48 = arith.mulf %42, %47 : vector<256x256xf32>
    %c0_25 = arith.constant 0 : index
    %c0_26 = arith.constant 0 : index
    %49 = vector.load %arg11[%c0_25, %c0_26] : memref<128x256xbf16, #tpu.memory_space<vmem>>, vector<128x256xbf16>
    %c0_27 = arith.constant 0 : index
    %c0_28 = arith.constant 0 : index
    %50 = vector.load %arg12[%c0_27, %c0_28] : memref<128x1xf32, #tpu.memory_space<vmem>>, vector<128x1xf32>
    %51 = arith.truncf %48 : vector<256x256xf32> to vector<256x256xbf16>
    %cst_29 = arith.constant dense<0.000000e+00> : vector<128x256xf32>
    %52 = tpu.matmul %49, %51, %cst_29 {dimension_numbers = #tpu.dot_dimension_numbers<[1], [0], [0], [1], [0, 0, 1, 1], [], []>} : vector<128x256xbf16>, vector<256x256xbf16>, vector<128x256xf32> -> vector<128x256xf32>
    %53 = vector.broadcast %50 : vector<128x1xf32> to vector<128x256xf32>
    %54 = arith.addf %52, %53 : vector<128x256xf32>
    %55 = arith.negf %54 : vector<128x256xf32>
    %56 = math.exp %55 : vector<128x256xf32>
    %cst_30 = arith.constant 1.000000e+00 : f32
    %57 = vector.broadcast %cst_30 : f32 to vector<128x256xf32>
    %58 = arith.addf %57, %56 : vector<128x256xf32>
    %59 = arith.divf %57, %58 : vector<128x256xf32>
    %60 = arith.mulf %54, %59 : vector<128x256xf32>
    %c0_31 = arith.constant 0 : index
    %c0_32 = arith.constant 0 : index
    %61 = vector.load %arg13[%c0_31, %c0_32] : memref<3x128xbf16, #tpu.memory_space<vmem>>, vector<3x128xbf16>
    %c0_33 = arith.constant 0 : index
    %c0_34 = arith.constant 0 : index
    %62 = vector.load %arg14[%c0_33, %c0_34] : memref<3x1xf32, #tpu.memory_space<vmem>>, vector<3x1xf32>
    %63 = arith.truncf %60 : vector<128x256xf32> to vector<128x256xbf16>
    %cst_35 = arith.constant dense<0.000000e+00> : vector<3x256xf32>
    %64 = tpu.matmul %61, %63, %cst_35 {dimension_numbers = #tpu.dot_dimension_numbers<[1], [0], [0], [1], [0, 0, 1, 1], [], []>} : vector<3x128xbf16>, vector<128x256xbf16>, vector<3x256xf32> -> vector<3x256xf32>
    %65 = vector.broadcast %62 : vector<3x1xf32> to vector<3x256xf32>
    %66 = arith.addf %64, %65 : vector<3x256xf32>
    %67 = math.tanh %66 : vector<3x256xf32>
    %c0_36 = arith.constant 0 : index
    %c0_37 = arith.constant 0 : index
    %c0_38 = arith.constant 0 : index
    %68 = vector.load %arg15[%c0_36, %c0_37, %c0_38] : memref<1x3x256xf32, #tpu.memory_space<vmem>>, vector<1x3x256xf32>
    %69 = vector.shape_cast %68 : vector<1x3x256xf32> to vector<3x256xf32>
    %70 = vector.shape_cast %67 : vector<3x256xf32> to vector<1x3x256xf32>
    tpu.vector_store %arg15[%c0_36, %c0_37, %c0_38], %70 {strides = array<i32>} : memref<1x3x256xf32, #tpu.memory_space<vmem>>, vector<1x3x256xf32>,
    return
  }
  func.func @transform_0(%arg0: i32, %arg1: i32) -> (i32, i32, i32) {
    %c0_i32 = arith.constant 0 : i32
    %c0_i32_0 = arith.constant 0 : i32
    return %arg0, %c0_i32, %arg1 : i32, i32, i32
  }
  func.func @transform_1(%arg0: i32, %arg1: i32) -> (i32, i32) {
    %c0_i32 = arith.constant 0 : i32
    %c0_i32_0 = arith.constant 0 : i32
    %c0_i32_1 = arith.constant 0 : i32
    return %c0_i32, %c0_i32_0 : i32, i32
  }
  func.func @transform_2(%arg0: i32, %arg1: i32) -> (i32, i32) {
    %c0_i32 = arith.constant 0 : i32
    %c0_i32_0 = arith.constant 0 : i32
    %c0_i32_1 = arith.constant 0 : i32
    return %c0_i32, %c0_i32_0 : i32, i32
  }
  func.func @transform_3(%arg0: i32, %arg1: i32) -> (i32, i32) {
    %c0_i32 = arith.constant 0 : i32
    %c0_i32_0 = arith.constant 0 : i32
    %c0_i32_1 = arith.constant 0 : i32
    return %c0_i32, %c0_i32_0 : i32, i32
  }
  func.func @transform_4(%arg0: i32, %arg1: i32) -> (i32, i32) {
    %c0_i32 = arith.constant 0 : i32
    %c0_i32_0 = arith.constant 0 : i32
    %c0_i32_1 = arith.constant 0 : i32
    return %c0_i32, %c0_i32_0 : i32, i32
  }
  func.func @transform_5(%arg0: i32, %arg1: i32) -> (i32, i32) {
    %c0_i32 = arith.constant 0 : i32
    %c0_i32_0 = arith.constant 0 : i32
    %c0_i32_1 = arith.constant 0 : i32
    return %c0_i32, %c0_i32_0 : i32, i32
  }
  func.func @transform_6(%arg0: i32, %arg1: i32) -> (i32, i32) {
    %c0_i32 = arith.constant 0 : i32
    %c0_i32_0 = arith.constant 0 : i32
    %c0_i32_1 = arith.constant 0 : i32
    return %c0_i32, %c0_i32_0 : i32, i32
  }
  func.func @transform_7(%arg0: i32, %arg1: i32) -> (i32, i32) {
    %c0_i32 = arith.constant 0 : i32
    %c0_i32_0 = arith.constant 0 : i32
    %c0_i32_1 = arith.constant 0 : i32
    return %c0_i32, %c0_i32_0 : i32, i32
  }
  func.func @transform_8(%arg0: i32, %arg1: i32) -> (i32, i32) {
    %c0_i32 = arith.constant 0 : i32
    %c0_i32_0 = arith.constant 0 : i32
    %c0_i32_1 = arith.constant 0 : i32
    return %c0_i32, %c0_i32_0 : i32, i32
  }
  func.func @transform_9(%arg0: i32, %arg1: i32) -> (i32, i32) {
    %c0_i32 = arith.constant 0 : i32
    %c0_i32_0 = arith.constant 0 : i32
    %c0_i32_1 = arith.constant 0 : i32
    return %c0_i32, %c0_i32_0 : i32, i32
  }
  func.func @transform_10(%arg0: i32, %arg1: i32) -> (i32, i32) {
    %c0_i32 = arith.constant 0 : i32
    %c0_i32_0 = arith.constant 0 : i32
    %c0_i32_1 = arith.constant 0 : i32
    return %c0_i32, %c0_i32_0 : i32, i32
  }
  func.func @transform_11(%arg0: i32, %arg1: i32) -> (i32, i32) {
    %c0_i32 = arith.constant 0 : i32
    %c0_i32_0 = arith.constant 0 : i32
    %c0_i32_1 = arith.constant 0 : i32
    return %c0_i32, %c0_i32_0 : i32, i32
  }
  func.func @transform_12(%arg0: i32, %arg1: i32) -> (i32, i32) {
    %c0_i32 = arith.constant 0 : i32
    %c0_i32_0 = arith.constant 0 : i32
    %c0_i32_1 = arith.constant 0 : i32
    return %c0_i32, %c0_i32_0 : i32, i32
  }
  func.func @transform_13(%arg0: i32, %arg1: i32) -> (i32, i32, i32) {
    %c0_i32 = arith.constant 0 : i32
    %c0_i32_0 = arith.constant 0 : i32
    return %arg0, %c0_i32, %arg1 : i32, i32, i32
  }
}

</mosaic_0001>

<llo_original>
// kernel: tpu_custom_call.1
$region0: #{tpu_custom_call.1}
  #allocation0 [shape = 'u32[]', space=smem, size = 0x4, offset = 0x4, fixed_abs, tag = 'smem constant byte address 0x4 - core index']
  #allocation1 [shape = 'u32[144,128]{1,0:T(1,128)}', space=vmem, size = 0x12000, scoped, tag = 'internal scratch']
  %s0 = inlined_call_operand.vmem [shape: bf16[2,3,256], index: 0, kind: input, shape index: {}]
  %s1 = inlined_call_operand.vmem [shape: bf16[128,3], index: 1, kind: input, shape index: {}]
  %s2 = inlined_call_operand.vmem [shape: f32[128,1], index: 2, kind: input, shape index: {}]
  %s3 = inlined_call_operand.vmem [shape: bf16[256,128], index: 3, kind: input, shape index: {}]
  %s4 = inlined_call_operand.vmem [shape: f32[256,1], index: 4, kind: input, shape index: {}]
  %s5 = inlined_call_operand.vmem [shape: bf16[2,256], index: 5, kind: input, shape index: {}]
  %s6 = inlined_call_operand.vmem [shape: f32[2,1], index: 6, kind: input, shape index: {}]
  %s7 = inlined_call_operand.vmem [shape: bf16[256,2], index: 7, kind: input, shape index: {}]
  %s8 = inlined_call_operand.vmem [shape: f32[256,1], index: 8, kind: input, shape index: {}]
  %s9 = inlined_call_operand.vmem [shape: bf16[128,256], index: 9, kind: input, shape index: {}]
  %s10 = inlined_call_operand.vmem [shape: f32[128,1], index: 10, kind: input, shape index: {}]
  %s11 = inlined_call_operand.vmem [shape: bf16[3,128], index: 11, kind: input, shape index: {}]
  %s12 = inlined_call_operand.vmem [shape: f32[3,1], index: 12, kind: input, shape index: {}]
  %s13 = inlined_call_operand.vmem [shape: f32[2,3,256], index: 13, kind: output, shape index: {}]
  %s14 = sld [smem:[#allocation0]]
  $region85: #{tpu_custom_call.1} parent=0
    _
  %s16 = ssub.s32 1, %s14
  %s17 = scalar_select 0, %s16, %s14
  loop: start=0, step=1, limit=4
  $region2: #{tpu_custom_call.1} parent=0 // loop_pre_header
    _
  $region3: #{tpu_custom_call.1} parent=0 // loop_header
    %s19 = sphi 0, %s23
    %p20 = scmp.ge.s32.totalorder %s19, 4
    %s26 = sphi 0, %s38
    %s27 = sphi 0, %s34
    %s28 = sphi 0, %s26
    %s29 = sphi 0, %s27
    %s30 = sphi 0, %s28
    %s31 = sphi 0, %s29
    %s43 = sphi 0, %s45
    %s46 = sphi 0, %s43
    %s47 = sphi 0, %s46
    %s63 = sphi 0, %s47
    %s67 = sphi 0, %s67
    %s69 = sphi 0, %s67
    %s70 = sphi 0, %s69
    %s84 = sphi 0, %s70
    %s88 = sphi 0, %s88
    %s90 = sphi 0, %s88
    %s91 = sphi 0, %s90
    %s105 = sphi 0, %s91
    %s109 = sphi 0, %s109
    %s111 = sphi 0, %s109
    %s112 = sphi 0, %s111
    %s126 = sphi 0, %s112
    %s130 = sphi 0, %s130
    %s132 = sphi 0, %s130
    %s133 = sphi 0, %s132
    %s147 = sphi 0, %s133
    %s151 = sphi 0, %s151
    %s153 = sphi 0, %s151
    %s154 = sphi 0, %s153
    %s168 = sphi 0, %s154
    %s172 = sphi 0, %s172
    %s174 = sphi 0, %s172
    %s175 = sphi 0, %s174
    %s189 = sphi 0, %s175
    %s193 = sphi 0, %s193
    %s195 = sphi 0, %s193
    %s196 = sphi 0, %s195
    %s210 = sphi 0, %s196
    %s214 = sphi 0, %s214
    %s216 = sphi 0, %s214
    %s217 = sphi 0, %s216
    %s231 = sphi 0, %s217
    %s235 = sphi 0, %s235
    %s237 = sphi 0, %s235
    %s238 = sphi 0, %s237
    %s252 = sphi 0, %s238
    %s256 = sphi 0, %s256
    %s258 = sphi 0, %s256
    %s259 = sphi 0, %s258
    %s273 = sphi 0, %s259
    %s277 = sphi 0, %s277
    %s279 = sphi 0, %s277
    %s280 = sphi 0, %s279
    %s294 = sphi 0, %s280
    %s298 = sphi 0, %s298
    %s300 = sphi 0, %s298
    %s301 = sphi 0, %s300
    %s315 = sphi 0, %s301
    %s323 = sphi 0, %s325
    %s326 = sphi 0, %s323
    %s327 = sphi 0, %s326
    %s343 = sphi 0, %s327
  $region4: #{tpu_custom_call.1} parent=0 // loop_header_branch
    %22 = sbr.rel (%p20) target = $region8
  $region5: #{tpu_custom_call.1} parent=0 // loop_body
    %s24 = ssub.s32 %s19, 1
    %s25 = ssub.s32 %s19, 2
    %s32 = sadd.s32 1, %s27
    %p33 = scmp.ge.s32.totalorder %s32, 1
    %s34 = scalar_select %p33, 0, %s32
    %s35 = sadd.s32 1, %s26
    %s36 = scalar_select %p33, %s35, %s26
    %p37 = scmp.ge.s32.totalorder %s36, 2
    %s38 = scalar_select %p37, 0, %s36
    %s39 = ssub.s32 %s26, %s38
    %s40 = ssub.s32 %s27, %s34
    %s41 = sor.u32 %s39, %s40
    %p42 = scmp.eq.s32.totalorder %s41, 0
    %s44 = sadd.s32 %s43, 1
    %s45 = scalar_select %p42, %s43, %s44
    %p48 = pneg %p42
    %p49 = scmp.eq.s32.totalorder %s19, 1
    %p50 = por %p48, %p49
    %p51 = scmp.ne.s32.totalorder %s43, %s46
    %p52 = scmp.eq.s32.totalorder %s19, 0
    %p53 = por %p51, %p52
    %p54 = scmp.ne.s32.totalorder %s43, %s46
    %p55 = scmp.eq.s32.totalorder %s24, 1
    %p56 = por %p54, %p55
    %p57 = scmp.ne.s32.totalorder %s46, %s47
    %p58 = scmp.eq.s32.totalorder %s24, 0
    %p59 = por %p57, %p58
    %p60 = scmp.ne.s32.totalorder %s46, %s47
    %p61 = scmp.eq.s32.totalorder %s25, 1
    %p62 = por %p60, %p61
    %p64 = scmp.ne.s32.totalorder %s47, %s63
    %p65 = scmp.eq.s32.totalorder %s25, 0
    %p66 = por %p64, %p65
    %s68 = sadd.s32 %s67, 1
    %p71 = scmp.eq.s32.totalorder %s19, 1
    %p72 = scmp.ne.s32.totalorder %s67, %s69
    %p73 = scmp.eq.s32.totalorder %s19, 0
    %p74 = por %p72, %p73
    %p75 = scmp.ne.s32.totalorder %s67, %s69
    %p76 = scmp.eq.s32.totalorder %s24, 1
    %p77 = por %p75, %p76
    %p78 = scmp.ne.s32.totalorder %s69, %s70
    %p79 = scmp.eq.s32.totalorder %s24, 0
    %p80 = por %p78, %p79
    %p81 = scmp.ne.s32.totalorder %s69, %s70
    %p82 = scmp.eq.s32.totalorder %s25, 1
    %p83 = por %p81, %p82
    %p85 = scmp.ne.s32.totalorder %s70, %s84
    %p86 = scmp.eq.s32.totalorder %s25, 0
    %p87 = por %p85, %p86
    %s89 = sadd.s32 %s88, 1
    %p92 = scmp.eq.s32.totalorder %s19, 1
    %p93 = scmp.ne.s32.totalorder %s88, %s90
    %p94 = scmp.eq.s32.totalorder %s19, 0
    %p95 = por %p93, %p94
    %p96 = scmp.ne.s32.totalorder %s88, %s90
    %p97 = scmp.eq.s32.totalorder %s24, 1
    %p98 = por %p96, %p97
    %p99 = scmp.ne.s32.totalorder %s90, %s91
    %p100 = scmp.eq.s32.totalorder %s24, 0
    %p101 = por %p99, %p100
    %p102 = scmp.ne.s32.totalorder %s90, %s91
    %p103 = scmp.eq.s32.totalorder %s25, 1
    %p104 = por %p102, %p103
    %p106 = scmp.ne.s32.totalorder %s91, %s105
    %p107 = scmp.eq.s32.totalorder %s25, 0
    %p108 = por %p106, %p107
    %s110 = sadd.s32 %s109, 1
    %p113 = scmp.eq.s32.totalorder %s19, 1
    %p114 = scmp.ne.s32.totalorder %s109, %s111
    %p115 = scmp.eq.s32.totalorder %s19, 0
    %p116 = por %p114, %p115
    %p117 = scmp.ne.s32.totalorder %s109, %s111
    %p118 = scmp.eq.s32.totalorder %s24, 1
    %p119 = por %p117, %p118
    %p120 = scmp.ne.s32.totalorder %s111, %s112
    %p121 = scmp.eq.s32.totalorder %s24, 0
    %p122 = por %p120, %p121
    %p123 = scmp.ne.s32.totalorder %s111, %s112
    %p124 = scmp.eq.s32.totalorder %s25, 1
    %p125 = por %p123, %p124
    %p127 = scmp.ne.s32.totalorder %s112, %s126
    %p128 = scmp.eq.s32.totalorder %s25, 0
    %p129 = por %p127, %p128
    %s131 = sadd.s32 %s130, 1
    %p134 = scmp.eq.s32.totalorder %s19, 1
    %p135 = scmp.ne.s32.totalorder %s130, %s132
    %p136 = scmp.eq.s32.totalorder %s19, 0
    %p137 = por %p135, %p136
    %p138 = scmp.ne.s32.totalorder %s130, %s132
    %p139 = scmp.eq.s32.totalorder %s24, 1
    %p140 = por %p138, %p139
    %p141 = scmp.ne.s32.totalorder %s132, %s133
    %p142 = scmp.eq.s32.totalorder %s24, 0
    %p143 = por %p141, %p142
    %p144 = scmp.ne.s32.totalorder %s132, %s133
    %p145 = scmp.eq.s32.totalorder %s25, 1
    %p146 = por %p144, %p145
    %p148 = scmp.ne.s32.totalorder %s133, %s147
    %p149 = scmp.eq.s32.totalorder %s25, 0
    %p150 = por %p148, %p149
    %s152 = sadd.s32 %s151, 1
    %p155 = scmp.eq.s32.totalorder %s19, 1
    %p156 = scmp.ne.s32.totalorder %s151, %s153
    %p157 = scmp.eq.s32.totalorder %s19, 0
    %p158 = por %p156, %p157
    %p159 = scmp.ne.s32.totalorder %s151, %s153
    %p160 = scmp.eq.s32.totalorder %s24, 1
    %p161 = por %p159, %p160
    %p162 = scmp.ne.s32.totalorder %s153, %s154
    %p163 = scmp.eq.s32.totalorder %s24, 0
    %p164 = por %p162, %p163
    %p165 = scmp.ne.s32.totalorder %s153, %s154
    %p166 = scmp.eq.s32.totalorder %s25, 1
    %p167 = por %p165, %p166
    %p169 = scmp.ne.s32.totalorder %s154, %s168
    %p170 = scmp.eq.s32.totalorder %s25, 0
    %p171 = por %p169, %p170
    %s173 = sadd.s32 %s172, 1
    %p176 = scmp.eq.s32.totalorder %s19, 1
    %p177 = scmp.ne.s32.totalorder %s172, %s174
    %p178 = scmp.eq.s32.totalorder %s19, 0
    %p179 = por %p177, %p178
    %p180 = scmp.ne.s32.totalorder %s172, %s174
    %p181 = scmp.eq.s32.totalorder %s24, 1
    %p182 = por %p180, %p181
    %p183 = scmp.ne.s32.totalorder %s174, %s175
    %p184 = scmp.eq.s32.totalorder %s24, 0
    %p185 = por %p183, %p184
    %p186 = scmp.ne.s32.totalorder %s174, %s175
    %p187 = scmp.eq.s32.totalorder %s25, 1
    %p188 = por %p186, %p187
    %p190 = scmp.ne.s32.totalorder %s175, %s189
    %p191 = scmp.eq.s32.totalorder %s25, 0
    %p192 = por %p190, %p191
    %s194 = sadd.s32 %s193, 1
    %p197 = scmp.eq.s32.totalorder %s19, 1
    %p198 = scmp.ne.s32.totalorder %s193, %s195
    %p199 = scmp.eq.s32.totalorder %s19, 0
    %p200 = por %p198, %p199
    %p201 = scmp.ne.s32.totalorder %s193, %s195
    %p202 = scmp.eq.s32.totalorder %s24, 1
    %p203 = por %p201, %p202
    %p204 = scmp.ne.s32.totalorder %s195, %s196
    %p205 = scmp.eq.s32.totalorder %s24, 0
    %p206 = por %p204, %p205
    %p207 = scmp.ne.s32.totalorder %s195, %s196
    %p208 = scmp.eq.s32.totalorder %s25, 1
    %p209 = por %p207, %p208
    %p211 = scmp.ne.s32.totalorder %s196, %s210
    %p212 = scmp.eq.s32.totalorder %s25, 0
    %p213 = por %p211, %p212
    %s215 = sadd.s32 %s214, 1
    %p218 = scmp.eq.s32.totalorder %s19, 1
    %p219 = scmp.ne.s32.totalorder %s214, %s216
    %p220 = scmp.eq.s32.totalorder %s19, 0
    %p221 = por %p219, %p220
    %p222 = scmp.ne.s32.totalorder %s214, %s216
    %p223 = scmp.eq.s32.totalorder %s24, 1
    %p224 = por %p222, %p223
    %p225 = scmp.ne.s32.totalorder %s216, %s217
    %p226 = scmp.eq.s32.totalorder %s24, 0
    %p227 = por %p225, %p226
    %p228 = scmp.ne.s32.totalorder %s216, %s217
    %p229 = scmp.eq.s32.totalorder %s25, 1
    %p230 = por %p228, %p229
    %p232 = scmp.ne.s32.totalorder %s217, %s231
    %p233 = scmp.eq.s32.totalorder %s25, 0
    %p234 = por %p232, %p233
    %s236 = sadd.s32 %s235, 1
    %p239 = scmp.eq.s32.totalorder %s19, 1
    %p240 = scmp.ne.s32.totalorder %s235, %s237
    %p241 = scmp.eq.s32.totalorder %s19, 0
    %p242 = por %p240, %p241
    %p243 = scmp.ne.s32.totalorder %s235, %s237
    %p244 = scmp.eq.s32.totalorder %s24, 1
    %p245 = por %p243, %p244
    %p246 = scmp.ne.s32.totalorder %s237, %s238
    %p247 = scmp.eq.s32.totalorder %s24, 0
    %p248 = por %p246, %p247
    %p249 = scmp.ne.s32.totalorder %s237, %s238
    %p250 = scmp.eq.s32.totalorder %s25, 1
    %p251 = por %p249, %p250
    %p253 = scmp.ne.s32.totalorder %s238, %s252
    %p254 = scmp.eq.s32.totalorder %s25, 0
    %p255 = por %p253, %p254
    %s257 = sadd.s32 %s256, 1
    %p260 = scmp.eq.s32.totalorder %s19, 1
    %p261 = scmp.ne.s32.totalorder %s256, %s258
    %p262 = scmp.eq.s32.totalorder %s19, 0
    %p263 = por %p261, %p262
    %p264 = scmp.ne.s32.totalorder %s256, %s258
    %p265 = scmp.eq.s32.totalorder %s24, 1
    %p266 = por %p264, %p265
    %p267 = scmp.ne.s32.totalorder %s258, %s259
    %p268 = scmp.eq.s32.totalorder %s24, 0
    %p269 = por %p267, %p268
    %p270 = scmp.ne.s32.totalorder %s258, %s259
    %p271 = scmp.eq.s32.totalorder %s25, 1
    %p272 = por %p270, %p271
    %p274 = scmp.ne.s32.totalorder %s259, %s273
    %p275 = scmp.eq.s32.totalorder %s25, 0
    %p276 = por %p274, %p275
    %s278 = sadd.s32 %s277, 1
    %p281 = scmp.eq.s32.totalorder %s19, 1
    %p282 = scmp.ne.s32.totalorder %s277, %s279
    %p283 = scmp.eq.s32.totalorder %s19, 0
    %p284 = por %p282, %p283
    %p285 = scmp.ne.s32.totalorder %s277, %s279
    %p286 = scmp.eq.s32.totalorder %s24, 1
    %p287 = por %p285, %p286
    %p288 = scmp.ne.s32.totalorder %s279, %s280
    %p289 = scmp.eq.s32.totalorder %s24, 0
    %p290 = por %p288, %p289
    %p291 = scmp.ne.s32.totalorder %s279, %s280
    %p292 = scmp.eq.s32.totalorder %s25, 1
    %p293 = por %p291, %p292
    %p295 = scmp.ne.s32.totalorder %s280, %s294
    %p296 = scmp.eq.s32.totalorder %s25, 0
    %p297 = por %p295, %p296
    %s299 = sadd.s32 %s298, 1
    %p302 = scmp.eq.s32.totalorder %s19, 1
    %p303 = scmp.ne.s32.totalorder %s298, %s300
    %p304 = scmp.eq.s32.totalorder %s19, 0
    %p305 = por %p303, %p304
    %p306 = scmp.ne.s32.totalorder %s298, %s300
    %p307 = scmp.eq.s32.totalorder %s24, 1
    %p308 = por %p306, %p307
    %p309 = scmp.ne.s32.totalorder %s300, %s301
    %p310 = scmp.eq.s32.totalorder %s24, 0
    %p311 = por %p309, %p310
    %p312 = scmp.ne.s32.totalorder %s300, %s301
    %p313 = scmp.eq.s32.totalorder %s25, 1
    %p314 = por %p312, %p313
    %p316 = scmp.ne.s32.totalorder %s301, %s315
    %p317 = scmp.eq.s32.totalorder %s25, 0
    %p318 = por %p316, %p317
    %s319 = ssub.s32 %s26, %s38
    %s320 = ssub.s32 %s27, %s34
    %s321 = sor.u32 %s319, %s320
    %p322 = scmp.eq.s32.totalorder %s321, 0
    %s324 = sadd.s32 %s323, 1
    %s325 = scalar_select %p322, %s323, %s324
    %p328 = pneg %p322
    %p329 = scmp.eq.s32.totalorder %s19, 1
    %p330 = por %p328, %p329
    %p331 = scmp.ne.s32.totalorder %s323, %s326
    %p332 = scmp.eq.s32.totalorder %s19, 0
    %p333 = por %p331, %p332
    %p334 = scmp.ne.s32.totalorder %s323, %s326
    %p335 = scmp.eq.s32.totalorder %s24, 1
    %p336 = por %p334, %p335
    %p337 = scmp.ne.s32.totalorder %s326, %s327
    %p338 = scmp.eq.s32.totalorder %s24, 0
    %p339 = por %p337, %p338
    %p340 = scmp.ne.s32.totalorder %s326, %s327
    %p341 = scmp.eq.s32.totalorder %s25, 1
    %p342 = por %p340, %p341
    %p344 = scmp.ne.s32.totalorder %s327, %s343
    %p345 = scmp.eq.s32.totalorder %s25, 0
    %p346 = por %p344, %p345
    %p347 = scmp.le.s32.totalorder 1, %s19
    %p348 = scmp.lt.s32.totalorder %s19, 3
    %p349 = pnand %p347, %p348
    %p350 = pneg %p349
    // Predicated region
    $region9: #{tpu_custom_call.1} parent=5 // pred_check
      _
    $region10: #{tpu_custom_call.1} parent=5 // pred_check_branch
      %352 = sbr.rel (%p349) target = $region12
    $region11: #{tpu_custom_call.1} parent=5 // pred_region
      %s353 = ssub.s32 %s19, 1
      // Predicated region
      $region13: #{tpu_custom_call.1} parent=11 // pred_check
        %p354 = pneg %p80
      $region14: #{tpu_custom_call.1} parent=11 // pred_check_branch
        %356 = sbr.rel (%p354) target = $region16
      $region15: #{tpu_custom_call.1} parent=11 // pred_region
        _
      $region16: #{tpu_custom_call.1} parent=11 // pred_fallthru
        _
      // Predicated region
      $region17: #{tpu_custom_call.1} parent=11 // pred_check
        %p357 = pneg %p101
      $region18: #{tpu_custom_call.1} parent=11 // pred_check_branch
        %359 = sbr.rel (%p357) target = $region20
      $region19: #{tpu_custom_call.1} parent=11 // pred_region
        _
      $region20: #{tpu_custom_call.1} parent=11 // pred_fallthru
        _
      // Predicated region
      $region21: #{tpu_custom_call.1} parent=11 // pred_check
        %p360 = pneg %p122
      $region22: #{tpu_custom_call.1} parent=11 // pred_check_branch
        %362 = sbr.rel (%p360) target = $region24
      $region23: #{tpu_custom_call.1} parent=11 // pred_region
        _
      $region24: #{tpu_custom_call.1} parent=11 // pred_fallthru
        _
      // Predicated region
      $region25: #{tpu_custom_call.1} parent=11 // pred_check
        %p363 = pneg %p143
      $region26: #{tpu_custom_call.1} parent=11 // pred_check_branch
        %365 = sbr.rel (%p363) target = $region28
      $region27: #{tpu_custom_call.1} parent=11 // pred_region
        _
      $region28: #{tpu_custom_call.1} parent=11 // pred_fallthru
        _
      // Predicated region
      $region29: #{tpu_custom_call.1} parent=11 // pred_check
        %p366 = pneg %p164
      $region30: #{tpu_custom_call.1} parent=11 // pred_check_branch
        %368 = sbr.rel (%p366) target = $region32
      $region31: #{tpu_custom_call.1} parent=11 // pred_region
        _
      $region32: #{tpu_custom_call.1} parent=11 // pred_fallthru
        _
      // Predicated region
      $region33: #{tpu_custom_call.1} parent=11 // pred_check
        %p369 = pneg %p185
      $region34: #{tpu_custom_call.1} parent=11 // pred_check_branch
        %371 = sbr.rel (%p369) target = $region36
      $region35: #{tpu_custom_call.1} parent=11 // pred_region
        _
      $region36: #{tpu_custom_call.1} parent=11 // pred_fallthru
        _
      // Predicated region
      $region37: #{tpu_custom_call.1} parent=11 // pred_check
        %p372 = pneg %p206
      $region38: #{tpu_custom_call.1} parent=11 // pred_check_branch
        %374 = sbr.rel (%p372) target = $region40
      $region39: #{tpu_custom_call.1} parent=11 // pred_region
        _
      $region40: #{tpu_custom_call.1} parent=11 // pred_fallthru
        _
      // Predicated region
      $region41: #{tpu_custom_call.1} parent=11 // pred_check
        %p375 = pneg %p227
      $region42: #{tpu_custom_call.1} parent=11 // pred_check_branch
        %377 = sbr.rel (%p375) target = $region44
      $region43: #{tpu_custom_call.1} parent=11 // pred_region
        _
      $region44: #{tpu_custom_call.1} parent=11 // pred_fallthru
        _
      // Predicated region
      $region45: #{tpu_custom_call.1} parent=11 // pred_check
        %p378 = pneg %p248
      $region46: #{tpu_custom_call.1} parent=11 // pred_check_branch
        %380 = sbr.rel (%p378) target = $region48
      $region47: #{tpu_custom_call.1} parent=11 // pred_region
        _
      $region48: #{tpu_custom_call.1} parent=11 // pred_fallthru
        _
      // Predicated region
      $region49: #{tpu_custom_call.1} parent=11 // pred_check
        %p381 = pneg %p269
      $region50: #{tpu_custom_call.1} parent=11 // pred_check_branch
        %383 = sbr.rel (%p381) target = $region52
      $region51: #{tpu_custom_call.1} parent=11 // pred_region
        _
      $region52: #{tpu_custom_call.1} parent=11 // pred_fallthru
        _
      // Predicated region
      $region53: #{tpu_custom_call.1} parent=11 // pred_check
        %p384 = pneg %p290
      $region54: #{tpu_custom_call.1} parent=11 // pred_check_branch
        %386 = sbr.rel (%p384) target = $region56
      $region55: #{tpu_custom_call.1} parent=11 // pred_region
        _
      $region56: #{tpu_custom_call.1} parent=11 // pred_fallthru
        _
      // Predicated region
      $region57: #{tpu_custom_call.1} parent=11 // pred_check
        %p387 = pneg %p311
      $region58: #{tpu_custom_call.1} parent=11 // pred_check_branch
        %389 = sbr.rel (%p387) target = $region60
      $region59: #{tpu_custom_call.1} parent=11 // pred_region
        _
      $region60: #{tpu_custom_call.1} parent=11 // pred_fallthru
        _
    $region12: #{tpu_custom_call.1} parent=5 // pred_fallthru
      _
    %p390 = scmp.lt.s32.totalorder %s19, 2
    // Predicated region
    $region61: #{tpu_custom_call.1} parent=5 // pred_check
      %p391 = pneg %p390
    $region62: #{tpu_custom_call.1} parent=5 // pred_check_branch
      %393 = sbr.rel (%p391) target = $region64
    $region63: #{tpu_custom_call.1} parent=5 // pred_region
      // Predicated region
      $region65: #{tpu_custom_call.1} parent=63 // pred_check
        %p394 = pneg %p53
      $region66: #{tpu_custom_call.1} parent=63 // pred_check_branch
        %396 = sbr.rel (%p394) target = $region68
      $region67: #{tpu_custom_call.1} parent=63 // pred_region
        %s397 = smul.u32 2, %s27
        %p398 = scmp.lt.s32.totalorder %s26, 1
        %s399 = scalar_select %p398, %s26, 1
        %p400 = scmp.lt.s32.totalorder %s397, 1
        %s401 = scalar_select %p400, %s397, 1
        %s402 = smul.addr %s399, 2
        %s403 = sadd.s32 %s401, %s402
        %s404 = smul.addr %s403, 2
        %s405 = scalar_lea.vmem %s0, %s404
        %s406 = smul.u32 2, %s27
      $region68: #{tpu_custom_call.1} parent=63 // pred_fallthru
        _
    $region64: #{tpu_custom_call.1} parent=5 // pred_fallthru
      _
    %p407 = scmp.le.s32.totalorder 1, %s19
    %p408 = scmp.lt.s32.totalorder %s19, 3
    %p409 = pnand %p407, %p408
    %p410 = pneg %p409
    // Predicated region
    $region69: #{tpu_custom_call.1} parent=5 // pred_check
      _
    $region70: #{tpu_custom_call.1} parent=5 // pred_check_branch
      %412 = sbr.rel (%p409) target = $region72
    $region71: #{tpu_custom_call.1} parent=5 // pred_region
      %s413 = ssub.s32 %s19, 1
      %s414 = smul.u32 2, %s29
      %p415 = scmp.lt.s32.totalorder %s28, 1
      %s416 = scalar_select %p415, %s28, 1
      %p417 = scmp.lt.s32.totalorder %s414, 1
      %s418 = scalar_select %p417, %s414, 1
      %s419 = smul.addr %s416, 2
      %s420 = sadd.s32 %s418, %s419
      %s421 = smul.addr %s420, 2
      %s422 = scalar_lea.vmem %s0, %s421
      %p423 = pneg %p59
      %p424 = pneg %p56
      %p425 = pneg %p80
      %p426 = pneg %p77
      %p427 = pneg %p101
      %p428 = pneg %p98
      %p429 = pneg %p122
      %p430 = pneg %p119
      %p431 = pneg %p143
      %p432 = pneg %p140
      %p433 = pneg %p164
      %p434 = pneg %p161
      %p435 = pneg %p185
      %p436 = pneg %p182
      %p437 = pneg %p206
      %p438 = pneg %p203
      %p439 = pneg %p227
      %p440 = pneg %p224
      %p441 = pneg %p248
      %p442 = pneg %p245
      %p443 = pneg %p269
      %p444 = pneg %p266
      %p445 = pneg %p290
      %p446 = pneg %p287
      %p447 = pneg %p311
      %p448 = pneg %p308
      %p449 = pneg %p339
      %p450 = pneg %p336
      %s451 = smul.u32 2, %s29
      %p452 = scmp.lt.s32.totalorder %s28, 1
      %s453 = scalar_select %p452, %s28, 1
      %p454 = scmp.lt.s32.totalorder %s451, 1
      %s455 = scalar_select %p454, %s451, 1
      %s456 = smul.addr %s453, 2
      %s457 = sadd.s32 %s455, %s456
      %s458 = smul.addr %s457, 4
      %s459 = scalar_lea.vmem %s13, %s458
      %s460 = smul.u32 2, %s29
      %p461 = scmp.lt.s32.totalorder %s28, 1
      %s462 = scalar_select %p461, %s28, 1
      %p463 = scmp.lt.s32.totalorder %s460, 1
      %s464 = scalar_select %p463, %s460, 1
      %s465 = smul.addr %s462, 2
      %s466 = sadd.s32 %s464, %s465
      %s467 = smul.addr %s466, 2
      %s468 = scalar_lea.vmem %s0, %s467
      %s469 = smul.u32 2, %s29
      %s470 = smul.u32 2, %s29
      %p471 = scmp.lt.s32.totalorder %s28, 1
      %s472 = scalar_select %p471, %s28, 1
      %p473 = scmp.lt.s32.totalorder %s470, 1
      %s474 = scalar_select %p473, %s470, 1
      %s475 = smul.addr %s472, 2
      %s476 = sadd.s32 %s474, %s475
      %s477 = smul.addr %s476, 4
      %s478 = scalar_lea.vmem %s13, %s477
      %s479 = smul.u32 2, %s29
      %v481 = vld [vmem:[%s468] sm:$0xf]
      %v482 = vld [vmem:[%s1] sm:$0xf]
      %v483 = vld [vmem:[%s1 + $0x4] sm:$0xf]
      %v484 = vld [vmem:[%s1 + $0x8] sm:$0xf]
      %v485 = vld [vmem:[%s1 + $0xc] sm:$0xf]
      %v486 = vld [vmem:[%s1 + $0x10] sm:$0xf]
      %v487 = vld [vmem:[%s1 + $0x14] sm:$0xf]
      %v488 = vld [vmem:[%s1 + $0x18] sm:$0xf]
      %v489 = vld [vmem:[%s1 + $0x1c] sm:$0xf]
      %v490 = vld [vmem:[%s1 + $0x20] sm:$0xf]
      %v491 = vld [vmem:[%s1 + $0x24] sm:$0xf]
      %v492 = vld [vmem:[%s1 + $0x28] sm:$0xf]
      %v493 = vld [vmem:[%s1 + $0x2c] sm:$0xf]
      %v494 = vld [vmem:[%s1 + $0x30] sm:$0xf]
      %v495 = vld [vmem:[%s1 + $0x34] sm:$0xf]
      %v496 = vld [vmem:[%s1 + $0x38] sm:$0xf]
      %v497 = vld [vmem:[%s1 + $0x3c] sm:$0xf]
      %v498 = vld [vmem:[%s2] sm:$0xff]
      %v499 = vld [vmem:[%s2 + $0x8] sm:$0xff]
      %v500 = vld [vmem:[%s2 + $0x10] sm:$0xff]
      %v501 = vld [vmem:[%s2 + $0x18] sm:$0xff]
      %v502 = vld [vmem:[%s2 + $0x20] sm:$0xff]
      %v503 = vld [vmem:[%s2 + $0x28] sm:$0xff]
      %v504 = vld [vmem:[%s2 + $0x30] sm:$0xff]
      %v505 = vld [vmem:[%s2 + $0x38] sm:$0xff]
      %v506 = vld [vmem:[%s2 + $0x40] sm:$0xff]
      %v507 = vld [vmem:[%s2 + $0x48] sm:$0xff]
      %v508 = vld [vmem:[%s2 + $0x50] sm:$0xff]
      %v509 = vld [vmem:[%s2 + $0x58] sm:$0xff]
      %v510 = vld [vmem:[%s2 + $0x60] sm:$0xff]
      %v511 = vld [vmem:[%s2 + $0x68] sm:$0xff]
      %v512 = vld [vmem:[%s2 + $0x70] sm:$0xff]
      %v513 = vld [vmem:[%s2 + $0x78] sm:$0xff]
      %515 = vset.pattern.permute.xlu0 0
      %516 = vperm.xlu0 %515, %v498
      %v517 = vpop.permute.xlu0 %516
      %520 = vset.pattern.permute.xlu0 0
      %521 = vperm.xlu0 %520, %v499
      %v522 = vpop.permute.xlu0 %521
      %525 = vset.pattern.permute.xlu0 0
      %526 = vperm.xlu0 %525, %v500
      %v527 = vpop.permute.xlu0 %526
      %530 = vset.pattern.permute.xlu0 0
      %531 = vperm.xlu0 %530, %v501
      %v532 = vpop.permute.xlu0 %531
      %535 = vset.pattern.permute.xlu0 0
      %536 = vperm.xlu0 %535, %v502
      %v537 = vpop.permute.xlu0 %536
      %540 = vset.pattern.permute.xlu0 0
      %541 = vperm.xlu0 %540, %v503
      %v542 = vpop.permute.xlu0 %541
      %545 = vset.pattern.permute.xlu0 0
      %546 = vperm.xlu0 %545, %v504
      %v547 = vpop.permute.xlu0 %546
      %550 = vset.pattern.permute.xlu0 0
      %551 = vperm.xlu0 %550, %v505
      %v552 = vpop.permute.xlu0 %551
      %555 = vset.pattern.permute.xlu0 0
      %556 = vperm.xlu0 %555, %v506
      %v557 = vpop.permute.xlu0 %556
      %560 = vset.pattern.permute.xlu0 0
      %561 = vperm.xlu0 %560, %v507
      %v562 = vpop.permute.xlu0 %561
      %565 = vset.pattern.permute.xlu0 0
      %566 = vperm.xlu0 %565, %v508
      %v567 = vpop.permute.xlu0 %566
      %570 = vset.pattern.permute.xlu0 0
      %571 = vperm.xlu0 %570, %v509
      %v572 = vpop.permute.xlu0 %571
      %575 = vset.pattern.permute.xlu0 0
      %576 = vperm.xlu0 %575, %v510
      %v577 = vpop.permute.xlu0 %576
      %580 = vset.pattern.permute.xlu0 0
      %581 = vperm.xlu0 %580, %v511
      %v582 = vpop.permute.xlu0 %581
      %585 = vset.pattern.permute.xlu0 0
      %586 = vperm.xlu0 %585, %v512
      %v587 = vpop.permute.xlu0 %586
      %590 = vset.pattern.permute.xlu0 0
      %591 = vperm.xlu0 %590, %v513
      %v592 = vpop.permute.xlu0 %591
      %v610 = vunpack.c.l.b16 %v482
      %v611 = vunpack.c.l.b16 %v483
      %v612 = vunpack.c.l.b16 %v484
      %v613 = vunpack.c.l.b16 %v485
      %v614 = vunpack.c.l.b16 %v486
      %v615 = vunpack.c.l.b16 %v487
      %v616 = vunpack.c.l.b16 %v488
      %v617 = vunpack.c.l.b16 %v489
      %v618 = vunpack.c.l.b16 %v490
      %v619 = vunpack.c.l.b16 %v491
      %v620 = vunpack.c.l.b16 %v492
      %v621 = vunpack.c.l.b16 %v493
      %v622 = vunpack.c.l.b16 %v494
      %v623 = vunpack.c.l.b16 %v495
      %v624 = vunpack.c.l.b16 %v496
      %v625 = vunpack.c.l.b16 %v497
      %v626 = vpack.c.b16 %v611, %v610
      %v627 = vpack.c.b16 %v613, %v612
      %v628 = vpack.c.b16 %v615, %v614
      %v629 = vpack.c.b16 %v617, %v616
      %v630 = vpack.c.b16 %v619, %v618
      %v631 = vpack.c.b16 %v621, %v620
      %v632 = vpack.c.b16 %v623, %v622
      %v633 = vpack.c.b16 %v625, %v624
      %v636 = vunpack.c.l.s4 1983009808
      %v637 = vunpack.c.0.s8 %v636
      %v638 = vlaneseq
      %v639 = vshrl.u32 %v638, 7
      %v640 = vsub.s32 %v637, %v639
      %v641 = vrot.slane %v481, %v640
      %v642 = vcombine.high %v641, %v641
      %vm643 = vcmask 23552
      %v645 = vsel %vm643, %v626, 0
      %v648 = vsel %vm643, %v627, 0
      %v651 = vsel %vm643, %v628, 0
      %v654 = vsel %vm643, %v629, 0
      %v657 = vsel %vm643, %v630, 0
      %v660 = vsel %vm643, %v631, 0
      %v663 = vsel %vm643, %v632, 0
      %v666 = vsel %vm643, %v633, 0
      %vm668 = vcmask 1040384
      %vm669 = vcmask 1041408
      %v670 = vsel %vm668, 4294967295, 65535
      %v671 = vsel %vm669, %v670, 0
      %v673 = vand.u32 %v641, %v671
      %v676 = vand.u32 %v642, %v671
      %678 = vmatprep.subr.bf16.mxu0 %v676
      %679 = vmatpush1.bf16.msra.mxu0 %v673
      %680 = vmatprep.subr.bf16.mxu0 0
      %681 = vmatpush1.bf16.msra.mxu0 0
      %682 = vmatprep.subr.bf16.mxu0 0
      %683 = vmatpush1.bf16.msra.mxu0 0
      %684 = vmatprep.subr.bf16.mxu0 0
      %685 = vmatpush1.bf16.msra.mxu0 0
      %686 = vmatprep.subr.bf16.mxu0 0
      %687 = vmatpush1.bf16.msra.mxu0 0
      %688 = vmatprep.subr.bf16.mxu0 0
      %689 = vmatpush1.bf16.msra.mxu0 0
      %690 = vmatprep.subr.bf16.mxu0 0
      %691 = vmatpush1.bf16.msra.mxu0 0
      %692 = vmatprep.subr.bf16.mxu0 0
      %693 = vmatpush1.bf16.msra.mxu0 0
      %694 = vmatprep.subr.bf16.mxu0 0
      %695 = vmatpush1.bf16.msra.mxu0 0
      %696 = vmatprep.subr.bf16.mxu0 0
      %697 = vmatpush1.bf16.msra.mxu0 0
      %698 = vmatprep.subr.bf16.mxu0 0
      %699 = vmatpush1.bf16.msra.mxu0 0
      %700 = vmatprep.subr.bf16.mxu0 0
      %701 = vmatpush1.bf16.msra.mxu0 0
      %702 = vmatprep.subr.bf16.mxu0 0
      %703 = vmatpush1.bf16.msra.mxu0 0
      %704 = vmatprep.subr.bf16.mxu0 0
      %705 = vmatpush1.bf16.msra.mxu0 0
      %706 = vmatprep.subr.bf16.mxu0 0
      %707 = vmatpush1.bf16.msra.mxu0 0
      %708 = vmatprep.subr.bf16.mxu0 0
      %709 = vmatpush1.bf16.msra.mxu0 0
      %710 = vmatprep.mubr.bf16.mxu0 0
      %711 = vmatmul.mubr.bf16.gmra.mrb[0].mxu0 %v645
      %v712 = vpop.f32.mrb[0].mxu0
      %v713 = vadd.f32 %v517, %v712
      %v714 = vpop.f32.mrb[0].mxu0
      %v715 = vadd.f32 %v517, %v714
      %v716 = vpop.f32.mrb[0].mxu0
      %v717 = vadd.f32 %v522, %v716
      %v718 = vpop.f32.mrb[0].mxu0
      %v719 = vadd.f32 %v522, %v718
      %720 = vmatprep.mubr.bf16.mxu0 0
      %721 = vmatmul.mubr.bf16.gmra.mrb[0].mxu0 %v648
      %v722 = vpop.f32.mrb[0].mxu0
      %v723 = vadd.f32 %v527, %v722
      %v724 = vpop.f32.mrb[0].mxu0
      %v725 = vadd.f32 %v527, %v724
      %v726 = vpop.f32.mrb[0].mxu0
      %v727 = vadd.f32 %v532, %v726
      %v728 = vpop.f32.mrb[0].mxu0
      %v729 = vadd.f32 %v532, %v728
      %730 = vmatprep.mubr.bf16.mxu0 0
      %731 = vmatmul.mubr.bf16.gmra.mrb[0].mxu0 %v651
      %v732 = vpop.f32.mrb[0].mxu0
      %v733 = vadd.f32 %v537, %v732
      %v734 = vpop.f32.mrb[0].mxu0
      %v735 = vadd.f32 %v537, %v734
      %v736 = vpop.f32.mrb[0].mxu0
      %v737 = vadd.f32 %v542, %v736
      %v738 = vpop.f32.mrb[0].mxu0
      %v739 = vadd.f32 %v542, %v738
      %740 = vmatprep.mubr.bf16.mxu0 0
      %741 = vmatmul.mubr.bf16.gmra.mrb[0].mxu0 %v654
      %v742 = vpop.f32.mrb[0].mxu0
      %v743 = vadd.f32 %v547, %v742
      %v744 = vpop.f32.mrb[0].mxu0
      %v745 = vadd.f32 %v547, %v744
      %v746 = vpop.f32.mrb[0].mxu0
      %v747 = vadd.f32 %v552, %v746
      %v748 = vpop.f32.mrb[0].mxu0
      %v749 = vadd.f32 %v552, %v748
      %750 = vmatprep.mubr.bf16.mxu0 0
      %751 = vmatmul.mubr.bf16.gmra.mrb[0].mxu0 %v657
      %v752 = vpop.f32.mrb[0].mxu0
      %v753 = vadd.f32 %v557, %v752
      %v754 = vpop.f32.mrb[0].mxu0
      %v755 = vadd.f32 %v557, %v754
      %v756 = vpop.f32.mrb[0].mxu0
      %v757 = vadd.f32 %v562, %v756
      %v758 = vpop.f32.mrb[0].mxu0
      %v759 = vadd.f32 %v562, %v758
      %760 = vmatprep.mubr.bf16.mxu0 0
      %761 = vmatmul.mubr.bf16.gmra.mrb[0].mxu0 %v660
      %v762 = vpop.f32.mrb[0].mxu0
      %v763 = vadd.f32 %v567, %v762
      %v764 = vpop.f32.mrb[0].mxu0
      %v765 = vadd.f32 %v567, %v764
      %v766 = vpop.f32.mrb[0].mxu0
      %v767 = vadd.f32 %v572, %v766
      %v768 = vpop.f32.mrb[0].mxu0
      %v769 = vadd.f32 %v572, %v768
      %770 = vmatprep.mubr.bf16.mxu0 0
      %771 = vmatmul.mubr.bf16.gmra.mrb[0].mxu0 %v663
      %v772 = vpop.f32.mrb[0].mxu0
      %v773 = vadd.f32 %v577, %v772
      %v774 = vpop.f32.mrb[0].mxu0
      %v775 = vadd.f32 %v577, %v774
      %v776 = vpop.f32.mrb[0].mxu0
      %v777 = vadd.f32 %v582, %v776
      %v778 = vpop.f32.mrb[0].mxu0
      %v779 = vadd.f32 %v582, %v778
      %780 = vmatprep.mubr.bf16.mxu0 0
      %781 = vmatmul.mubr.bf16.gmra.mrb[0].mxu0 %v666
      %v782 = vpop.f32.mrb[0].mxu0
      %v783 = vadd.f32 %v587, %v782
      %v784 = vpop.f32.mrb[0].mxu0
      %v785 = vadd.f32 %v587, %v784
      %v786 = vpop.f32.mrb[0].mxu0
      %v787 = vadd.f32 %v592, %v786
      %v788 = vpop.f32.mrb[0].mxu0
      %v789 = vadd.f32 %v592, %v788
      %790 = vdwg.mxu0
      %v791 = vxor.u32 %v713, 2147483648
      %v792 = vxor.u32 %v715, 2147483648
      %v793 = vxor.u32 %v717, 2147483648
      %v794 = vxor.u32 %v719, 2147483648
      %v795 = vxor.u32 %v723, 2147483648
      %v796 = vxor.u32 %v725, 2147483648
      %v797 = vxor.u32 %v727, 2147483648
      %v798 = vxor.u32 %v729, 2147483648
      %v799 = vxor.u32 %v733, 2147483648
      %v800 = vxor.u32 %v735, 2147483648
      %v801 = vxor.u32 %v737, 2147483648
      %v802 = vxor.u32 %v739, 2147483648
      %v803 = vxor.u32 %v743, 2147483648
      %v804 = vxor.u32 %v745, 2147483648
      %v805 = vxor.u32 %v747, 2147483648
      %v806 = vxor.u32 %v749, 2147483648
      %v807 = vxor.u32 %v753, 2147483648
      %v808 = vxor.u32 %v755, 2147483648
      %v809 = vxor.u32 %v757, 2147483648
      %v810 = vxor.u32 %v759, 2147483648
      %v811 = vxor.u32 %v763, 2147483648
      %v812 = vxor.u32 %v765, 2147483648
      %v813 = vxor.u32 %v767, 2147483648
      %v814 = vxor.u32 %v769, 2147483648
      %v815 = vxor.u32 %v773, 2147483648
      %v816 = vxor.u32 %v775, 2147483648
      %v817 = vxor.u32 %v777, 2147483648
      %v818 = vxor.u32 %v779, 2147483648
      %v819 = vxor.u32 %v783, 2147483648
      %v820 = vxor.u32 %v785, 2147483648
      %v821 = vxor.u32 %v787, 2147483648
      %v822 = vxor.u32 %v789, 2147483648
      %v823 = vmul.f32 %v791, 1.442695
      %v824 = vpow.pop %v823
      %v825 = vmul.f32 %v792, 1.442695
      %v826 = vpow.pop %v825
      %v827 = vmul.f32 %v793, 1.442695
      %v828 = vpow.pop %v827
      %v829 = vmul.f32 %v794, 1.442695
      %v830 = vpow.pop %v829
      %v831 = vmul.f32 %v795, 1.442695
      %v832 = vpow.pop %v831
      %v833 = vmul.f32 %v796, 1.442695
      %v834 = vpow.pop %v833
      %v835 = vmul.f32 %v797, 1.442695
      %v836 = vpow.pop %v835
      %v837 = vmul.f32 %v798, 1.442695
      %v838 = vpow.pop %v837
      %v839 = vmul.f32 %v799, 1.442695
      %v840 = vpow.pop %v839
      %v841 = vmul.f32 %v800, 1.442695
      %v842 = vpow.pop %v841
      %v843 = vmul.f32 %v801, 1.442695
      %v844 = vpow.pop %v843
      %v845 = vmul.f32 %v802, 1.442695
      %v846 = vpow.pop %v845
      %v847 = vmul.f32 %v803, 1.442695
      %v848 = vpow.pop %v847
      %v849 = vmul.f32 %v804, 1.442695
      %v850 = vpow.pop %v849
      %v851 = vmul.f32 %v805, 1.442695
      %v852 = vpow.pop %v851
      %v853 = vmul.f32 %v806, 1.442695
      %v854 = vpow.pop %v853
      %v855 = vmul.f32 %v807, 1.442695
      %v856 = vpow.pop %v855
      %v857 = vmul.f32 %v808, 1.442695
      %v858 = vpow.pop %v857
      %v859 = vmul.f32 %v809, 1.442695
      %v860 = vpow.pop %v859
      %v861 = vmul.f32 %v810, 1.442695
      %v862 = vpow.pop %v861
      %v863 = vmul.f32 %v811, 1.442695
      %v864 = vpow.pop %v863
      %v865 = vmul.f32 %v812, 1.442695
      %v866 = vpow.pop %v865
      %v867 = vmul.f32 %v813, 1.442695
      %v868 = vpow.pop %v867
      %v869 = vmul.f32 %v814, 1.442695
      %v870 = vpow.pop %v869
      %v871 = vmul.f32 %v815, 1.442695
      %v872 = vpow.pop %v871
      %v873 = vmul.f32 %v816, 1.442695
      %v874 = vpow.pop %v873
      %v875 = vmul.f32 %v817, 1.442695
      %v876 = vpow.pop %v875
      %v877 = vmul.f32 %v818, 1.442695
      %v878 = vpow.pop %v877
      %v879 = vmul.f32 %v819, 1.442695
      %v880 = vpow.pop %v879
      %v881 = vmul.f32 %v820, 1.442695
      %v882 = vpow.pop %v881
      %v883 = vmul.f32 %v821, 1.442695
      %v884 = vpow.pop %v883
      %v885 = vmul.f32 %v822, 1.442695
      %v886 = vpow.pop %v885
      %v887 = vadd.f32 %v824, 1.0
      %v888 = vadd.f32 %v826, 1.0
      %v889 = vadd.f32 %v828, 1.0
      %v890 = vadd.f32 %v830, 1.0
      %v891 = vadd.f32 %v832, 1.0
      %v892 = vadd.f32 %v834, 1.0
      %v893 = vadd.f32 %v836, 1.0
      %v894 = vadd.f32 %v838, 1.0
      %v895 = vadd.f32 %v840, 1.0
      %v896 = vadd.f32 %v842, 1.0
      %v897 = vadd.f32 %v844, 1.0
      %v898 = vadd.f32 %v846, 1.0
      %v899 = vadd.f32 %v848, 1.0
      %v900 = vadd.f32 %v850, 1.0
      %v901 = vadd.f32 %v852, 1.0
      %v902 = vadd.f32 %v854, 1.0
      %v903 = vadd.f32 %v856, 1.0
      %v904 = vadd.f32 %v858, 1.0
      %v905 = vadd.f32 %v860, 1.0
      %v906 = vadd.f32 %v862, 1.0
      %v907 = vadd.f32 %v864, 1.0
      %v908 = vadd.f32 %v866, 1.0
      %v909 = vadd.f32 %v868, 1.0
      %v910 = vadd.f32 %v870, 1.0
      %v911 = vadd.f32 %v872, 1.0
      %v912 = vadd.f32 %v874, 1.0
      %v913 = vadd.f32 %v876, 1.0
      %v914 = vadd.f32 %v878, 1.0
      %v915 = vadd.f32 %v880, 1.0
      %v916 = vadd.f32 %v882, 1.0
      %v917 = vadd.f32 %v884, 1.0
      %v918 = vadd.f32 %v886, 1.0
      %v919 = vrcp.pop %v887
      %v920 = vmul.f32 1.0, %v919
      %v921 = vrcp.pop %v888
      %v922 = vmul.f32 1.0, %v921
      %v923 = vrcp.pop %v889
      %v924 = vmul.f32 1.0, %v923
      %v925 = vrcp.pop %v890
      %v926 = vmul.f32 1.0, %v925
      %v927 = vrcp.pop %v891
      %v928 = vmul.f32 1.0, %v927
      %v929 = vrcp.pop %v892
      %v930 = vmul.f32 1.0, %v929
      %v931 = vrcp.pop %v893
      %v932 = vmul.f32 1.0, %v931
      %v933 = vrcp.pop %v894
      %v934 = vmul.f32 1.0, %v933
      %v935 = vrcp.pop %v895
      %v936 = vmul.f32 1.0, %v935
      %v937 = vrcp.pop %v896
      %v938 = vmul.f32 1.0, %v937
      %v939 = vrcp.pop %v897
      %v940 = vmul.f32 1.0, %v939
      %v941 = vrcp.pop %v898
      %v942 = vmul.f32 1.0, %v941
      %v943 = vrcp.pop %v899
      %v944 = vmul.f32 1.0, %v943
      %v945 = vrcp.pop %v900
      %v946 = vmul.f32 1.0, %v945
      %v947 = vrcp.pop %v901
      %v948 = vmul.f32 1.0, %v947
      %v949 = vrcp.pop %v902
      %v950 = vmul.f32 1.0, %v949
      %v951 = vrcp.pop %v903
      %v952 = vmul.f32 1.0, %v951
      %v953 = vrcp.pop %v904
      %v954 = vmul.f32 1.0, %v953
      %v955 = vrcp.pop %v905
      %v956 = vmul.f32 1.0, %v955
      %v957 = vrcp.pop %v906
      %v958 = vmul.f32 1.0, %v957
      %v959 = vrcp.pop %v907
      %v960 = vmul.f32 1.0, %v959
      %v961 = vrcp.pop %v908
      %v962 = vmul.f32 1.0, %v961
      %v963 = vrcp.pop %v909
      %v964 = vmul.f32 1.0, %v963
      %v965 = vrcp.pop %v910
      %v966 = vmul.f32 1.0, %v965
      %v967 = vrcp.pop %v911
      %v968 = vmul.f32 1.0, %v967
      %v969 = vrcp.pop %v912
      %v970 = vmul.f32 1.0, %v969
      %v971 = vrcp.pop %v913
      %v972 = vmul.f32 1.0, %v971
      %v973 = vrcp.pop %v914
      %v974 = vmul.f32 1.0, %v973
      %v975 = vrcp.pop %v915
      %v976 = vmul.f32 1.0, %v975
      %v977 = vrcp.pop %v916
      %v978 = vmul.f32 1.0, %v977
      %v979 = vrcp.pop %v917
      %v980 = vmul.f32 1.0, %v979
      %v981 = vrcp.pop %v918
      %v982 = vmul.f32 1.0, %v981
      %v983 = vmul.f32 %v713, %v920
      %v984 = vmul.f32 %v715, %v922
      %v985 = vmul.f32 %v717, %v924
      %v986 = vmul.f32 %v719, %v926
      %v987 = vmul.f32 %v723, %v928
      %v988 = vmul.f32 %v725, %v930
      %v989 = vmul.f32 %v727, %v932
      %v990 = vmul.f32 %v729, %v934
      %v991 = vmul.f32 %v733, %v936
      %v992 = vmul.f32 %v735, %v938
      %v993 = vmul.f32 %v737, %v940
      %v994 = vmul.f32 %v739, %v942
      %v995 = vmul.f32 %v743, %v944
      %v996 = vmul.f32 %v745, %v946
      %v997 = vmul.f32 %v747, %v948
      %v998 = vmul.f32 %v749, %v950
      %v999 = vmul.f32 %v753, %v952
      %v1000 = vmul.f32 %v755, %v954
      %v1001 = vmul.f32 %v757, %v956
      %v1002 = vmul.f32 %v759, %v958
      %v1003 = vmul.f32 %v763, %v960
      %v1004 = vmul.f32 %v765, %v962
      %v1005 = vmul.f32 %v767, %v964
      %v1006 = vmul.f32 %v769, %v966
      %v1007 = vmul.f32 %v773, %v968
      %v1008 = vmul.f32 %v775, %v970
      %v1009 = vmul.f32 %v777, %v972
      %v1010 = vmul.f32 %v779, %v974
      %v1011 = vmul.f32 %v783, %v976
      %v1012 = vmul.f32 %v785, %v978
      %v1013 = vmul.f32 %v787, %v980
      %v1014 = vmul.f32 %v789, %v982
      %v1015 = vld [vmem:[%s3] sm:$0xf]
      %v1016 = vld [vmem:[%s3 + $0x4] sm:$0xf]
      %v1017 = vld [vmem:[%s3 + $0x8] sm:$0xf]
      %v1018 = vld [vmem:[%s3 + $0xc] sm:$0xf]
      %v1019 = vld [vmem:[%s3 + $0x10] sm:$0xf]
      %v1020 = vld [vmem:[%s3 + $0x14] sm:$0xf]
      %v1021 = vld [vmem:[%s3 + $0x18] sm:$0xf]
      %v1022 = vld [vmem:[%s3 + $0x1c] sm:$0xf]
      %v1023 = vld [vmem:[%s3 + $0x20] sm:$0xf]
      %v1024 = vld [vmem:[%s3 + $0x24] sm:$0xf]
      %v1025 = vld [vmem:[%s3 + $0x28] sm:$0xf]
      %v1026 = vld [vmem:[%s3 + $0x2c] sm:$0xf]
      %v1027 = vld [vmem:[%s3 + $0x30] sm:$0xf]
      %v1028 = vld [vmem:[%s3 + $0x34] sm:$0xf]
      %v1029 = vld [vmem:[%s3 + $0x38] sm:$0xf]
      %v1030 = vld [vmem:[%s3 + $0x3c] sm:$0xf]
      %v1031 = vld [vmem:[%s3 + $0x40] sm:$0xf]
      %v1032 = vld [vmem:[%s3 + $0x44] sm:$0xf]
      %v1033 = vld [vmem:[%s3 + $0x48] sm:$0xf]
      %v1034 = vld [vmem:[%s3 + $0x4c] sm:$0xf]
      %v1035 = vld [vmem:[%s3 + $0x50] sm:$0xf]
      %v1036 = vld [vmem:[%s3 + $0x54] sm:$0xf]
      %v1037 = vld [vmem:[%s3 + $0x58] sm:$0xf]
      %v1038 = vld [vmem:[%s3 + $0x5c] sm:$0xf]
      %v1039 = vld [vmem:[%s3 + $0x60] sm:$0xf]
      %v1040 = vld [vmem:[%s3 + $0x64] sm:$0xf]
      %v1041 = vld [vmem:[%s3 + $0x68] sm:$0xf]
      %v1042 = vld [vmem:[%s3 + $0x6c] sm:$0xf]
      %v1043 = vld [vmem:[%s3 + $0x70] sm:$0xf]
      %v1044 = vld [vmem:[%s3 + $0x74] sm:$0xf]
      %v1045 = vld [vmem:[%s3 + $0x78] sm:$0xf]
      %v1046 = vld [vmem:[%s3 + $0x7c] sm:$0xf]
      %v1047 = vld [vmem:[%s4] sm:$0xff]
      %v1048 = vld [vmem:[%s4 + $0x8] sm:$0xff]
      %v1049 = vld [vmem:[%s4 + $0x10] sm:$0xff]
      %v1050 = vld [vmem:[%s4 + $0x18] sm:$0xff]
      %v1051 = vld [vmem:[%s4 + $0x20] sm:$0xff]
      %v1052 = vld [vmem:[%s4 + $0x28] sm:$0xff]
      %v1053 = vld [vmem:[%s4 + $0x30] sm:$0xff]
      %v1054 = vld [vmem:[%s4 + $0x38] sm:$0xff]
      %v1055 = vld [vmem:[%s4 + $0x40] sm:$0xff]
      %v1056 = vld [vmem:[%s4 + $0x48] sm:$0xff]
      %v1057 = vld [vmem:[%s4 + $0x50] sm:$0xff]
      %v1058 = vld [vmem:[%s4 + $0x58] sm:$0xff]
      %v1059 = vld [vmem:[%s4 + $0x60] sm:$0xff]
      %v1060 = vld [vmem:[%s4 + $0x68] sm:$0xff]
      %v1061 = vld [vmem:[%s4 + $0x70] sm:$0xff]
      %v1062 = vld [vmem:[%s4 + $0x78] sm:$0xff]
      %v1063 = vld [vmem:[%s4 + $0x80] sm:$0xff]
      %v1064 = vld [vmem:[%s4 + $0x88] sm:$0xff]
      %v1065 = vld [vmem:[%s4 + $0x90] sm:$0xff]
      %v1066 = vld [vmem:[%s4 + $0x98] sm:$0xff]
      %v1067 = vld [vmem:[%s4 + $0xa0] sm:$0xff]
      %v1068 = vld [vmem:[%s4 + $0xa8] sm:$0xff]
      %v1069 = vld [vmem:[%s4 + $0xb0] sm:$0xff]
      %v1070 = vld [vmem:[%s4 + $0xb8] sm:$0xff]
      %v1071 = vld [vmem:[%s4 + $0xc0] sm:$0xff]
      %v1072 = vld [vmem:[%s4 + $0xc8] sm:$0xff]
      %v1073 = vld [vmem:[%s4 + $0xd0] sm:$0xff]
      %v1074 = vld [vmem:[%s4 + $0xd8] sm:$0xff]
      %v1075 = vld [vmem:[%s4 + $0xe0] sm:$0xff]
      %v1076 = vld [vmem:[%s4 + $0xe8] sm:$0xff]
      %v1077 = vld [vmem:[%s4 + $0xf0] sm:$0xff]
      %v1078 = vld [vmem:[%s4 + $0xf8] sm:$0xff]
      %v1079 = vpack.c.bf16 %v985, %v983
      %v1080 = vpack.c.bf16 %v986, %v984
      %v1081 = vpack.c.bf16 %v989, %v987
      %v1082 = vpack.c.bf16 %v990, %v988
      %v1083 = vpack.c.bf16 %v993, %v991
      %v1084 = vpack.c.bf16 %v994, %v992
      %v1085 = vpack.c.bf16 %v997, %v995
      %v1086 = vpack.c.bf16 %v998, %v996
      %v1087 = vpack.c.bf16 %v1001, %v999
      %v1088 = vpack.c.bf16 %v1002, %v1000
      %v1089 = vpack.c.bf16 %v1005, %v1003
      %v1090 = vpack.c.bf16 %v1006, %v1004
      %v1091 = vpack.c.bf16 %v1009, %v1007
      %v1092 = vpack.c.bf16 %v1010, %v1008
      %v1093 = vpack.c.bf16 %v1013, %v1011
      %v1094 = vpack.c.bf16 %v1014, %v1012
      %1096 = vset.pattern.permute.xlu0 0
      %1097 = vperm.xlu0 %1096, %v1047
      %v1098 = vpop.permute.xlu0 %1097
      %1101 = vset.pattern.permute.xlu0 0
      %1102 = vperm.xlu0 %1101, %v1048
      %v1103 = vpop.permute.xlu0 %1102
      %1106 = vset.pattern.permute.xlu0 0
      %1107 = vperm.xlu0 %1106, %v1049
      %v1108 = vpop.permute.xlu0 %1107
      %1111 = vset.pattern.permute.xlu0 0
      %1112 = vperm.xlu0 %1111, %v1050
      %v1113 = vpop.permute.xlu0 %1112
      %1116 = vset.pattern.permute.xlu0 0
      %1117 = vperm.xlu0 %1116, %v1051
      %v1118 = vpop.permute.xlu0 %1117
      %1121 = vset.pattern.permute.xlu0 0
      %1122 = vperm.xlu0 %1121, %v1052
      %v1123 = vpop.permute.xlu0 %1122
      %1126 = vset.pattern.permute.xlu0 0
      %1127 = vperm.xlu0 %1126, %v1053
      %v1128 = vpop.permute.xlu0 %1127
      %1131 = vset.pattern.permute.xlu0 0
      %1132 = vperm.xlu0 %1131, %v1054
      %v1133 = vpop.permute.xlu0 %1132
      %1136 = vset.pattern.permute.xlu0 0
      %1137 = vperm.xlu0 %1136, %v1055
      %v1138 = vpop.permute.xlu0 %1137
      %1141 = vset.pattern.permute.xlu0 0
      %1142 = vperm.xlu0 %1141, %v1056
      %v1143 = vpop.permute.xlu0 %1142
      %1146 = vset.pattern.permute.xlu0 0
      %1147 = vperm.xlu0 %1146, %v1057
      %v1148 = vpop.permute.xlu0 %1147
      %1151 = vset.pattern.permute.xlu0 0
      %1152 = vperm.xlu0 %1151, %v1058
      %v1153 = vpop.permute.xlu0 %1152
      %1156 = vset.pattern.permute.xlu0 0
      %1157 = vperm.xlu0 %1156, %v1059
      %v1158 = vpop.permute.xlu0 %1157
      %1161 = vset.pattern.permute.xlu0 0
      %1162 = vperm.xlu0 %1161, %v1060
      %v1163 = vpop.permute.xlu0 %1162
      %1166 = vset.pattern.permute.xlu0 0
      %1167 = vperm.xlu0 %1166, %v1061
      %v1168 = vpop.permute.xlu0 %1167
      %1171 = vset.pattern.permute.xlu0 0
      %1172 = vperm.xlu0 %1171, %v1062
      %v1173 = vpop.permute.xlu0 %1172
      %1176 = vset.pattern.permute.xlu0 0
      %1177 = vperm.xlu0 %1176, %v1063
      %v1178 = vpop.permute.xlu0 %1177
      %1181 = vset.pattern.permute.xlu0 0
      %1182 = vperm.xlu0 %1181, %v1064
      %v1183 = vpop.permute.xlu0 %1182
      %1186 = vset.pattern.permute.xlu0 0
      %1187 = vperm.xlu0 %1186, %v1065
      %v1188 = vpop.permute.xlu0 %1187
      %1191 = vset.pattern.permute.xlu0 0
      %1192 = vperm.xlu0 %1191, %v1066
      %v1193 = vpop.permute.xlu0 %1192
      %1196 = vset.pattern.permute.xlu0 0
      %1197 = vperm.xlu0 %1196, %v1067
      %v1198 = vpop.permute.xlu0 %1197
      %1201 = vset.pattern.permute.xlu0 0
      %1202 = vperm.xlu0 %1201, %v1068
      %v1203 = vpop.permute.xlu0 %1202
      %1206 = vset.pattern.permute.xlu0 0
      %1207 = vperm.xlu0 %1206, %v1069
      %v1208 = vpop.permute.xlu0 %1207
      %1211 = vset.pattern.permute.xlu0 0
      %1212 = vperm.xlu0 %1211, %v1070
      %v1213 = vpop.permute.xlu0 %1212
      %1216 = vset.pattern.permute.xlu0 0
      %1217 = vperm.xlu0 %1216, %v1071
      %v1218 = vpop.permute.xlu0 %1217
      %1221 = vset.pattern.permute.xlu0 0
      %1222 = vperm.xlu0 %1221, %v1072
      %v1223 = vpop.permute.xlu0 %1222
      %1226 = vset.pattern.permute.xlu0 0
      %1227 = vperm.xlu0 %1226, %v1073
      %v1228 = vpop.permute.xlu0 %1227
      %1231 = vset.pattern.permute.xlu0 0
      %1232 = vperm.xlu0 %1231, %v1074
      %v1233 = vpop.permute.xlu0 %1232
      %1236 = vset.pattern.permute.xlu0 0
      %1237 = vperm.xlu0 %1236, %v1075
      %v1238 = vpop.permute.xlu0 %1237
      %1241 = vset.pattern.permute.xlu0 0
      %1242 = vperm.xlu0 %1241, %v1076
      %v1243 = vpop.permute.xlu0 %1242
      %1246 = vset.pattern.permute.xlu0 0
      %1247 = vperm.xlu0 %1246, %v1077
      %v1248 = vpop.permute.xlu0 %1247
      %1251 = vset.pattern.permute.xlu0 0
      %1252 = vperm.xlu0 %1251, %v1078
      %v1253 = vpop.permute.xlu0 %1252
      %v1287 = vunpack.c.l.b16 %v1015
      %v1288 = vunpack.c.l.b16 %v1016
      %v1289 = vunpack.c.l.b16 %v1017
      %v1290 = vunpack.c.l.b16 %v1018
      %v1291 = vunpack.c.l.b16 %v1019
      %v1292 = vunpack.c.l.b16 %v1020
      %v1293 = vunpack.c.l.b16 %v1021
      %v1294 = vunpack.c.l.b16 %v1022
      %v1295 = vunpack.c.l.b16 %v1023
      %v1296 = vunpack.c.l.b16 %v1024
      %v1297 = vunpack.c.l.b16 %v1025
      %v1298 = vunpack.c.l.b16 %v1026
      %v1299 = vunpack.c.l.b16 %v1027
      %v1300 = vunpack.c.l.b16 %v1028
      %v1301 = vunpack.c.l.b16 %v1029
      %v1302 = vunpack.c.l.b16 %v1030
      %v1303 = vunpack.c.l.b16 %v1031
      %v1304 = vunpack.c.l.b16 %v1032
      %v1305 = vunpack.c.l.b16 %v1033
      %v1306 = vunpack.c.l.b16 %v1034
      %v1307 = vunpack.c.l.b16 %v1035
      %v1308 = vunpack.c.l.b16 %v1036
      %v1309 = vunpack.c.l.b16 %v1037
      %v1310 = vunpack.c.l.b16 %v1038
      %v1311 = vunpack.c.l.b16 %v1039
      %v1312 = vunpack.c.l.b16 %v1040
      %v1313 = vunpack.c.l.b16 %v1041
      %v1314 = vunpack.c.l.b16 %v1042
      %v1315 = vunpack.c.l.b16 %v1043
      %v1316 = vunpack.c.l.b16 %v1044
      %v1317 = vunpack.c.l.b16 %v1045
      %v1318 = vunpack.c.l.b16 %v1046
      %v1319 = vpack.c.b16 %v1288, %v1287
      %v1320 = vpack.c.b16 %v1290, %v1289
      %v1321 = vpack.c.b16 %v1292, %v1291
      %v1322 = vpack.c.b16 %v1294, %v1293
      %v1323 = vpack.c.b16 %v1296, %v1295
      %v1324 = vpack.c.b16 %v1298, %v1297
      %v1325 = vpack.c.b16 %v1300, %v1299
      %v1326 = vpack.c.b16 %v1302, %v1301
      %v1327 = vpack.c.b16 %v1304, %v1303
      %v1328 = vpack.c.b16 %v1306, %v1305
      %v1329 = vpack.c.b16 %v1308, %v1307
      %v1330 = vpack.c.b16 %v1310, %v1309
      %v1331 = vpack.c.b16 %v1312, %v1311
      %v1332 = vpack.c.b16 %v1314, %v1313
      %v1333 = vpack.c.b16 %v1316, %v1315
      %v1334 = vpack.c.b16 %v1318, %v1317
      %1351 = vmatprep.subr.bf16.mxu0 %v1080
      %1352 = vmatpush1.bf16.msra.mxu0 %v1079
      %1353 = vmatprep.subr.bf16.mxu0 %v1082
      %1354 = vmatpush1.bf16.msra.mxu0 %v1081
      %1355 = vmatprep.subr.bf16.mxu0 %v1084
      %1356 = vmatpush1.bf16.msra.mxu0 %v1083
      %1357 = vmatprep.subr.bf16.mxu0 %v1086
      %1358 = vmatpush1.bf16.msra.mxu0 %v1085
      %1359 = vmatprep.subr.bf16.mxu0 %v1088
      %1360 = vmatpush1.bf16.msra.mxu0 %v1087
      %1361 = vmatprep.subr.bf16.mxu0 %v1090
      %1362 = vmatpush1.bf16.msra.mxu0 %v1089
      %1363 = vmatprep.subr.bf16.mxu0 %v1092
      %1364 = vmatpush1.bf16.msra.mxu0 %v1091
      %1365 = vmatprep.subr.bf16.mxu0 %v1094
      %1366 = vmatpush1.bf16.msra.mxu0 %v1093
      %1367 = vmatprep.subr.bf16.mxu0 0
      %1368 = vmatpush1.bf16.msra.mxu0 0
      %1369 = vmatprep.subr.bf16.mxu0 0
      %1370 = vmatpush1.bf16.msra.mxu0 0
      %1371 = vmatprep.subr.bf16.mxu0 0
      %1372 = vmatpush1.bf16.msra.mxu0 0
      %1373 = vmatprep.subr.bf16.mxu0 0
      %1374 = vmatpush1.bf16.msra.mxu0 0
      %1375 = vmatprep.subr.bf16.mxu0 0
      %1376 = vmatpush1.bf16.msra.mxu0 0
      %1377 = vmatprep.subr.bf16.mxu0 0
      %1378 = vmatpush1.bf16.msra.mxu0 0
      %1379 = vmatprep.subr.bf16.mxu0 0
      %1380 = vmatpush1.bf16.msra.mxu0 0
      %1381 = vmatprep.subr.bf16.mxu0 0
      %1382 = vmatpush1.bf16.msra.mxu0 0
      %1383 = vmatprep.mubr.bf16.mxu0 0
      %1384 = vmatmul.mubr.bf16.gmra.mrb[0].mxu0 %v1319
      %v1385 = vpop.f32.mrb[0].mxu0
      %v1386 = vadd.f32 %v1098, %v1385
      %v1387 = vpop.f32.mrb[0].mxu0
      %v1388 = vadd.f32 %v1098, %v1387
      %v1389 = vpop.f32.mrb[0].mxu0
      %v1390 = vadd.f32 %v1103, %v1389
      %v1391 = vpop.f32.mrb[0].mxu0
      %v1392 = vadd.f32 %v1103, %v1391
      %1393 = vmatprep.mubr.bf16.mxu0 0
      %1394 = vmatmul.mubr.bf16.gmra.mrb[0].mxu0 %v1320
      %v1395 = vpop.f32.mrb[0].mxu0
      %v1396 = vadd.f32 %v1108, %v1395
      %v1397 = vpop.f32.mrb[0].mxu0
      %v1398 = vadd.f32 %v1108, %v1397
      %v1399 = vpop.f32.mrb[0].mxu0
      %v1400 = vadd.f32 %v1113, %v1399
      %v1401 = vpop.f32.mrb[0].mxu0
      %v1402 = vadd.f32 %v1113, %v1401
      %1403 = vmatprep.mubr.bf16.mxu0 0
      %1404 = vmatmul.mubr.bf16.gmra.mrb[0].mxu0 %v1321
      %v1405 = vpop.f32.mrb[0].mxu0
      %v1406 = vadd.f32 %v1118, %v1405
      %v1407 = vpop.f32.mrb[0].mxu0
      %v1408 = vadd.f32 %v1118, %v1407
      %v1409 = vpop.f32.mrb[0].mxu0
      %v1410 = vadd.f32 %v1123, %v1409
      %v1411 = vpop.f32.mrb[0].mxu0
      %v1412 = vadd.f32 %v1123, %v1411
      %1413 = vmatprep.mubr.bf16.mxu0 0
      %1414 = vmatmul.mubr.bf16.gmra.mrb[0].mxu0 %v1322
      %v1415 = vpop.f32.mrb[0].mxu0
      %v1416 = vadd.f32 %v1128, %v1415
      %v1417 = vpop.f32.mrb[0].mxu0
      %v1418 = vadd.f32 %v1128, %v1417
      %v1419 = vpop.f32.mrb[0].mxu0
      %v1420 = vadd.f32 %v1133, %v1419
      %v1421 = vpop.f32.mrb[0].mxu0
      %v1422 = vadd.f32 %v1133, %v1421
      %1423 = vmatprep.mubr.bf16.mxu0 0
      %1424 = vmatmul.mubr.bf16.gmra.mrb[0].mxu0 %v1323
      %v1425 = vpop.f32.mrb[0].mxu0
      %v1426 = vadd.f32 %v1138, %v1425
      %v1427 = vpop.f32.mrb[0].mxu0
      %v1428 = vadd.f32 %v1138, %v1427
      %v1429 = vpop.f32.mrb[0].mxu0
      %v1430 = vadd.f32 %v1143, %v1429
      %v1431 = vpop.f32.mrb[0].mxu0
      %v1432 = vadd.f32 %v1143, %v1431
      %1433 = vmatprep.mubr.bf16.mxu0 0
      %1434 = vmatmul.mubr.bf16.gmra.mrb[0].mxu0 %v1324
      %v1435 = vpop.f32.mrb[0].mxu0
      %v1436 = vadd.f32 %v1148, %v1435
      %v1437 = vpop.f32.mrb[0].mxu0
      %v1438 = vadd.f32 %v1148, %v1437
      %v1439 = vpop.f32.mrb[0].mxu0
      %v1440 = vadd.f32 %v1153, %v1439
      %v1441 = vpop.f32.mrb[0].mxu0
      %v1442 = vadd.f32 %v1153, %v1441
      %1443 = vmatprep.mubr.bf16.mxu0 0
      %1444 = vmatmul.mubr.bf16.gmra.mrb[0].mxu0 %v1325
      %v1445 = vpop.f32.mrb[0].mxu0
      %v1446 = vadd.f32 %v1158, %v1445
      %v1447 = vpop.f32.mrb[0].mxu0
      %v1448 = vadd.f32 %v1158, %v1447
      %v1449 = vpop.f32.mrb[0].mxu0
      %v1450 = vadd.f32 %v1163, %v1449
      %v1451 = vpop.f32.mrb[0].mxu0
      %v1452 = vadd.f32 %v1163, %v1451
      %1453 = vmatprep.mubr.bf16.mxu0 0
      %1454 = vmatmul.mubr.bf16.gmra.mrb[0].mxu0 %v1326
      %v1455 = vpop.f32.mrb[0].mxu0
      %v1456 = vadd.f32 %v1168, %v1455
      %v1457 = vpop.f32.mrb[0].mxu0
      %v1458 = vadd.f32 %v1168, %v1457
      %v1459 = vpop.f32.mrb[0].mxu0
      %v1460 = vadd.f32 %v1173, %v1459
      %v1461 = vpop.f32.mrb[0].mxu0
      %v1462 = vadd.f32 %v1173, %v1461
      %1463 = vmatprep.mubr.bf16.mxu0 0
      %1464 = vmatmul.mubr.bf16.gmra.mrb[0].mxu0 %v1327
      %v1465 = vpop.f32.mrb[0].mxu0
      %v1466 = vadd.f32 %v1178, %v1465
      %v1467 = vpop.f32.mrb[0].mxu0
      %v1468 = vadd.f32 %v1178, %v1467
      %v1469 = vpop.f32.mrb[0].mxu0
      %v1470 = vadd.f32 %v1183, %v1469
      %v1471 = vpop.f32.mrb[0].mxu0
      %v1472 = vadd.f32 %v1183, %v1471
      %1473 = vmatprep.mubr.bf16.mxu0 0
      %1474 = vmatmul.mubr.bf16.gmra.mrb[0].mxu0 %v1328
      %v1475 = vpop.f32.mrb[0].mxu0
      %v1476 = vadd.f32 %v1188, %v1475
      %v1477 = vpop.f32.mrb[0].mxu0
      %v1478 = vadd.f32 %v1188, %v1477
      %v1479 = vpop.f32.mrb[0].mxu0
      %v1480 = vadd.f32 %v1193, %v1479
      %v1481 = vpop.f32.mrb[0].mxu0
      %v1482 = vadd.f32 %v1193, %v1481
      %1483 = vmatprep.mubr.bf16.mxu0 0
      %1484 = vmatmul.mubr.bf16.gmra.mrb[0].mxu0 %v1329
      %v1485 = vpop.f32.mrb[0].mxu0
      %v1486 = vadd.f32 %v1198, %v1485
      %v1487 = vpop.f32.mrb[0].mxu0
      %v1488 = vadd.f32 %v1198, %v1487
      %v1489 = vpop.f32.mrb[0].mxu0
      %v1490 = vadd.f32 %v1203, %v1489
      %v1491 = vpop.f32.mrb[0].mxu0
      %v1492 = vadd.f32 %v1203, %v1491
      %1493 = vmatprep.mubr.bf16.mxu0 0
      %1494 = vmatmul.mubr.bf16.gmra.mrb[0].mxu0 %v1330
      %v1495 = vpop.f32.mrb[0].mxu0
      %v1496 = vadd.f32 %v1208, %v1495
      %v1497 = vpop.f32.mrb[0].mxu0
      %v1498 = vadd.f32 %v1208, %v1497
      %v1499 = vpop.f32.mrb[0].mxu0
      %v1500 = vadd.f32 %v1213, %v1499
      %v1501 = vpop.f32.mrb[0].mxu0
      %v1502 = vadd.f32 %v1213, %v1501
      %1503 = vmatprep.mubr.bf16.mxu0 0
      %1504 = vmatmul.mubr.bf16.gmra.mrb[0].mxu0 %v1331
      %v1505 = vpop.f32.mrb[0].mxu0
      %v1506 = vadd.f32 %v1218, %v1505
      %v1507 = vpop.f32.mrb[0].mxu0
      %v1508 = vadd.f32 %v1218, %v1507
      %v1509 = vpop.f32.mrb[0].mxu0
      %v1510 = vadd.f32 %v1223, %v1509
      %v1511 = vpop.f32.mrb[0].mxu0
      %v1512 = vadd.f32 %v1223, %v1511
      %1513 = vmatprep.mubr.bf16.mxu0 0
      %1514 = vmatmul.mubr.bf16.gmra.mrb[0].mxu0 %v1332
      %v1515 = vpop.f32.mrb[0].mxu0
      %v1516 = vadd.f32 %v1228, %v1515
      %v1517 = vpop.f32.mrb[0].mxu0
      %v1518 = vadd.f32 %v1228, %v1517
      %v1519 = vpop.f32.mrb[0].mxu0
      %v1520 = vadd.f32 %v1233, %v1519
      %v1521 = vpop.f32.mrb[0].mxu0
      %v1522 = vadd.f32 %v1233, %v1521
      %1523 = vmatprep.mubr.bf16.mxu0 0
      %1524 = vmatmul.mubr.bf16.gmra.mrb[0].mxu0 %v1333
      %v1525 = vpop.f32.mrb[0].mxu0
      %v1526 = vadd.f32 %v1238, %v1525
      %v1527 = vpop.f32.mrb[0].mxu0
      %v1528 = vadd.f32 %v1238, %v1527
      %v1529 = vpop.f32.mrb[0].mxu0
      %v1530 = vadd.f32 %v1243, %v1529
      %v1531 = vpop.f32.mrb[0].mxu0
      %v1532 = vadd.f32 %v1243, %v1531
      %1533 = vmatprep.mubr.bf16.mxu0 0
      %1534 = vmatmul.mubr.bf16.gmra.mrb[0].mxu0 %v1334
      %v1535 = vpop.f32.mrb[0].mxu0
      %v1536 = vadd.f32 %v1248, %v1535
      %v1537 = vpop.f32.mrb[0].mxu0
      %v1538 = vadd.f32 %v1248, %v1537
      %v1539 = vpop.f32.mrb[0].mxu0
      %v1540 = vadd.f32 %v1253, %v1539
      %v1541 = vpop.f32.mrb[0].mxu0
      %v1542 = vadd.f32 %v1253, %v1541
      %1543 = vdwg.mxu0
      %v1544 = vxor.u32 %v1386, 2147483648
      %v1545 = vxor.u32 %v1388, 2147483648
      %v1546 = vxor.u32 %v1390, 2147483648
      %v1547 = vxor.u32 %v1392, 2147483648
      %v1548 = vxor.u32 %v1396, 2147483648
      %v1549 = vxor.u32 %v1398, 2147483648
      %v1550 = vxor.u32 %v1400, 2147483648
      %v1551 = vxor.u32 %v1402, 2147483648
      %v1552 = vxor.u32 %v1406, 2147483648
      %v1553 = vxor.u32 %v1408, 2147483648
      %v1554 = vxor.u32 %v1410, 2147483648
      %v1555 = vxor.u32 %v1412, 2147483648
      %v1556 = vxor.u32 %v1416, 2147483648
      %v1557 = vxor.u32 %v1418, 2147483648
      %v1558 = vxor.u32 %v1420, 2147483648
      %v1559 = vxor.u32 %v1422, 2147483648
      %v1560 = vxor.u32 %v1426, 2147483648
      %v1561 = vxor.u32 %v1428, 2147483648
      %v1562 = vxor.u32 %v1430, 2147483648
      %v1563 = vxor.u32 %v1432, 2147483648
      %v1564 = vxor.u32 %v1436, 2147483648
      %v1565 = vxor.u32 %v1438, 2147483648
      %v1566 = vxor.u32 %v1440, 2147483648
      %v1567 = vxor.u32 %v1442, 2147483648
      %v1568 = vxor.u32 %v1446, 2147483648
      %v1569 = vxor.u32 %v1448, 2147483648
      %v1570 = vxor.u32 %v1450, 2147483648
      %v1571 = vxor.u32 %v1452, 2147483648
      %v1572 = vxor.u32 %v1456, 2147483648
      %v1573 = vxor.u32 %v1458, 2147483648
      %v1574 = vxor.u32 %v1460, 2147483648
      %v1575 = vxor.u32 %v1462, 2147483648
      %v1576 = vxor.u32 %v1466, 2147483648
      %v1577 = vxor.u32 %v1468, 2147483648
      %v1578 = vxor.u32 %v1470, 2147483648
      %v1579 = vxor.u32 %v1472, 2147483648
      %v1580 = vxor.u32 %v1476, 2147483648
      %v1581 = vxor.u32 %v1478, 2147483648
      %v1582 = vxor.u32 %v1480, 2147483648
      %v1583 = vxor.u32 %v1482, 2147483648
      %v1584 = vxor.u32 %v1486, 2147483648
      %v1585 = vxor.u32 %v1488, 2147483648
      %v1586 = vxor.u32 %v1490, 2147483648
      %v1587 = vxor.u32 %v1492, 2147483648
      %v1588 = vxor.u32 %v1496, 2147483648
      %v1589 = vxor.u32 %v1498, 2147483648
      %v1590 = vxor.u32 %v1500, 2147483648
      %v1591 = vxor.u32 %v1502, 2147483648
      %v1592 = vxor.u32 %v1506, 2147483648
      %v1593 = vxor.u32 %v1508, 2147483648
      %v1594 = vxor.u32 %v1510, 2147483648
      %v1595 = vxor.u32 %v1512, 2147483648
      %v1596 = vxor.u32 %v1516, 2147483648
      %v1597 = vxor.u32 %v1518, 2147483648
      %v1598 = vxor.u32 %v1520, 2147483648
      %v1599 = vxor.u32 %v1522, 2147483648
      %v1600 = vxor.u32 %v1526, 2147483648
      %v1601 = vxor.u32 %v1528, 2147483648
      %v1602 = vxor.u32 %v1530, 2147483648
      %v1603 = vxor.u32 %v1532, 2147483648
      %v1604 = vxor.u32 %v1536, 2147483648
      %v1605 = vxor.u32 %v1538, 2147483648
      %v1606 = vxor.u32 %v1540, 2147483648
      %v1607 = vxor.u32 %v1542, 2147483648
      %v1608 = vmul.f32 %v1544, 1.442695
      %v1609 = vpow.pop %v1608
      %v1610 = vmul.f32 %v1545, 1.442695
      %v1611 = vpow.pop %v1610
      %v1612 = vmul.f32 %v1546, 1.442695
      %v1613 = vpow.pop %v1612
      %v1614 = vmul.f32 %v1547, 1.442695
      %v1615 = vpow.pop %v1614
      %v1616 = vmul.f32 %v1548, 1.442695
      %v1617 = vpow.pop %v1616
      %v1618 = vmul.f32 %v1549, 1.442695
      %v1619 = vpow.pop %v1618
      %v1620 = vmul.f32 %v1550, 1.442695
      %v1621 = vpow.pop %v1620
      %v1622 = vmul.f32 %v1551, 1.442695
      %v1623 = vpow.pop %v1622
      %v1624 = vmul.f32 %v1552, 1.442695
      %v1625 = vpow.pop %v1624
      %v1626 = vmul.f32 %v1553, 1.442695
      %v1627 = vpow.pop %v1626
      %v1628 = vmul.f32 %v1554, 1.442695
      %v1629 = vpow.pop %v1628
      %v1630 = vmul.f32 %v1555, 1.442695
      %v1631 = vpow.pop %v1630
      %v1632 = vmul.f32 %v1556, 1.442695
      %v1633 = vpow.pop %v1632
      %v1634 = vmul.f32 %v1557, 1.442695
      %v1635 = vpow.pop %v1634
      %v1636 = vmul.f32 %v1558, 1.442695
      %v1637 = vpow.pop %v1636
      %v1638 = vmul.f32 %v1559, 1.442695
      %v1639 = vpow.pop %v1638
      %v1640 = vmul.f32 %v1560, 1.442695
      %v1641 = vpow.pop %v1640
      %v1642 = vmul.f32 %v1561, 1.442695
      %v1643 = vpow.pop %v1642
      %v1644 = vmul.f32 %v1562, 1.442695
      %v1645 = vpow.pop %v1644
      %v1646 = vmul.f32 %v1563, 1.442695
      %v1647 = vpow.pop %v1646
      %v1648 = vmul.f32 %v1564, 1.442695
      %v1649 = vpow.pop %v1648
      %v1650 = vmul.f32 %v1565, 1.442695
      %v1651 = vpow.pop %v1650
      %v1652 = vmul.f32 %v1566, 1.442695
      %v1653 = vpow.pop %v1652
      %v1654 = vmul.f32 %v1567, 1.442695
      %v1655 = vpow.pop %v1654
      %v1656 = vmul.f32 %v1568, 1.442695
      %v1657 = vpow.pop %v1656
      %v1658 = vmul.f32 %v1569, 1.442695
      %v1659 = vpow.pop %v1658
      %v1660 = vmul.f32 %v1570, 1.442695
      %v1661 = vpow.pop %v1660
      %v1662 = vmul.f32 %v1571, 1.442695
      %v1663 = vpow.pop %v1662
      %v1664 = vmul.f32 %v1572, 1.442695
      %v1665 = vpow.pop %v1664
      %v1666 = vmul.f32 %v1573, 1.442695
      %v1667 = vpow.pop %v1666
      %v1668 = vmul.f32 %v1574, 1.442695
      %v1669 = vpow.pop %v1668
      %v1670 = vmul.f32 %v1575, 1.442695
      %v1671 = vpow.pop %v1670
      %v1672 = vmul.f32 %v1576, 1.442695
      %v1673 = vpow.pop %v1672
      %v1674 = vmul.f32 %v1577, 1.442695
      %v1675 = vpow.pop %v1674
      %v1676 = vmul.f32 %v1578, 1.442695
      %v1677 = vpow.pop %v1676
      %v1678 = vmul.f32 %v1579, 1.442695
      %v1679 = vpow.pop %v1678
      %v1680 = vmul.f32 %v1580, 1.442695
      %v1681 = vpow.pop %v1680
      %v1682 = vmul.f32 %v1581, 1.442695
      %v1683 = vpow.pop %v1682
      %v1684 = vmul.f32 %v1582, 1.442695
      %v1685 = vpow.pop %v1684
      %v1686 = vmul.f32 %v1583, 1.442695
      %v1687 = vpow.pop %v1686
      %v1688 = vmul.f32 %v1584, 1.442695
      %v1689 = vpow.pop %v1688
      %v1690 = vmul.f32 %v1585, 1.442695
      %v1691 = vpow.pop %v1690
      %v1692 = vmul.f32 %v1586, 1.442695
      %v1693 = vpow.pop %v1692
      %v1694 = vmul.f32 %v1587, 1.442695
      %v1695 = vpow.pop %v1694
      %v1696 = vmul.f32 %v1588, 1.442695
      %v1697 = vpow.pop %v1696
      %v1698 = vmul.f32 %v1589, 1.442695
      %v1699 = vpow.pop %v1698
      %v1700 = vmul.f32 %v1590, 1.442695
      %v1701 = vpow.pop %v1700
      %v1702 = vmul.f32 %v1591, 1.442695
      %v1703 = vpow.pop %v1702
      %v1704 = vmul.f32 %v1592, 1.442695
      %v1705 = vpow.pop %v1704
      %v1706 = vmul.f32 %v1593, 1.442695
      %v1707 = vpow.pop %v1706
      %v1708 = vmul.f32 %v1594, 1.442695
      %v1709 = vpow.pop %v1708
      %v1710 = vmul.f32 %v1595, 1.442695
      %v1711 = vpow.pop %v1710
      %v1712 = vmul.f32 %v1596, 1.442695
      %v1713 = vpow.pop %v1712
      %v1714 = vmul.f32 %v1597, 1.442695
      %v1715 = vpow.pop %v1714
      %v1716 = vmul.f32 %v1598, 1.442695
      %v1717 = vpow.pop %v1716
      %v1718 = vmul.f32 %v1599, 1.442695
      %v1719 = vpow.pop %v1718
      %v1720 = vmul.f32 %v1600, 1.442695
      %v1721 = vpow.pop %v1720
      %v1722 = vmul.f32 %v1601, 1.442695
      %v1723 = vpow.pop %v1722
      %v1724 = vmul.f32 %v1602, 1.442695
      %v1725 = vpow.pop %v1724
      %v1726 = vmul.f32 %v1603, 1.442695
      %v1727 = vpow.pop %v1726
      %v1728 = vmul.f32 %v1604, 1.442695
      %v1729 = vpow.pop %v1728
      %v1730 = vmul.f32 %v1605, 1.442695
      %v1731 = vpow.pop %v1730
      %v1732 = vmul.f32 %v1606, 1.442695
      %v1733 = vpow.pop %v1732
      %v1734 = vmul.f32 %v1607, 1.442695
      %v1735 = vpow.pop %v1734
      %v1736 = vadd.f32 %v1609, 1.0
      %v1737 = vadd.f32 %v1611, 1.0
      %v1738 = vadd.f32 %v1613, 1.0
      %v1739 = vadd.f32 %v1615, 1.0
      %v1740 = vadd.f32 %v1617, 1.0
      %v1741 = vadd.f32 %v1619, 1.0
      %v1742 = vadd.f32 %v1621, 1.0
      %v1743 = vadd.f32 %v1623, 1.0
      %v1744 = vadd.f32 %v1625, 1.0
      %v1745 = vadd.f32 %v1627, 1.0
      %v1746 = vadd.f32 %v1629, 1.0
      %v1747 = vadd.f32 %v1631, 1.0
      %v1748 = vadd.f32 %v1633, 1.0
      %v1749 = vadd.f32 %v1635, 1.0
      %v1750 = vadd.f32 %v1637, 1.0
      %v1751 = vadd.f32 %v1639, 1.0
      %v1752 = vadd.f32 %v1641, 1.0
      %v1753 = vadd.f32 %v1643, 1.0
      %v1754 = vadd.f32 %v1645, 1.0
      %v1755 = vadd.f32 %v1647, 1.0
      %v1756 = vadd.f32 %v1649, 1.0
      %v1757 = vadd.f32 %v1651, 1.0
      %v1758 = vadd.f32 %v1653, 1.0
      %v1759 = vadd.f32 %v1655, 1.0
      %v1760 = vadd.f32 %v1657, 1.0
      %v1761 = vadd.f32 %v1659, 1.0
      %v1762 = vadd.f32 %v1661, 1.0
      %v1763 = vadd.f32 %v1663, 1.0
      %v1764 = vadd.f32 %v1665, 1.0
      %v1765 = vadd.f32 %v1667, 1.0
      %v1766 = vadd.f32 %v1669, 1.0
      %v1767 = vadd.f32 %v1671, 1.0
      %v1768 = vadd.f32 %v1673, 1.0
      %v1769 = vadd.f32 %v1675, 1.0
      %v1770 = vadd.f32 %v1677, 1.0
      %v1771 = vadd.f32 %v1679, 1.0
      %v1772 = vadd.f32 %v1681, 1.0
      %v1773 = vadd.f32 %v1683, 1.0
      %v1774 = vadd.f32 %v1685, 1.0
      %v1775 = vadd.f32 %v1687, 1.0
      %v1776 = vadd.f32 %v1689, 1.0
      %v1777 = vadd.f32 %v1691, 1.0
      %v1778 = vadd.f32 %v1693, 1.0
      %v1779 = vadd.f32 %v1695, 1.0
      %v1780 = vadd.f32 %v1697, 1.0
      %v1781 = vadd.f32 %v1699, 1.0
      %v1782 = vadd.f32 %v1701, 1.0
      %v1783 = vadd.f32 %v1703, 1.0
      %v1784 = vadd.f32 %v1705, 1.0
      %v1785 = vadd.f32 %v1707, 1.0
      %v1786 = vadd.f32 %v1709, 1.0
      %v1787 = vadd.f32 %v1711, 1.0
      %v1788 = vadd.f32 %v1713, 1.0
      %v1789 = vadd.f32 %v1715, 1.0
      %v1790 = vadd.f32 %v1717, 1.0
      %v1791 = vadd.f32 %v1719, 1.0
      %v1792 = vadd.f32 %v1721, 1.0
      %v1793 = vadd.f32 %v1723, 1.0
      %v1794 = vadd.f32 %v1725, 1.0
      %v1795 = vadd.f32 %v1727, 1.0
      %v1796 = vadd.f32 %v1729, 1.0
      %v1797 = vadd.f32 %v1731, 1.0
      %v1798 = vadd.f32 %v1733, 1.0
      %v1799 = vadd.f32 %v1735, 1.0
      %v1800 = vrcp.pop %v1736
      %v1801 = vmul.f32 1.0, %v1800
      %v1802 = vrcp.pop %v1737
      %v1803 = vmul.f32 1.0, %v1802
      %v1804 = vrcp.pop %v1738
      %v1805 = vmul.f32 1.0, %v1804
      %v1806 = vrcp.pop %v1739
      %v1807 = vmul.f32 1.0, %v1806
      %v1808 = vrcp.pop %v1740
      %v1809 = vmul.f32 1.0, %v1808
      %v1810 = vrcp.pop %v1741
      %v1811 = vmul.f32 1.0, %v1810
      %v1812 = vrcp.pop %v1742
      %v1813 = vmul.f32 1.0, %v1812
      %v1814 = vrcp.pop %v1743
      %v1815 = vmul.f32 1.0, %v1814
      %v1816 = vrcp.pop %v1744
      %v1817 = vmul.f32 1.0, %v1816
      %v1818 = vrcp.pop %v1745
      %v1819 = vmul.f32 1.0, %v1818
      %v1820 = vrcp.pop %v1746
      %v1821 = vmul.f32 1.0, %v1820
      %v1822 = vrcp.pop %v1747
      %v1823 = vmul.f32 1.0, %v1822
      %v1824 = vrcp.pop %v1748
      %v1825 = vmul.f32 1.0, %v1824
      %v1826 = vrcp.pop %v1749
      %v1827 = vmul.f32 1.0, %v1826
      %v1828 = vrcp.pop %v1750
      %v1829 = vmul.f32 1.0, %v1828
      %v1830 = vrcp.pop %v1751
      %v1831 = vmul.f32 1.0, %v1830
      %v1832 = vrcp.pop %v1752
      %v1833 = vmul.f32 1.0, %v1832
      %v1834 = vrcp.pop %v1753
      %v1835 = vmul.f32 1.0, %v1834
      %v1836 = vrcp.pop %v1754
      %v1837 = vmul.f32 1.0, %v1836
      %v1838 = vrcp.pop %v1755
      %v1839 = vmul.f32 1.0, %v1838
      %v1840 = vrcp.pop %v1756
      %v1841 = vmul.f32 1.0, %v1840
      %v1842 = vrcp.pop %v1757
      %v1843 = vmul.f32 1.0, %v1842
      %v1844 = vrcp.pop %v1758
      %v1845 = vmul.f32 1.0, %v1844
      %v1846 = vrcp.pop %v1759
      %v1847 = vmul.f32 1.0, %v1846
      %v1848 = vrcp.pop %v1760
      %v1849 = vmul.f32 1.0, %v1848
      %v1850 = vrcp.pop %v1761
      %v1851 = vmul.f32 1.0, %v1850
      %v1852 = vrcp.pop %v1762
      %v1853 = vmul.f32 1.0, %v1852
      %v1854 = vrcp.pop %v1763
      %v1855 = vmul.f32 1.0, %v1854
      %v1856 = vrcp.pop %v1764
      %v1857 = vmul.f32 1.0, %v1856
      %v1858 = vrcp.pop %v1765
      %v1859 = vmul.f32 1.0, %v1858
      %v1860 = vrcp.pop %v1766
      %v1861 = vmul.f32 1.0, %v1860
      %v1862 = vrcp.pop %v1767
      %v1863 = vmul.f32 1.0, %v1862
      %v1864 = vrcp.pop %v1768
      %v1865 = vmul.f32 1.0, %v1864
      %v1866 = vrcp.pop %v1769
      %v1867 = vmul.f32 1.0, %v1866
      %v1868 = vrcp.pop %v1770
      %v1869 = vmul.f32 1.0, %v1868
      %v1870 = vrcp.pop %v1771
      %v1871 = vmul.f32 1.0, %v1870
      %v1872 = vrcp.pop %v1772
      %v1873 = vmul.f32 1.0, %v1872
      %v1874 = vrcp.pop %v1773
      %v1875 = vmul.f32 1.0, %v1874
      %v1876 = vrcp.pop %v1774
      %v1877 = vmul.f32 1.0, %v1876
      %v1878 = vrcp.pop %v1775
      %v1879 = vmul.f32 1.0, %v1878
      %v1880 = vrcp.pop %v1776
      %v1881 = vmul.f32 1.0, %v1880
      %v1882 = vrcp.pop %v1777
      %v1883 = vmul.f32 1.0, %v1882
      %v1884 = vrcp.pop %v1778
      %v1885 = vmul.f32 1.0, %v1884
      %v1886 = vrcp.pop %v1779
      %v1887 = vmul.f32 1.0, %v1886
      %v1888 = vrcp.pop %v1780
      %v1889 = vmul.f32 1.0, %v1888
      %v1890 = vrcp.pop %v1781
      %v1891 = vmul.f32 1.0, %v1890
      %v1892 = vrcp.pop %v1782
      %v1893 = vmul.f32 1.0, %v1892
      %v1894 = vrcp.pop %v1783
      %v1895 = vmul.f32 1.0, %v1894
      %v1896 = vrcp.pop %v1784
      %v1897 = vmul.f32 1.0, %v1896
      %v1898 = vrcp.pop %v1785
      %v1899 = vmul.f32 1.0, %v1898
      %v1900 = vrcp.pop %v1786
      %v1901 = vmul.f32 1.0, %v1900
      %v1902 = vrcp.pop %v1787
      %v1903 = vmul.f32 1.0, %v1902
      %v1904 = vrcp.pop %v1788
      %v1905 = vmul.f32 1.0, %v1904
      %v1906 = vrcp.pop %v1789
      %v1907 = vmul.f32 1.0, %v1906
      %v1908 = vrcp.pop %v1790
      %v1909 = vmul.f32 1.0, %v1908
      %v1910 = vrcp.pop %v1791
      %v1911 = vmul.f32 1.0, %v1910
      %v1912 = vrcp.pop %v1792
      %v1913 = vmul.f32 1.0, %v1912
      %v1914 = vrcp.pop %v1793
      %v1915 = vmul.f32 1.0, %v1914
      %v1916 = vrcp.pop %v1794
      %v1917 = vmul.f32 1.0, %v1916
      %v1918 = vrcp.pop %v1795
      %v1919 = vmul.f32 1.0, %v1918
      %v1920 = vrcp.pop %v1796
      %v1921 = vmul.f32 1.0, %v1920
      %v1922 = vrcp.pop %v1797
      %v1923 = vmul.f32 1.0, %v1922
      %v1924 = vrcp.pop %v1798
      %v1925 = vmul.f32 1.0, %v1924
      %v1926 = vrcp.pop %v1799
      %v1927 = vmul.f32 1.0, %v1926
      %v1928 = vmul.f32 %v1386, %v1801
      %v1929 = vmul.f32 %v1388, %v1803
      %v1930 = vmul.f32 %v1390, %v1805
      %v1931 = vmul.f32 %v1392, %v1807
      %v1932 = vmul.f32 %v1396, %v1809
      %v1933 = vmul.f32 %v1398, %v1811
      %v1934 = vmul.f32 %v1400, %v1813
      %v1935 = vmul.f32 %v1402, %v1815
      %v1936 = vmul.f32 %v1406, %v1817
      %v1937 = vmul.f32 %v1408, %v1819
      %v1938 = vmul.f32 %v1410, %v1821
      %v1939 = vmul.f32 %v1412, %v1823
      %v1940 = vmul.f32 %v1416, %v1825
      %v1941 = vmul.f32 %v1418, %v1827
      %v1942 = vmul.f32 %v1420, %v1829
      %v1943 = vmul.f32 %v1422, %v1831
      %v1944 = vmul.f32 %v1426, %v1833
      %v1945 = vmul.f32 %v1428, %v1835
      %v1946 = vmul.f32 %v1430, %v1837
      %v1947 = vmul.f32 %v1432, %v1839
      %v1948 = vmul.f32 %v1436, %v1841
      %v1949 = vmul.f32 %v1438, %v1843
      %v1950 = vmul.f32 %v1440, %v1845
      %v1951 = vmul.f32 %v1442, %v1847
      %v1952 = vmul.f32 %v1446, %v1849
      %v1953 = vmul.f32 %v1448, %v1851
      %v1954 = vmul.f32 %v1450, %v1853
      %v1955 = vmul.f32 %v1452, %v1855
      %v1956 = vmul.f32 %v1456, %v1857
      %v1957 = vmul.f32 %v1458, %v1859
      %v1958 = vmul.f32 %v1460, %v1861
      %v1959 = vmul.f32 %v1462, %v1863
      %v1960 = vmul.f32 %v1466, %v1865
      %v1961 = vmul.f32 %v1468, %v1867
      %v1962 = vmul.f32 %v1470, %v1869
      %v1963 = vmul.f32 %v1472, %v1871
      %v1964 = vmul.f32 %v1476, %v1873
      %v1965 = vmul.f32 %v1478, %v1875
      %v1966 = vmul.f32 %v1480, %v1877
      %v1967 = vmul.f32 %v1482, %v1879
      %v1968 = vmul.f32 %v1486, %v1881
      %v1969 = vmul.f32 %v1488, %v1883
      %v1970 = vmul.f32 %v1490, %v1885
      %v1971 = vmul.f32 %v1492, %v1887
      %v1972 = vmul.f32 %v1496, %v1889
      %v1973 = vmul.f32 %v1498, %v1891
      %v1974 = vmul.f32 %v1500, %v1893
      %v1975 = vmul.f32 %v1502, %v1895
      %v1976 = vmul.f32 %v1506, %v1897
      %v1977 = vmul.f32 %v1508, %v1899
      %v1978 = vmul.f32 %v1510, %v1901
      %v1979 = vmul.f32 %v1512, %v1903
      %v1980 = vmul.f32 %v1516, %v1905
      %v1981 = vmul.f32 %v1518, %v1907
      %v1982 = vmul.f32 %v1520, %v1909
      %v1983 = vmul.f32 %v1522, %v1911
      %v1984 = vmul.f32 %v1526, %v1913
      %v1985 = vmul.f32 %v1528, %v1915
      %v1986 = vmul.f32 %v1530, %v1917
      %v1987 = vmul.f32 %v1532, %v1919
      %v1988 = vmul.f32 %v1536, %v1921
      %v1989 = vmul.f32 %v1538, %v1923
      %v1990 = vmul.f32 %v1540, %v1925
      %v1991 = vmul.f32 %v1542, %v1927
      %v1992 = vld [vmem:[%s5] sm:$0x3]
      %v1993 = vld [vmem:[%s6] sm:$0x3]
      %v1994 = vpack.c.bf16 %v1930, %v1928
      %v1995 = vpack.c.bf16 %v1931, %v1929
      %v1996 = vpack.c.bf16 %v1934, %v1932
      %v1997 = vpack.c.bf16 %v1935, %v1933
      %v1998 = vpack.c.bf16 %v1938, %v1936
      %v1999 = vpack.c.bf16 %v1939, %v1937
      %v2000 = vpack.c.bf16 %v1942, %v1940
      %v2001 = vpack.c.bf16 %v1943, %v1941
      %v2002 = vpack.c.bf16 %v1946, %v1944
      %v2003 = vpack.c.bf16 %v1947, %v1945
      %v2004 = vpack.c.bf16 %v1950, %v1948
      %v2005 = vpack.c.bf16 %v1951, %v1949
      %v2006 = vpack.c.bf16 %v1954, %v1952
      %v2007 = vpack.c.bf16 %v1955, %v1953
      %v2008 = vpack.c.bf16 %v1958, %v1956
      %v2009 = vpack.c.bf16 %v1959, %v1957
      %v2010 = vpack.c.bf16 %v1962, %v1960
      %v2011 = vpack.c.bf16 %v1963, %v1961
      %v2012 = vpack.c.bf16 %v1966, %v1964
      %v2013 = vpack.c.bf16 %v1967, %v1965
      %v2014 = vpack.c.bf16 %v1970, %v1968
      %v2015 = vpack.c.bf16 %v1971, %v1969
      %v2016 = vpack.c.bf16 %v1974, %v1972
      %v2017 = vpack.c.bf16 %v1975, %v1973
      %v2018 = vpack.c.bf16 %v1978, %v1976
      %v2019 = vpack.c.bf16 %v1979, %v1977
      %v2020 = vpack.c.bf16 %v1982, %v1980
      %v2021 = vpack.c.bf16 %v1983, %v1981
      %v2022 = vpack.c.bf16 %v1986, %v1984
      %v2023 = vpack.c.bf16 %v1987, %v1985
      %v2024 = vpack.c.bf16 %v1990, %v1988
      %v2025 = vpack.c.bf16 %v1991, %v1989
      %2027 = vset.pattern.permute.xlu0 0
      %2028 = vperm.xlu0 %2027, %v1993
      %v2029 = vpop.permute.xlu0 %2028
      %v2033 = vunpack.c.l.s4 1966171168
      %v2034 = vunpack.c.0.s8 %v2033
      %v2035 = vlaneseq
      %v2036 = vshrl.u32 %v2035, 7
      %v2037 = vsub.s32 %v2034, %v2036
      %v2038 = vrot.slane %v1992, %v2037
      %v2039 = vcombine.high %v2038, %v2038
      %v2041 = vunpack.c.l.s4 1966171168
      %v2042 = vunpack.c.0.s8 %v2041
      %v2043 = vlaneseq
      %v2044 = vshrl.u32 %v2043, 7
      %v2045 = vsub.s32 %v2042, %v2044
      %v2046 = vrot.slane %v2038, %v2045
      %v2048 = vunpack.c.l.s4 1966171168
      %v2049 = vunpack.c.0.s8 %v2048
      %v2050 = vlaneseq
      %v2051 = vshrl.u32 %v2050, 7
      %v2052 = vsub.s32 %v2049, %v2051
      %v2053 = vrot.slane %v2039, %v2052
      %2056 = vmatprep.subr.bf16.mxu0 %v1995
      %2057 = vmatpush1.bf16.msra.mxu0 %v1994
      %2058 = vmatprep.subr.bf16.mxu0 %v1997
      %2059 = vmatpush1.bf16.msra.mxu0 %v1996
      %2060 = vmatprep.subr.bf16.mxu0 %v1999
      %2061 = vmatpush1.bf16.msra.mxu0 %v1998
      %2062 = vmatprep.subr.bf16.mxu0 %v2001
      %2063 = vmatpush1.bf16.msra.mxu0 %v2000
      %2064 = vmatprep.subr.bf16.mxu0 %v2003
      %2065 = vmatpush1.bf16.msra.mxu0 %v2002
      %2066 = vmatprep.subr.bf16.mxu0 %v2005
      %2067 = vmatpush1.bf16.msra.mxu0 %v2004
      %2068 = vmatprep.subr.bf16.mxu0 %v2007
      %2069 = vmatpush1.bf16.msra.mxu0 %v2006
      %2070 = vmatprep.subr.bf16.mxu0 %v2009
      %2071 = vmatpush1.bf16.msra.mxu0 %v2008
      %2072 = vmatprep.subr.bf16.mxu0 %v2011
      %2073 = vmatpush1.bf16.msra.mxu0 %v2010
      %2074 = vmatprep.subr.bf16.mxu0 %v2013
      %2075 = vmatpush1.bf16.msra.mxu0 %v2012
      %2076 = vmatprep.subr.bf16.mxu0 %v2015
      %2077 = vmatpush1.bf16.msra.mxu0 %v2014
      %2078 = vmatprep.subr.bf16.mxu0 %v2017
      %2079 = vmatpush1.bf16.msra.mxu0 %v2016
      %2080 = vmatprep.subr.bf16.mxu0 %v2019
      %2081 = vmatpush1.bf16.msra.mxu0 %v2018
      %2082 = vmatprep.subr.bf16.mxu0 %v2021
      %2083 = vmatpush1.bf16.msra.mxu0 %v2020
      %2084 = vmatprep.subr.bf16.mxu0 %v2023
      %2085 = vmatpush1.bf16.msra.mxu0 %v2022
      %2086 = vmatprep.subr.bf16.mxu0 %v2025
      %2087 = vmatpush1.bf16.msra.mxu0 %v2024
      %2088 = vmatprep.mubr.bf16.mxu0 %v2053
      %2089 = vmatmul.mubr.bf16.gmra.mrb[0].mxu0 %v2046
      %v2090 = vpop.f32.mrb[0].mxu0
      %v2091 = vadd.f32 %v2029, %v2090
      %v2092 = vpop.f32.mrb[0].mxu0
      %v2093 = vadd.f32 %v2029, %v2092
      %v2094 = vpop.f32.mrb[0].mxu0
      %v2095 = vpop.f32.mrb[0].mxu0
      %2096 = vdwg.mxu0
      %v2097 = vxor.u32 %v2091, 2147483648
      %v2098 = vxor.u32 %v2093, 2147483648
      %v2099 = vmul.f32 %v2097, 1.442695
      %v2100 = vpow.pop %v2099
      %v2101 = vmul.f32 %v2098, 1.442695
      %v2102 = vpow.pop %v2101
      %v2103 = vadd.f32 %v2100, 1.0
      %v2104 = vadd.f32 %v2102, 1.0
      %v2105 = vrcp.pop %v2103
      %v2106 = vmul.f32 1.0, %v2105
      %v2107 = vrcp.pop %v2104
      %v2108 = vmul.f32 1.0, %v2107
      %v2109 = vmul.f32 %v2091, %v2106
      %v2110 = vmul.f32 %v2093, %v2108
      %v2111 = vld [vmem:[%s7] sm:$0xf]
      %v2112 = vld [vmem:[%s7 + $0x4] sm:$0xf]
      %v2113 = vld [vmem:[%s7 + $0x8] sm:$0xf]
      %v2114 = vld [vmem:[%s7 + $0xc] sm:$0xf]
      %v2115 = vld [vmem:[%s7 + $0x10] sm:$0xf]
      %v2116 = vld [vmem:[%s7 + $0x14] sm:$0xf]
      %v2117 = vld [vmem:[%s7 + $0x18] sm:$0xf]
      %v2118 = vld [vmem:[%s7 + $0x1c] sm:$0xf]
      %v2119 = vld [vmem:[%s7 + $0x20] sm:$0xf]
      %v2120 = vld [vmem:[%s7 + $0x24] sm:$0xf]
      %v2121 = vld [vmem:[%s7 + $0x28] sm:$0xf]
      %v2122 = vld [vmem:[%s7 + $0x2c] sm:$0xf]
      %v2123 = vld [vmem:[%s7 + $0x30] sm:$0xf]
      %v2124 = vld [vmem:[%s7 + $0x34] sm:$0xf]
      %v2125 = vld [vmem:[%s7 + $0x38] sm:$0xf]
      %v2126 = vld [vmem:[%s7 + $0x3c] sm:$0xf]
      %v2127 = vld [vmem:[%s7 + $0x40] sm:$0xf]
      %v2128 = vld [vmem:[%s7 + $0x44] sm:$0xf]
      %v2129 = vld [vmem:[%s7 + $0x48] sm:$0xf]
      %v2130 = vld [vmem:[%s7 + $0x4c] sm:$0xf]
      %v2131 = vld [vmem:[%s7 + $0x50] sm:$0xf]
      %v2132 = vld [vmem:[%s7 + $0x54] sm:$0xf]
      %v2133 = vld [vmem:[%s7 + $0x58] sm:$0xf]
      %v2134 = vld [vmem:[%s7 + $0x5c] sm:$0xf]
      %v2135 = vld [vmem:[%s7 + $0x60] sm:$0xf]
      %v2136 = vld [vmem:[%s7 + $0x64] sm:$0xf]
      %v2137 = vld [vmem:[%s7 + $0x68] sm:$0xf]
      %v2138 = vld [vmem:[%s7 + $0x6c] sm:$0xf]
      %v2139 = vld [vmem:[%s7 + $0x70] sm:$0xf]
      %v2140 = vld [vmem:[%s7 + $0x74] sm:$0xf]
      %v2141 = vld [vmem:[%s7 + $0x78] sm:$0xf]
      %v2142 = vld [vmem:[%s7 + $0x7c] sm:$0xf]
      %v2143 = vld [vmem:[%s8] sm:$0xff]
      %v2144 = vld [vmem:[%s8 + $0x8] sm:$0xff]
      %v2145 = vld [vmem:[%s8 + $0x10] sm:$0xff]
      %v2146 = vld [vmem:[%s8 + $0x18] sm:$0xff]
      %v2147 = vld [vmem:[%s8 + $0x20] sm:$0xff]
      %v2148 = vld [vmem:[%s8 + $0x28] sm:$0xff]
      %v2149 = vld [vmem:[%s8 + $0x30] sm:$0xff]
      %v2150 = vld [vmem:[%s8 + $0x38] sm:$0xff]
      %v2151 = vld [vmem:[%s8 + $0x40] sm:$0xff]
      %v2152 = vld [vmem:[%s8 + $0x48] sm:$0xff]
      %v2153 = vld [vmem:[%s8 + $0x50] sm:$0xff]
      %v2154 = vld [vmem:[%s8 + $0x58] sm:$0xff]
      %v2155 = vld [vmem:[%s8 + $0x60] sm:$0xff]
      %v2156 = vld [vmem:[%s8 + $0x68] sm:$0xff]
      %v2157 = vld [vmem:[%s8 + $0x70] sm:$0xff]
      %v2158 = vld [vmem:[%s8 + $0x78] sm:$0xff]
      %v2159 = vld [vmem:[%s8 + $0x80] sm:$0xff]
      %v2160 = vld [vmem:[%s8 + $0x88] sm:$0xff]
      %v2161 = vld [vmem:[%s8 + $0x90] sm:$0xff]
      %v2162 = vld [vmem:[%s8 + $0x98] sm:$0xff]
      %v2163 = vld [vmem:[%s8 + $0xa0] sm:$0xff]
      %v2164 = vld [vmem:[%s8 + $0xa8] sm:$0xff]
      %v2165 = vld [vmem:[%s8 + $0xb0] sm:$0xff]
      %v2166 = vld [vmem:[%s8 + $0xb8] sm:$0xff]
      %v2167 = vld [vmem:[%s8 + $0xc0] sm:$0xff]
      %v2168 = vld [vmem:[%s8 + $0xc8] sm:$0xff]
      %v2169 = vld [vmem:[%s8 + $0xd0] sm:$0xff]
      %v2170 = vld [vmem:[%s8 + $0xd8] sm:$0xff]
      %v2171 = vld [vmem:[%s8 + $0xe0] sm:$0xff]
      %v2172 = vld [vmem:[%s8 + $0xe8] sm:$0xff]
      %v2173 = vld [vmem:[%s8 + $0xf0] sm:$0xff]
      %v2174 = vld [vmem:[%s8 + $0xf8] sm:$0xff]
      %v2175 = vpack.c.bf16 %v2109, %v2109
      %v2176 = vpack.c.bf16 %v2110, %v2110
      %2178 = vset.pattern.permute.xlu0 0
      %2179 = vperm.xlu0 %2178, %v2143
      %v2180 = vpop.permute.xlu0 %2179
      %2183 = vset.pattern.permute.xlu0 0
      %2184 = vperm.xlu0 %2183, %v2144
      %v2185 = vpop.permute.xlu0 %2184
      %2188 = vset.pattern.permute.xlu0 0
      %2189 = vperm.xlu0 %2188, %v2145
      %v2190 = vpop.permute.xlu0 %2189
      %2193 = vset.pattern.permute.xlu0 0
      %2194 = vperm.xlu0 %2193, %v2146
      %v2195 = vpop.permute.xlu0 %2194
      %2198 = vset.pattern.permute.xlu0 0
      %2199 = vperm.xlu0 %2198, %v2147
      %v2200 = vpop.permute.xlu0 %2199
      %2203 = vset.pattern.permute.xlu0 0
      %2204 = vperm.xlu0 %2203, %v2148
      %v2205 = vpop.permute.xlu0 %2204
      %2208 = vset.pattern.permute.xlu0 0
      %2209 = vperm.xlu0 %2208, %v2149
      %v2210 = vpop.permute.xlu0 %2209
      %2213 = vset.pattern.permute.xlu0 0
      %2214 = vperm.xlu0 %2213, %v2150
      %v2215 = vpop.permute.xlu0 %2214
      %2218 = vset.pattern.permute.xlu0 0
      %2219 = vperm.xlu0 %2218, %v2151
      %v2220 = vpop.permute.xlu0 %2219
      %2223 = vset.pattern.permute.xlu0 0
      %2224 = vperm.xlu0 %2223, %v2152
      %v2225 = vpop.permute.xlu0 %2224
      %2228 = vset.pattern.permute.xlu0 0
      %2229 = vperm.xlu0 %2228, %v2153
      %v2230 = vpop.permute.xlu0 %2229
      %2233 = vset.pattern.permute.xlu0 0
      %2234 = vperm.xlu0 %2233, %v2154
      %v2235 = vpop.permute.xlu0 %2234
      %2238 = vset.pattern.permute.xlu0 0
      %2239 = vperm.xlu0 %2238, %v2155
      %v2240 = vpop.permute.xlu0 %2239
      %2243 = vset.pattern.permute.xlu0 0
      %2244 = vperm.xlu0 %2243, %v2156
      %v2245 = vpop.permute.xlu0 %2244
      %2248 = vset.pattern.permute.xlu0 0
      %2249 = vperm.xlu0 %2248, %v2157
      %v2250 = vpop.permute.xlu0 %2249
      %2253 = vset.pattern.permute.xlu0 0
      %2254 = vperm.xlu0 %2253, %v2158
      %v2255 = vpop.permute.xlu0 %2254
      %2258 = vset.pattern.permute.xlu0 0
      %2259 = vperm.xlu0 %2258, %v2159
      %v2260 = vpop.permute.xlu0 %2259
      %2263 = vset.pattern.permute.xlu0 0
      %2264 = vperm.xlu0 %2263, %v2160
      %v2265 = vpop.permute.xlu0 %2264
      %2268 = vset.pattern.permute.xlu0 0
      %2269 = vperm.xlu0 %2268, %v2161
      %v2270 = vpop.permute.xlu0 %2269
      %2273 = vset.pattern.permute.xlu0 0
      %2274 = vperm.xlu0 %2273, %v2162
      %v2275 = vpop.permute.xlu0 %2274
      %2278 = vset.pattern.permute.xlu0 0
      %2279 = vperm.xlu0 %2278, %v2163
      %v2280 = vpop.permute.xlu0 %2279
      %2283 = vset.pattern.permute.xlu0 0
      %2284 = vperm.xlu0 %2283, %v2164
      %v2285 = vpop.permute.xlu0 %2284
      %2288 = vset.pattern.permute.xlu0 0
      %2289 = vperm.xlu0 %2288, %v2165
      %v2290 = vpop.permute.xlu0 %2289
      %2293 = vset.pattern.permute.xlu0 0
      %2294 = vperm.xlu0 %2293, %v2166
      %v2295 = vpop.permute.xlu0 %2294
      %2298 = vset.pattern.permute.xlu0 0
      %2299 = vperm.xlu0 %2298, %v2167
      %v2300 = vpop.permute.xlu0 %2299
      %2303 = vset.pattern.permute.xlu0 0
      %2304 = vperm.xlu0 %2303, %v2168
      %v2305 = vpop.permute.xlu0 %2304
      %2308 = vset.pattern.permute.xlu0 0
      %2309 = vperm.xlu0 %2308, %v2169
      %v2310 = vpop.permute.xlu0 %2309
      %2313 = vset.pattern.permute.xlu0 0
      %2314 = vperm.xlu0 %2313, %v2170
      %v2315 = vpop.permute.xlu0 %2314
      %2318 = vset.pattern.permute.xlu0 0
      %2319 = vperm.xlu0 %2318, %v2171
      %v2320 = vpop.permute.xlu0 %2319
      %2323 = vset.pattern.permute.xlu0 0
      %2324 = vperm.xlu0 %2323, %v2172
      %v2325 = vpop.permute.xlu0 %2324
      %2328 = vset.pattern.permute.xlu0 0
      %2329 = vperm.xlu0 %2328, %v2173
      %v2330 = vpop.permute.xlu0 %2329
      %2333 = vset.pattern.permute.xlu0 0
      %2334 = vperm.xlu0 %2333, %v2174
      %v2335 = vpop.permute.xlu0 %2334
      %v2369 = vunpack.c.l.b16 %v2111
      %v2370 = vunpack.c.l.b16 %v2112
      %v2371 = vunpack.c.l.b16 %v2113
      %v2372 = vunpack.c.l.b16 %v2114
      %v2373 = vunpack.c.l.b16 %v2115
      %v2374 = vunpack.c.l.b16 %v2116
      %v2375 = vunpack.c.l.b16 %v2117
      %v2376 = vunpack.c.l.b16 %v2118
      %v2377 = vunpack.c.l.b16 %v2119
      %v2378 = vunpack.c.l.b16 %v2120
      %v2379 = vunpack.c.l.b16 %v2121
      %v2380 = vunpack.c.l.b16 %v2122
      %v2381 = vunpack.c.l.b16 %v2123
      %v2382 = vunpack.c.l.b16 %v2124
      %v2383 = vunpack.c.l.b16 %v2125
      %v2384 = vunpack.c.l.b16 %v2126
      %v2385 = vunpack.c.l.b16 %v2127
      %v2386 = vunpack.c.l.b16 %v2128
      %v2387 = vunpack.c.l.b16 %v2129
      %v2388 = vunpack.c.l.b16 %v2130
      %v2389 = vunpack.c.l.b16 %v2131
      %v2390 = vunpack.c.l.b16 %v2132
      %v2391 = vunpack.c.l.b16 %v2133
      %v2392 = vunpack.c.l.b16 %v2134
      %v2393 = vunpack.c.l.b16 %v2135
      %v2394 = vunpack.c.l.b16 %v2136
      %v2395 = vunpack.c.l.b16 %v2137
      %v2396 = vunpack.c.l.b16 %v2138
      %v2397 = vunpack.c.l.b16 %v2139
      %v2398 = vunpack.c.l.b16 %v2140
      %v2399 = vunpack.c.l.b16 %v2141
      %v2400 = vunpack.c.l.b16 %v2142
      %v2401 = vpack.c.b16 %v2370, %v2369
      %v2402 = vpack.c.b16 %v2372, %v2371
      %v2403 = vpack.c.b16 %v2374, %v2373
      %v2404 = vpack.c.b16 %v2376, %v2375
      %v2405 = vpack.c.b16 %v2378, %v2377
      %v2406 = vpack.c.b16 %v2380, %v2379
      %v2407 = vpack.c.b16 %v2382, %v2381
      %v2408 = vpack.c.b16 %v2384, %v2383
      %v2409 = vpack.c.b16 %v2386, %v2385
      %v2410 = vpack.c.b16 %v2388, %v2387
      %v2411 = vpack.c.b16 %v2390, %v2389
      %v2412 = vpack.c.b16 %v2392, %v2391
      %v2413 = vpack.c.b16 %v2394, %v2393
      %v2414 = vpack.c.b16 %v2396, %v2395
      %v2415 = vpack.c.b16 %v2398, %v2397
      %v2416 = vpack.c.b16 %v2400, %v2399
      %vm2417 = vcmask 15360
      %v2419 = vsel %vm2417, %v2401, 0
      %v2422 = vsel %vm2417, %v2402, 0
      %v2425 = vsel %vm2417, %v2403, 0
      %v2428 = vsel %vm2417, %v2404, 0
      %v2431 = vsel %vm2417, %v2405, 0
      %v2434 = vsel %vm2417, %v2406, 0
      %v2437 = vsel %vm2417, %v2407, 0
      %v2440 = vsel %vm2417, %v2408, 0
      %v2443 = vsel %vm2417, %v2409, 0
      %v2446 = vsel %vm2417, %v2410, 0
      %v2449 = vsel %vm2417, %v2411, 0
      %v2452 = vsel %vm2417, %v2412, 0
      %v2455 = vsel %vm2417, %v2413, 0
      %v2458 = vsel %vm2417, %v2414, 0
      %v2461 = vsel %vm2417, %v2415, 0
      %v2464 = vsel %vm2417, %v2416, 0
      %v2467 = vsel %vm668, %v2175, 0
      %v2470 = vsel %vm668, %v2176, 0
      %2472 = vmatprep.subr.bf16.mxu0 %v2470
      %2473 = vmatpush1.bf16.msra.mxu0 %v2467
      %2474 = vmatprep.subr.bf16.mxu0 0
      %2475 = vmatpush1.bf16.msra.mxu0 0
      %2476 = vmatprep.subr.bf16.mxu0 0
      %2477 = vmatpush1.bf16.msra.mxu0 0
      %2478 = vmatprep.subr.bf16.mxu0 0
      %2479 = vmatpush1.bf16.msra.mxu0 0
      %2480 = vmatprep.subr.bf16.mxu0 0
      %2481 = vmatpush1.bf16.msra.mxu0 0
      %2482 = vmatprep.subr.bf16.mxu0 0
      %2483 = vmatpush1.bf16.msra.mxu0 0
      %2484 = vmatprep.subr.bf16.mxu0 0
      %2485 = vmatpush1.bf16.msra.mxu0 0
      %2486 = vmatprep.subr.bf16.mxu0 0
      %2487 = vmatpush1.bf16.msra.mxu0 0
      %2488 = vmatprep.subr.bf16.mxu0 0
      %2489 = vmatpush1.bf16.msra.mxu0 0
      %2490 = vmatprep.subr.bf16.mxu0 0
      %2491 = vmatpush1.bf16.msra.mxu0 0
      %2492 = vmatprep.subr.bf16.mxu0 0
      %2493 = vmatpush1.bf16.msra.mxu0 0
      %2494 = vmatprep.subr.bf16.mxu0 0
      %2495 = vmatpush1.bf16.msra.mxu0 0
      %2496 = vmatprep.subr.bf16.mxu0 0
      %2497 = vmatpush1.bf16.msra.mxu0 0
      %2498 = vmatprep.subr.bf16.mxu0 0
      %2499 = vmatpush1.bf16.msra.mxu0 0
      %2500 = vmatprep.subr.bf16.mxu0 0
      %2501 = vmatpush1.bf16.msra.mxu0 0
      %2502 = vmatprep.subr.bf16.mxu0 0
      %2503 = vmatpush1.bf16.msra.mxu0 0
      %2504 = vmatprep.mubr.bf16.mxu0 0
      %2505 = vmatmul.mubr.bf16.gmra.mrb[0].mxu0 %v2419
      %v2506 = vpop.f32.mrb[0].mxu0
      %v2507 = vadd.f32 %v2180, %v2506
      %v2508 = vpop.f32.mrb[0].mxu0
      %v2509 = vadd.f32 %v2180, %v2508
      %v2510 = vpop.f32.mrb[0].mxu0
      %v2511 = vadd.f32 %v2185, %v2510
      %v2512 = vpop.f32.mrb[0].mxu0
      %v2513 = vadd.f32 %v2185, %v2512
      %2514 = vmatprep.mubr.bf16.mxu0 0
      %2515 = vmatmul.mubr.bf16.gmra.mrb[0].mxu0 %v2422
      %v2516 = vpop.f32.mrb[0].mxu0
      %v2517 = vadd.f32 %v2190, %v2516
      %v2518 = vpop.f32.mrb[0].mxu0
      %v2519 = vadd.f32 %v2190, %v2518
      %v2520 = vpop.f32.mrb[0].mxu0
      %v2521 = vadd.f32 %v2195, %v2520
      %v2522 = vpop.f32.mrb[0].mxu0
      %v2523 = vadd.f32 %v2195, %v2522
      %2524 = vmatprep.mubr.bf16.mxu0 0
      %2525 = vmatmul.mubr.bf16.gmra.mrb[0].mxu0 %v2425
      %v2526 = vpop.f32.mrb[0].mxu0
      %v2527 = vadd.f32 %v2200, %v2526
      %v2528 = vpop.f32.mrb[0].mxu0
      %v2529 = vadd.f32 %v2200, %v2528
      %v2530 = vpop.f32.mrb[0].mxu0
      %v2531 = vadd.f32 %v2205, %v2530
      %v2532 = vpop.f32.mrb[0].mxu0
      %v2533 = vadd.f32 %v2205, %v2532
      %2534 = vmatprep.mubr.bf16.mxu0 0
      %2535 = vmatmul.mubr.bf16.gmra.mrb[0].mxu0 %v2428
      %v2536 = vpop.f32.mrb[0].mxu0
      %v2537 = vadd.f32 %v2210, %v2536
      %v2538 = vpop.f32.mrb[0].mxu0
      %v2539 = vadd.f32 %v2210, %v2538
      %v2540 = vpop.f32.mrb[0].mxu0
      %v2541 = vadd.f32 %v2215, %v2540
      %v2542 = vpop.f32.mrb[0].mxu0
      %v2543 = vadd.f32 %v2215, %v2542
      %2544 = vmatprep.mubr.bf16.mxu0 0
      %2545 = vmatmul.mubr.bf16.gmra.mrb[0].mxu0 %v2431
      %v2546 = vpop.f32.mrb[0].mxu0
      %v2547 = vadd.f32 %v2220, %v2546
      %v2548 = vpop.f32.mrb[0].mxu0
      %v2549 = vadd.f32 %v2220, %v2548
      %v2550 = vpop.f32.mrb[0].mxu0
      %v2551 = vadd.f32 %v2225, %v2550
      %v2552 = vpop.f32.mrb[0].mxu0
      %v2553 = vadd.f32 %v2225, %v2552
      %2554 = vmatprep.mubr.bf16.mxu0 0
      %2555 = vmatmul.mubr.bf16.gmra.mrb[0].mxu0 %v2434
      %v2556 = vpop.f32.mrb[0].mxu0
      %v2557 = vadd.f32 %v2230, %v2556
      %v2558 = vpop.f32.mrb[0].mxu0
      %v2559 = vadd.f32 %v2230, %v2558
      %v2560 = vpop.f32.mrb[0].mxu0
      %v2561 = vadd.f32 %v2235, %v2560
      %v2562 = vpop.f32.mrb[0].mxu0
      %v2563 = vadd.f32 %v2235, %v2562
      %2564 = vmatprep.mubr.bf16.mxu0 0
      %2565 = vmatmul.mubr.bf16.gmra.mrb[0].mxu0 %v2437
      %v2566 = vpop.f32.mrb[0].mxu0
      %v2567 = vadd.f32 %v2240, %v2566
      %v2568 = vpop.f32.mrb[0].mxu0
      %v2569 = vadd.f32 %v2240, %v2568
      %v2570 = vpop.f32.mrb[0].mxu0
      %v2571 = vadd.f32 %v2245, %v2570
      %v2572 = vpop.f32.mrb[0].mxu0
      %v2573 = vadd.f32 %v2245, %v2572
      %2574 = vmatprep.mubr.bf16.mxu0 0
      %2575 = vmatmul.mubr.bf16.gmra.mrb[0].mxu0 %v2440
      %v2576 = vpop.f32.mrb[0].mxu0
      %v2577 = vadd.f32 %v2250, %v2576
      %v2578 = vpop.f32.mrb[0].mxu0
      %v2579 = vadd.f32 %v2250, %v2578
      %v2580 = vpop.f32.mrb[0].mxu0
      %v2581 = vadd.f32 %v2255, %v2580
      %v2582 = vpop.f32.mrb[0].mxu0
      %v2583 = vadd.f32 %v2255, %v2582
      %2584 = vmatprep.mubr.bf16.mxu0 0
      %2585 = vmatmul.mubr.bf16.gmra.mrb[0].mxu0 %v2443
      %v2586 = vpop.f32.mrb[0].mxu0
      %v2587 = vadd.f32 %v2260, %v2586
      %v2588 = vpop.f32.mrb[0].mxu0
      %v2589 = vadd.f32 %v2260, %v2588
      %v2590 = vpop.f32.mrb[0].mxu0
      %v2591 = vadd.f32 %v2265, %v2590
      %v2592 = vpop.f32.mrb[0].mxu0
      %v2593 = vadd.f32 %v2265, %v2592
      %2594 = vmatprep.mubr.bf16.mxu0 0
      %2595 = vmatmul.mubr.bf16.gmra.mrb[0].mxu0 %v2446
      %v2596 = vpop.f32.mrb[0].mxu0
      %v2597 = vadd.f32 %v2270, %v2596
      %v2598 = vpop.f32.mrb[0].mxu0
      %v2599 = vadd.f32 %v2270, %v2598
      %v2600 = vpop.f32.mrb[0].mxu0
      %v2601 = vadd.f32 %v2275, %v2600
      %v2602 = vpop.f32.mrb[0].mxu0
      %v2603 = vadd.f32 %v2275, %v2602
      %2604 = vmatprep.mubr.bf16.mxu0 0
      %2605 = vmatmul.mubr.bf16.gmra.mrb[0].mxu0 %v2449
      %v2606 = vpop.f32.mrb[0].mxu0
      %v2607 = vadd.f32 %v2280, %v2606
      %v2608 = vpop.f32.mrb[0].mxu0
      %v2609 = vadd.f32 %v2280, %v2608
      %v2610 = vpop.f32.mrb[0].mxu0
      %v2611 = vadd.f32 %v2285, %v2610
      %v2612 = vpop.f32.mrb[0].mxu0
      %v2613 = vadd.f32 %v2285, %v2612
      %2614 = vmatprep.mubr.bf16.mxu0 0
      %2615 = vmatmul.mubr.bf16.gmra.mrb[0].mxu0 %v2452
      %v2616 = vpop.f32.mrb[0].mxu0
      %v2617 = vadd.f32 %v2290, %v2616
      %v2618 = vpop.f32.mrb[0].mxu0
      %v2619 = vadd.f32 %v2290, %v2618
      %v2620 = vpop.f32.mrb[0].mxu0
      %v2621 = vadd.f32 %v2295, %v2620
      %v2622 = vpop.f32.mrb[0].mxu0
      %v2623 = vadd.f32 %v2295, %v2622
      %2624 = vmatprep.mubr.bf16.mxu0 0
      %2625 = vmatmul.mubr.bf16.gmra.mrb[0].mxu0 %v2455
      %v2626 = vpop.f32.mrb[0].mxu0
      %v2627 = vadd.f32 %v2300, %v2626
      %v2628 = vpop.f32.mrb[0].mxu0
      %v2629 = vadd.f32 %v2300, %v2628
      %v2630 = vpop.f32.mrb[0].mxu0
      %v2631 = vadd.f32 %v2305, %v2630
      %v2632 = vpop.f32.mrb[0].mxu0
      %v2633 = vadd.f32 %v2305, %v2632
      %2634 = vmatprep.mubr.bf16.mxu0 0
      %2635 = vmatmul.mubr.bf16.gmra.mrb[0].mxu0 %v2458
      %v2636 = vpop.f32.mrb[0].mxu0
      %v2637 = vadd.f32 %v2310, %v2636
      %v2638 = vpop.f32.mrb[0].mxu0
      %v2639 = vadd.f32 %v2310, %v2638
      %v2640 = vpop.f32.mrb[0].mxu0
      %v2641 = vadd.f32 %v2315, %v2640
      %v2642 = vpop.f32.mrb[0].mxu0
      %v2643 = vadd.f32 %v2315, %v2642
      %2644 = vmatprep.mubr.bf16.mxu0 0
      %2645 = vmatmul.mubr.bf16.gmra.mrb[0].mxu0 %v2461
      %v2646 = vpop.f32.mrb[0].mxu0
      %v2647 = vadd.f32 %v2320, %v2646
      %v2648 = vpop.f32.mrb[0].mxu0
      %v2649 = vadd.f32 %v2320, %v2648
      %v2650 = vpop.f32.mrb[0].mxu0
      %v2651 = vadd.f32 %v2325, %v2650
      %v2652 = vpop.f32.mrb[0].mxu0
      %v2653 = vadd.f32 %v2325, %v2652
      %2654 = vmatprep.mubr.bf16.mxu0 0
      %2655 = vmatmul.mubr.bf16.gmra.mrb[0].mxu0 %v2464
      %v2656 = vpop.f32.mrb[0].mxu0
      %v2657 = vadd.f32 %v2330, %v2656
      %v2658 = vpop.f32.mrb[0].mxu0
      %v2659 = vadd.f32 %v2330, %v2658
      %v2660 = vpop.f32.mrb[0].mxu0
      %v2661 = vadd.f32 %v2335, %v2660
      %v2662 = vpop.f32.mrb[0].mxu0
      %v2663 = vadd.f32 %v2335, %v2662
      %2664 = vdwg.mxu0
      %v2665 = vxor.u32 %v2507, 2147483648
      %v2666 = vxor.u32 %v2509, 2147483648
      %v2667 = vxor.u32 %v2511, 2147483648
      %v2668 = vxor.u32 %v2513, 2147483648
      %v2669 = vxor.u32 %v2517, 2147483648
      %v2670 = vxor.u32 %v2519, 2147483648
      %v2671 = vxor.u32 %v2521, 2147483648
      %v2672 = vxor.u32 %v2523, 2147483648
      %v2673 = vxor.u32 %v2527, 2147483648
      %v2674 = vxor.u32 %v2529, 2147483648
      %v2675 = vxor.u32 %v2531, 2147483648
      %v2676 = vxor.u32 %v2533, 2147483648
      %v2677 = vxor.u32 %v2537, 2147483648
      %v2678 = vxor.u32 %v2539, 2147483648
      %v2679 = vxor.u32 %v2541, 2147483648
      %v2680 = vxor.u32 %v2543, 2147483648
      %v2681 = vxor.u32 %v2547, 2147483648
      %v2682 = vxor.u32 %v2549, 2147483648
      %v2683 = vxor.u32 %v2551, 2147483648
      %v2684 = vxor.u32 %v2553, 2147483648
      %v2685 = vxor.u32 %v2557, 2147483648
      %v2686 = vxor.u32 %v2559, 2147483648
      %v2687 = vxor.u32 %v2561, 2147483648
      %v2688 = vxor.u32 %v2563, 2147483648
      %v2689 = vxor.u32 %v2567, 2147483648
      %v2690 = vxor.u32 %v2569, 2147483648
      %v2691 = vxor.u32 %v2571, 2147483648
      %v2692 = vxor.u32 %v2573, 2147483648
      %v2693 = vxor.u32 %v2577, 2147483648
      %v2694 = vxor.u32 %v2579, 2147483648
      %v2695 = vxor.u32 %v2581, 2147483648
      %v2696 = vxor.u32 %v2583, 2147483648
      %v2697 = vxor.u32 %v2587, 2147483648
      %v2698 = vxor.u32 %v2589, 2147483648
      %v2699 = vxor.u32 %v2591, 2147483648
      %v2700 = vxor.u32 %v2593, 2147483648
      %v2701 = vxor.u32 %v2597, 2147483648
      %v2702 = vxor.u32 %v2599, 2147483648
      %v2703 = vxor.u32 %v2601, 2147483648
      %v2704 = vxor.u32 %v2603, 2147483648
      %v2705 = vxor.u32 %v2607, 2147483648
      %v2706 = vxor.u32 %v2609, 2147483648
      %v2707 = vxor.u32 %v2611, 2147483648
      %v2708 = vxor.u32 %v2613, 2147483648
      %v2709 = vxor.u32 %v2617, 2147483648
      %v2710 = vxor.u32 %v2619, 2147483648
      %v2711 = vxor.u32 %v2621, 2147483648
      %v2712 = vxor.u32 %v2623, 2147483648
      %v2713 = vxor.u32 %v2627, 2147483648
      %v2714 = vxor.u32 %v2629, 2147483648
      %v2715 = vxor.u32 %v2631, 2147483648
      %v2716 = vxor.u32 %v2633, 2147483648
      %v2717 = vxor.u32 %v2637, 2147483648
      %v2718 = vxor.u32 %v2639, 2147483648
      %v2719 = vxor.u32 %v2641, 2147483648
      %v2720 = vxor.u32 %v2643, 2147483648
      %v2721 = vxor.u32 %v2647, 2147483648
      %v2722 = vxor.u32 %v2649, 2147483648
      %v2723 = vxor.u32 %v2651, 2147483648
      %v2724 = vxor.u32 %v2653, 2147483648
      %v2725 = vxor.u32 %v2657, 2147483648
      %v2726 = vxor.u32 %v2659, 2147483648
      %v2727 = vxor.u32 %v2661, 2147483648
      %v2728 = vxor.u32 %v2663, 2147483648
      %v2729 = vmul.f32 %v2665, 1.442695
      %v2730 = vpow.pop %v2729
      %v2731 = vmul.f32 %v2666, 1.442695
      %v2732 = vpow.pop %v2731
      %v2733 = vmul.f32 %v2667, 1.442695
      %v2734 = vpow.pop %v2733
      %v2735 = vmul.f32 %v2668, 1.442695
      %v2736 = vpow.pop %v2735
      %v2737 = vmul.f32 %v2669, 1.442695
      %v2738 = vpow.pop %v2737
      %v2739 = vmul.f32 %v2670, 1.442695
      %v2740 = vpow.pop %v2739
      %v2741 = vmul.f32 %v2671, 1.442695
      %v2742 = vpow.pop %v2741
      %v2743 = vmul.f32 %v2672, 1.442695
      %v2744 = vpow.pop %v2743
      %v2745 = vmul.f32 %v2673, 1.442695
      %v2746 = vpow.pop %v2745
      %v2747 = vmul.f32 %v2674, 1.442695
      %v2748 = vpow.pop %v2747
      %v2749 = vmul.f32 %v2675, 1.442695
      %v2750 = vpow.pop %v2749
      %v2751 = vmul.f32 %v2676, 1.442695
      %v2752 = vpow.pop %v2751
      %v2753 = vmul.f32 %v2677, 1.442695
      %v2754 = vpow.pop %v2753
      %v2755 = vmul.f32 %v2678, 1.442695
      %v2756 = vpow.pop %v2755
      %v2757 = vmul.f32 %v2679, 1.442695
      %v2758 = vpow.pop %v2757
      %v2759 = vmul.f32 %v2680, 1.442695
      %v2760 = vpow.pop %v2759
      %v2761 = vmul.f32 %v2681, 1.442695
      %v2762 = vpow.pop %v2761
      %v2763 = vmul.f32 %v2682, 1.442695
      %v2764 = vpow.pop %v2763
      %v2765 = vmul.f32 %v2683, 1.442695
      %v2766 = vpow.pop %v2765
      %v2767 = vmul.f32 %v2684, 1.442695
      %v2768 = vpow.pop %v2767
      %v2769 = vmul.f32 %v2685, 1.442695
      %v2770 = vpow.pop %v2769
      %v2771 = vmul.f32 %v2686, 1.442695
      %v2772 = vpow.pop %v2771
      %v2773 = vmul.f32 %v2687, 1.442695
      %v2774 = vpow.pop %v2773
      %v2775 = vmul.f32 %v2688, 1.442695
      %v2776 = vpow.pop %v2775
      %v2777 = vmul.f32 %v2689, 1.442695
      %v2778 = vpow.pop %v2777
      %v2779 = vmul.f32 %v2690, 1.442695
      %v2780 = vpow.pop %v2779
      %v2781 = vmul.f32 %v2691, 1.442695
      %v2782 = vpow.pop %v2781
      %v2783 = vmul.f32 %v2692, 1.442695
      %v2784 = vpow.pop %v2783
      %v2785 = vmul.f32 %v2693, 1.442695
      %v2786 = vpow.pop %v2785
      %v2787 = vmul.f32 %v2694, 1.442695
      %v2788 = vpow.pop %v2787
      %v2789 = vmul.f32 %v2695, 1.442695
      %v2790 = vpow.pop %v2789
      %v2791 = vmul.f32 %v2696, 1.442695
      %v2792 = vpow.pop %v2791
      %v2793 = vmul.f32 %v2697, 1.442695
      %v2794 = vpow.pop %v2793
      %v2795 = vmul.f32 %v2698, 1.442695
      %v2796 = vpow.pop %v2795
      %v2797 = vmul.f32 %v2699, 1.442695
      %v2798 = vpow.pop %v2797
      %v2799 = vmul.f32 %v2700, 1.442695
      %v2800 = vpow.pop %v2799
      %v2801 = vmul.f32 %v2701, 1.442695
      %v2802 = vpow.pop %v2801
      %v2803 = vmul.f32 %v2702, 1.442695
      %v2804 = vpow.pop %v2803
      %v2805 = vmul.f32 %v2703, 1.442695
      %v2806 = vpow.pop %v2805
      %v2807 = vmul.f32 %v2704, 1.442695
      %v2808 = vpow.pop %v2807
      %v2809 = vmul.f32 %v2705, 1.442695
      %v2810 = vpow.pop %v2809
      %v2811 = vmul.f32 %v2706, 1.442695
      %v2812 = vpow.pop %v2811
      %v2813 = vmul.f32 %v2707, 1.442695
      %v2814 = vpow.pop %v2813
      %v2815 = vmul.f32 %v2708, 1.442695
      %v2816 = vpow.pop %v2815
      %v2817 = vmul.f32 %v2709, 1.442695
      %v2818 = vpow.pop %v2817
      %v2819 = vmul.f32 %v2710, 1.442695
      %v2820 = vpow.pop %v2819
      %v2821 = vmul.f32 %v2711, 1.442695
      %v2822 = vpow.pop %v2821
      %v2823 = vmul.f32 %v2712, 1.442695
      %v2824 = vpow.pop %v2823
      %v2825 = vmul.f32 %v2713, 1.442695
      %v2826 = vpow.pop %v2825
      %v2827 = vmul.f32 %v2714, 1.442695
      %v2828 = vpow.pop %v2827
      %v2829 = vmul.f32 %v2715, 1.442695
      %v2830 = vpow.pop %v2829
      %v2831 = vmul.f32 %v2716, 1.442695
      %v2832 = vpow.pop %v2831
      %v2833 = vmul.f32 %v2717, 1.442695
      %v2834 = vpow.pop %v2833
      %v2835 = vmul.f32 %v2718, 1.442695
      %v2836 = vpow.pop %v2835
      %v2837 = vmul.f32 %v2719, 1.442695
      %v2838 = vpow.pop %v2837
      %v2839 = vmul.f32 %v2720, 1.442695
      %v2840 = vpow.pop %v2839
      %v2841 = vmul.f32 %v2721, 1.442695
      %v2842 = vpow.pop %v2841
      %v2843 = vmul.f32 %v2722, 1.442695
      %v2844 = vpow.pop %v2843
      %v2845 = vmul.f32 %v2723, 1.442695
      %v2846 = vpow.pop %v2845
      %v2847 = vmul.f32 %v2724, 1.442695
      %v2848 = vpow.pop %v2847
      %v2849 = vmul.f32 %v2725, 1.442695
      %v2850 = vpow.pop %v2849
      %v2851 = vmul.f32 %v2726, 1.442695
      %v2852 = vpow.pop %v2851
      %v2853 = vmul.f32 %v2727, 1.442695
      %v2854 = vpow.pop %v2853
      %v2855 = vmul.f32 %v2728, 1.442695
      %v2856 = vpow.pop %v2855
      %v2857 = vadd.f32 %v2730, 1.0
      %v2858 = vadd.f32 %v2732, 1.0
      %v2859 = vadd.f32 %v2734, 1.0
      %v2860 = vadd.f32 %v2736, 1.0
      %v2861 = vadd.f32 %v2738, 1.0
      %v2862 = vadd.f32 %v2740, 1.0
      %v2863 = vadd.f32 %v2742, 1.0
      %v2864 = vadd.f32 %v2744, 1.0
      %v2865 = vadd.f32 %v2746, 1.0
      %v2866 = vadd.f32 %v2748, 1.0
      %v2867 = vadd.f32 %v2750, 1.0
      %v2868 = vadd.f32 %v2752, 1.0
      %v2869 = vadd.f32 %v2754, 1.0
      %v2870 = vadd.f32 %v2756, 1.0
      %v2871 = vadd.f32 %v2758, 1.0
      %v2872 = vadd.f32 %v2760, 1.0
      %v2873 = vadd.f32 %v2762, 1.0
      %v2874 = vadd.f32 %v2764, 1.0
      %v2875 = vadd.f32 %v2766, 1.0
      %v2876 = vadd.f32 %v2768, 1.0
      %v2877 = vadd.f32 %v2770, 1.0
      %v2878 = vadd.f32 %v2772, 1.0
      %v2879 = vadd.f32 %v2774, 1.0
      %v2880 = vadd.f32 %v2776, 1.0
      %v2881 = vadd.f32 %v2778, 1.0
      %v2882 = vadd.f32 %v2780, 1.0
      %v2883 = vadd.f32 %v2782, 1.0
      %v2884 = vadd.f32 %v2784, 1.0
      %v2885 = vadd.f32 %v2786, 1.0
      %v2886 = vadd.f32 %v2788, 1.0
      %v2887 = vadd.f32 %v2790, 1.0
      %v2888 = vadd.f32 %v2792, 1.0
      %v2889 = vadd.f32 %v2794, 1.0
      %v2890 = vadd.f32 %v2796, 1.0
      %v2891 = vadd.f32 %v2798, 1.0
      %v2892 = vadd.f32 %v2800, 1.0
      %v2893 = vadd.f32 %v2802, 1.0
      %v2894 = vadd.f32 %v2804, 1.0
      %v2895 = vadd.f32 %v2806, 1.0
      %v2896 = vadd.f32 %v2808, 1.0
      %v2897 = vadd.f32 %v2810, 1.0
      %v2898 = vadd.f32 %v2812, 1.0
      %v2899 = vadd.f32 %v2814, 1.0
      %v2900 = vadd.f32 %v2816, 1.0
      %v2901 = vadd.f32 %v2818, 1.0
      %v2902 = vadd.f32 %v2820, 1.0
      %v2903 = vadd.f32 %v2822, 1.0
      %v2904 = vadd.f32 %v2824, 1.0
      %v2905 = vadd.f32 %v2826, 1.0
      %v2906 = vadd.f32 %v2828, 1.0
      %v2907 = vadd.f32 %v2830, 1.0
      %v2908 = vadd.f32 %v2832, 1.0
      %v2909 = vadd.f32 %v2834, 1.0
      %v2910 = vadd.f32 %v2836, 1.0
      %v2911 = vadd.f32 %v2838, 1.0
      %v2912 = vadd.f32 %v2840, 1.0
      %v2913 = vadd.f32 %v2842, 1.0
      %v2914 = vadd.f32 %v2844, 1.0
      %v2915 = vadd.f32 %v2846, 1.0
      %v2916 = vadd.f32 %v2848, 1.0
      %v2917 = vadd.f32 %v2850, 1.0
      %v2918 = vadd.f32 %v2852, 1.0
      %v2919 = vadd.f32 %v2854, 1.0
      %v2920 = vadd.f32 %v2856, 1.0
      %v2921 = vrcp.pop %v2857
      %v2922 = vmul.f32 1.0, %v2921
      %v2923 = vrcp.pop %v2858
      %v2924 = vmul.f32 1.0, %v2923
      %v2925 = vrcp.pop %v2859
      %v2926 = vmul.f32 1.0, %v2925
      %v2927 = vrcp.pop %v2860
      %v2928 = vmul.f32 1.0, %v2927
      %v2929 = vrcp.pop %v2861
      %v2930 = vmul.f32 1.0, %v2929
      %v2931 = vrcp.pop %v2862
      %v2932 = vmul.f32 1.0, %v2931
      %v2933 = vrcp.pop %v2863
      %v2934 = vmul.f32 1.0, %v2933
      %v2935 = vrcp.pop %v2864
      %v2936 = vmul.f32 1.0, %v2935
      %v2937 = vrcp.pop %v2865
      %v2938 = vmul.f32 1.0, %v2937
      %v2939 = vrcp.pop %v2866
      %v2940 = vmul.f32 1.0, %v2939
      %v2941 = vrcp.pop %v2867
      %v2942 = vmul.f32 1.0, %v2941
      %v2943 = vrcp.pop %v2868
      %v2944 = vmul.f32 1.0, %v2943
      %v2945 = vrcp.pop %v2869
      %v2946 = vmul.f32 1.0, %v2945
      %v2947 = vrcp.pop %v2870
      %v2948 = vmul.f32 1.0, %v2947
      %v2949 = vrcp.pop %v2871
      %v2950 = vmul.f32 1.0, %v2949
      %v2951 = vrcp.pop %v2872
      %v2952 = vmul.f32 1.0, %v2951
      %v2953 = vrcp.pop %v2873
      %v2954 = vmul.f32 1.0, %v2953
      %v2955 = vrcp.pop %v2874
      %v2956 = vmul.f32 1.0, %v2955
      %v2957 = vrcp.pop %v2875
      %v2958 = vmul.f32 1.0, %v2957
      %v2959 = vrcp.pop %v2876
      %v2960 = vmul.f32 1.0, %v2959
      %v2961 = vrcp.pop %v2877
      %v2962 = vmul.f32 1.0, %v2961
      %v2963 = vrcp.pop %v2878
      %v2964 = vmul.f32 1.0, %v2963
      %v2965 = vrcp.pop %v2879
      %v2966 = vmul.f32 1.0, %v2965
      %v2967 = vrcp.pop %v2880
      %v2968 = vmul.f32 1.0, %v2967
      %v2969 = vrcp.pop %v2881
      %v2970 = vmul.f32 1.0, %v2969
      %v2971 = vrcp.pop %v2882
      %v2972 = vmul.f32 1.0, %v2971
      %v2973 = vrcp.pop %v2883
      %v2974 = vmul.f32 1.0, %v2973
      %v2975 = vrcp.pop %v2884
      %v2976 = vmul.f32 1.0, %v2975
      %v2977 = vrcp.pop %v2885
      %v2978 = vmul.f32 1.0, %v2977
      %v2979 = vrcp.pop %v2886
      %v2980 = vmul.f32 1.0, %v2979
      %v2981 = vrcp.pop %v2887
      %v2982 = vmul.f32 1.0, %v2981
      %v2983 = vrcp.pop %v2888
      %v2984 = vmul.f32 1.0, %v2983
      %v2985 = vrcp.pop %v2889
      %v2986 = vmul.f32 1.0, %v2985
      %v2987 = vrcp.pop %v2890
      %v2988 = vmul.f32 1.0, %v2987
      %v2989 = vrcp.pop %v2891
      %v2990 = vmul.f32 1.0, %v2989
      %v2991 = vrcp.pop %v2892
      %v2992 = vmul.f32 1.0, %v2991
      %v2993 = vrcp.pop %v2893
      %v2994 = vmul.f32 1.0, %v2993
      %v2995 = vrcp.pop %v2894
      %v2996 = vmul.f32 1.0, %v2995
      %v2997 = vrcp.pop %v2895
      %v2998 = vmul.f32 1.0, %v2997
      %v2999 = vrcp.pop %v2896
      %v3000 = vmul.f32 1.0, %v2999
      %v3001 = vrcp.pop %v2897
      %v3002 = vmul.f32 1.0, %v3001
      %v3003 = vrcp.pop %v2898
      %v3004 = vmul.f32 1.0, %v3003
      %v3005 = vrcp.pop %v2899
      %v3006 = vmul.f32 1.0, %v3005
      %v3007 = vrcp.pop %v2900
      %v3008 = vmul.f32 1.0, %v3007
      %v3009 = vrcp.pop %v2901
      %v3010 = vmul.f32 1.0, %v3009
      %v3011 = vrcp.pop %v2902
      %v3012 = vmul.f32 1.0, %v3011
      %v3013 = vrcp.pop %v2903
      %v3014 = vmul.f32 1.0, %v3013
      %v3015 = vrcp.pop %v2904
      %v3016 = vmul.f32 1.0, %v3015
      %v3017 = vrcp.pop %v2905
      %v3018 = vmul.f32 1.0, %v3017
      %v3019 = vrcp.pop %v2906
      %v3020 = vmul.f32 1.0, %v3019
      %v3021 = vrcp.pop %v2907
      %v3022 = vmul.f32 1.0, %v3021
      %v3023 = vrcp.pop %v2908
      %v3024 = vmul.f32 1.0, %v3023
      %v3025 = vrcp.pop %v2909
      %v3026 = vmul.f32 1.0, %v3025
      %v3027 = vrcp.pop %v2910
      %v3028 = vmul.f32 1.0, %v3027
      %v3029 = vrcp.pop %v2911
      %v3030 = vmul.f32 1.0, %v3029
      %v3031 = vrcp.pop %v2912
      %v3032 = vmul.f32 1.0, %v3031
      %v3033 = vrcp.pop %v2913
      %v3034 = vmul.f32 1.0, %v3033
      %v3035 = vrcp.pop %v2914
      %v3036 = vmul.f32 1.0, %v3035
      %v3037 = vrcp.pop %v2915
      %v3038 = vmul.f32 1.0, %v3037
      %v3039 = vrcp.pop %v2916
      %v3040 = vmul.f32 1.0, %v3039
      %v3041 = vrcp.pop %v2917
      %v3042 = vmul.f32 1.0, %v3041
      %v3043 = vrcp.pop %v2918
      %v3044 = vmul.f32 1.0, %v3043
      %v3045 = vrcp.pop %v2919
      %v3046 = vmul.f32 1.0, %v3045
      %v3047 = vrcp.pop %v2920
      %v3048 = vmul.f32 1.0, %v3047
      %v3049 = vmul.f32 %v2507, %v2922
      %v3050 = vmul.f32 %v2509, %v2924
      %v3051 = vmul.f32 %v2511, %v2926
      %v3052 = vmul.f32 %v2513, %v2928
      %v3053 = vmul.f32 %v2517, %v2930
      %v3054 = vmul.f32 %v2519, %v2932
      %v3055 = vmul.f32 %v2521, %v2934
      %v3056 = vmul.f32 %v2523, %v2936
      %v3057 = vmul.f32 %v2527, %v2938
      %v3058 = vmul.f32 %v2529, %v2940
      %v3059 = vmul.f32 %v2531, %v2942
      %v3060 = vmul.f32 %v2533, %v2944
      %v3061 = vmul.f32 %v2537, %v2946
      %v3062 = vmul.f32 %v2539, %v2948
      %v3063 = vmul.f32 %v2541, %v2950
      %v3064 = vmul.f32 %v2543, %v2952
      %v3065 = vmul.f32 %v2547, %v2954
      %v3066 = vmul.f32 %v2549, %v2956
      %v3067 = vmul.f32 %v2551, %v2958
      %v3068 = vmul.f32 %v2553, %v2960
      %v3069 = vmul.f32 %v2557, %v2962
      %v3070 = vmul.f32 %v2559, %v2964
      %v3071 = vmul.f32 %v2561, %v2966
      %v3072 = vmul.f32 %v2563, %v2968
      %v3073 = vmul.f32 %v2567, %v2970
      %v3074 = vmul.f32 %v2569, %v2972
      %v3075 = vmul.f32 %v2571, %v2974
      %v3076 = vmul.f32 %v2573, %v2976
      %v3077 = vmul.f32 %v2577, %v2978
      %v3078 = vmul.f32 %v2579, %v2980
      %v3079 = vmul.f32 %v2581, %v2982
      %v3080 = vmul.f32 %v2583, %v2984
      %v3081 = vmul.f32 %v2587, %v2986
      %v3082 = vmul.f32 %v2589, %v2988
      %v3083 = vmul.f32 %v2591, %v2990
      %v3084 = vmul.f32 %v2593, %v2992
      %v3085 = vmul.f32 %v2597, %v2994
      %v3086 = vmul.f32 %v2599, %v2996
      %v3087 = vmul.f32 %v2601, %v2998
      %v3088 = vmul.f32 %v2603, %v3000
      %v3089 = vmul.f32 %v2607, %v3002
      %v3090 = vmul.f32 %v2609, %v3004
      %v3091 = vmul.f32 %v2611, %v3006
      %v3092 = vmul.f32 %v2613, %v3008
      %v3093 = vmul.f32 %v2617, %v3010
      %v3094 = vmul.f32 %v2619, %v3012
      %v3095 = vmul.f32 %v2621, %v3014
      %v3096 = vmul.f32 %v2623, %v3016
      %v3097 = vmul.f32 %v2627, %v3018
      %v3098 = vmul.f32 %v2629, %v3020
      %v3099 = vmul.f32 %v2631, %v3022
      %v3100 = vmul.f32 %v2633, %v3024
      %v3101 = vmul.f32 %v2637, %v3026
      %v3102 = vmul.f32 %v2639, %v3028
      %v3103 = vmul.f32 %v2641, %v3030
      %v3104 = vmul.f32 %v2643, %v3032
      %v3105 = vmul.f32 %v2647, %v3034
      %v3106 = vmul.f32 %v2649, %v3036
      %v3107 = vmul.f32 %v2651, %v3038
      %v3108 = vmul.f32 %v2653, %v3040
      %v3109 = vmul.f32 %v2657, %v3042
      %v3110 = vmul.f32 %v2659, %v3044
      %v3111 = vmul.f32 %v2661, %v3046
      %v3112 = vmul.f32 %v2663, %v3048
      %v3113 = vld [vmem:[%s9] sm:$0xff]
      %v3114 = vld [vmem:[%s9 + $0x8] sm:$0xff]
      %v3115 = vld [vmem:[%s9 + $0x10] sm:$0xff]
      %v3116 = vld [vmem:[%s9 + $0x18] sm:$0xff]
      %v3117 = vld [vmem:[%s9 + $0x20] sm:$0xff]
      %v3118 = vld [vmem:[%s9 + $0x28] sm:$0xff]
      %v3119 = vld [vmem:[%s9 + $0x30] sm:$0xff]
      %v3120 = vld [vmem:[%s9 + $0x38] sm:$0xff]
      %v3121 = vld [vmem:[%s9 + $0x40] sm:$0xff]
      %v3122 = vld [vmem:[%s9 + $0x48] sm:$0xff]
      %v3123 = vld [vmem:[%s9 + $0x50] sm:$0xff]
      %v3124 = vld [vmem:[%s9 + $0x58] sm:$0xff]
      %v3125 = vld [vmem:[%s9 + $0x60] sm:$0xff]
      %v3126 = vld [vmem:[%s9 + $0x68] sm:$0xff]
      %v3127 = vld [vmem:[%s9 + $0x70] sm:$0xff]
      %v3128 = vld [vmem:[%s9 + $0x78] sm:$0xff]
      %v3129 = vld [vmem:[%s10] sm:$0xff]
      %v3130 = vld [vmem:[%s10 + $0x8] sm:$0xff]
      %v3131 = vld [vmem:[%s10 + $0x10] sm:$0xff]
      %v3132 = vld [vmem:[%s10 + $0x18] sm:$0xff]
      %v3133 = vld [vmem:[%s10 + $0x20] sm:$0xff]
      %v3134 = vld [vmem:[%s10 + $0x28] sm:$0xff]
      %v3135 = vld [vmem:[%s10 + $0x30] sm:$0xff]
      %v3136 = vld [vmem:[%s10 + $0x38] sm:$0xff]
      %v3137 = vld [vmem:[%s10 + $0x40] sm:$0xff]
      %v3138 = vld [vmem:[%s10 + $0x48] sm:$0xff]
      %v3139 = vld [vmem:[%s10 + $0x50] sm:$0xff]
      %v3140 = vld [vmem:[%s10 + $0x58] sm:$0xff]
      %v3141 = vld [vmem:[%s10 + $0x60] sm:$0xff]
      %v3142 = vld [vmem:[%s10 + $0x68] sm:$0xff]
      %v3143 = vld [vmem:[%s10 + $0x70] sm:$0xff]
      %v3144 = vld [vmem:[%s10 + $0x78] sm:$0xff]
      %v3145 = vpack.c.bf16 %v3051, %v3049
      %v3146 = vpack.c.bf16 %v3052, %v3050
      %v3147 = vpack.c.bf16 %v3055, %v3053
      %v3148 = vpack.c.bf16 %v3056, %v3054
      %v3149 = vpack.c.bf16 %v3059, %v3057
      %v3150 = vpack.c.bf16 %v3060, %v3058
      %v3151 = vpack.c.bf16 %v3063, %v3061
      %v3152 = vpack.c.bf16 %v3064, %v3062
      %v3153 = vpack.c.bf16 %v3067, %v3065
      %v3154 = vpack.c.bf16 %v3068, %v3066
      %v3155 = vpack.c.bf16 %v3071, %v3069
      %v3156 = vpack.c.bf16 %v3072, %v3070
      %v3157 = vpack.c.bf16 %v3075, %v3073
      %v3158 = vpack.c.bf16 %v3076, %v3074
      %v3159 = vpack.c.bf16 %v3079, %v3077
      %v3160 = vpack.c.bf16 %v3080, %v3078
      %v3161 = vpack.c.bf16 %v3083, %v3081
      %v3162 = vpack.c.bf16 %v3084, %v3082
      %v3163 = vpack.c.bf16 %v3087, %v3085
      %v3164 = vpack.c.bf16 %v3088, %v3086
      %v3165 = vpack.c.bf16 %v3091, %v3089
      %v3166 = vpack.c.bf16 %v3092, %v3090
      %v3167 = vpack.c.bf16 %v3095, %v3093
      %v3168 = vpack.c.bf16 %v3096, %v3094
      %v3169 = vpack.c.bf16 %v3099, %v3097
      %v3170 = vpack.c.bf16 %v3100, %v3098
      %v3171 = vpack.c.bf16 %v3103, %v3101
      %v3172 = vpack.c.bf16 %v3104, %v3102
      %v3173 = vpack.c.bf16 %v3107, %v3105
      %v3174 = vpack.c.bf16 %v3108, %v3106
      %v3175 = vpack.c.bf16 %v3111, %v3109
      %v3176 = vpack.c.bf16 %v3112, %v3110
      %3178 = vset.pattern.permute.xlu0 0
      %3179 = vperm.xlu0 %3178, %v3129
      %v3180 = vpop.permute.xlu0 %3179
      %3183 = vset.pattern.permute.xlu0 0
      %3184 = vperm.xlu0 %3183, %v3130
      %v3185 = vpop.permute.xlu0 %3184
      %3188 = vset.pattern.permute.xlu0 0
      %3189 = vperm.xlu0 %3188, %v3131
      %v3190 = vpop.permute.xlu0 %3189
      %3193 = vset.pattern.permute.xlu0 0
      %3194 = vperm.xlu0 %3193, %v3132
      %v3195 = vpop.permute.xlu0 %3194
      %3198 = vset.pattern.permute.xlu0 0
      %3199 = vperm.xlu0 %3198, %v3133
      %v3200 = vpop.permute.xlu0 %3199
      %3203 = vset.pattern.permute.xlu0 0
      %3204 = vperm.xlu0 %3203, %v3134
      %v3205 = vpop.permute.xlu0 %3204
      %3208 = vset.pattern.permute.xlu0 0
      %3209 = vperm.xlu0 %3208, %v3135
      %v3210 = vpop.permute.xlu0 %3209
      %3213 = vset.pattern.permute.xlu0 0
      %3214 = vperm.xlu0 %3213, %v3136
      %v3215 = vpop.permute.xlu0 %3214
      %3218 = vset.pattern.permute.xlu0 0
      %3219 = vperm.xlu0 %3218, %v3137
      %v3220 = vpop.permute.xlu0 %3219
      %3223 = vset.pattern.permute.xlu0 0
      %3224 = vperm.xlu0 %3223, %v3138
      %v3225 = vpop.permute.xlu0 %3224
      %3228 = vset.pattern.permute.xlu0 0
      %3229 = vperm.xlu0 %3228, %v3139
      %v3230 = vpop.permute.xlu0 %3229
      %3233 = vset.pattern.permute.xlu0 0
      %3234 = vperm.xlu0 %3233, %v3140
      %v3235 = vpop.permute.xlu0 %3234
      %3238 = vset.pattern.permute.xlu0 0
      %3239 = vperm.xlu0 %3238, %v3141
      %v3240 = vpop.permute.xlu0 %3239
      %3243 = vset.pattern.permute.xlu0 0
      %3244 = vperm.xlu0 %3243, %v3142
      %v3245 = vpop.permute.xlu0 %3244
      %3248 = vset.pattern.permute.xlu0 0
      %3249 = vperm.xlu0 %3248, %v3143
      %v3250 = vpop.permute.xlu0 %3249
      %3253 = vset.pattern.permute.xlu0 0
      %3254 = vperm.xlu0 %3253, %v3144
      %v3255 = vpop.permute.xlu0 %3254
      %v3273 = vunpack.c.l.b16 %v3113
      %v3274 = vunpack.c.h.b16 %v3113
      %v3275 = vunpack.c.l.b16 %v3114
      %v3276 = vunpack.c.h.b16 %v3114
      %v3277 = vunpack.c.l.b16 %v3115
      %v3278 = vunpack.c.h.b16 %v3115
      %v3279 = vunpack.c.l.b16 %v3116
      %v3280 = vunpack.c.h.b16 %v3116
      %v3281 = vunpack.c.l.b16 %v3117
      %v3282 = vunpack.c.h.b16 %v3117
      %v3283 = vunpack.c.l.b16 %v3118
      %v3284 = vunpack.c.h.b16 %v3118
      %v3285 = vunpack.c.l.b16 %v3119
      %v3286 = vunpack.c.h.b16 %v3119
      %v3287 = vunpack.c.l.b16 %v3120
      %v3288 = vunpack.c.h.b16 %v3120
      %v3289 = vunpack.c.l.b16 %v3121
      %v3290 = vunpack.c.h.b16 %v3121
      %v3291 = vunpack.c.l.b16 %v3122
      %v3292 = vunpack.c.h.b16 %v3122
      %v3293 = vunpack.c.l.b16 %v3123
      %v3294 = vunpack.c.h.b16 %v3123
      %v3295 = vunpack.c.l.b16 %v3124
      %v3296 = vunpack.c.h.b16 %v3124
      %v3297 = vunpack.c.l.b16 %v3125
      %v3298 = vunpack.c.h.b16 %v3125
      %v3299 = vunpack.c.l.b16 %v3126
      %v3300 = vunpack.c.h.b16 %v3126
      %v3301 = vunpack.c.l.b16 %v3127
      %v3302 = vunpack.c.h.b16 %v3127
      %v3303 = vunpack.c.l.b16 %v3128
      %v3304 = vunpack.c.h.b16 %v3128
      %v3305 = vpack.c.b16 %v3275, %v3273
      %v3306 = vpack.c.b16 %v3276, %v3274
      %v3307 = vpack.c.b16 %v3279, %v3277
      %v3308 = vpack.c.b16 %v3280, %v3278
      %v3309 = vpack.c.b16 %v3283, %v3281
      %v3310 = vpack.c.b16 %v3284, %v3282
      %v3311 = vpack.c.b16 %v3287, %v3285
      %v3312 = vpack.c.b16 %v3288, %v3286
      %v3313 = vpack.c.b16 %v3291, %v3289
      %v3314 = vpack.c.b16 %v3292, %v3290
      %v3315 = vpack.c.b16 %v3295, %v3293
      %v3316 = vpack.c.b16 %v3296, %v3294
      %v3317 = vpack.c.b16 %v3299, %v3297
      %v3318 = vpack.c.b16 %v3300, %v3298
      %v3319 = vpack.c.b16 %v3303, %v3301
      %v3320 = vpack.c.b16 %v3304, %v3302
      %3337 = vmatprep.subr.bf16.mxu0 %v3146
      %3338 = vmatpush1.bf16.msra.mxu0 %v3145
      %3339 = vmatprep.subr.bf16.mxu0 %v3148
      %3340 = vmatpush1.bf16.msra.mxu0 %v3147
      %3341 = vmatprep.subr.bf16.mxu0 %v3150
      %3342 = vmatpush1.bf16.msra.mxu0 %v3149
      %3343 = vmatprep.subr.bf16.mxu0 %v3152
      %3344 = vmatpush1.bf16.msra.mxu0 %v3151
      %3345 = vmatprep.subr.bf16.mxu0 %v3154
      %3346 = vmatpush1.bf16.msra.mxu0 %v3153
      %3347 = vmatprep.subr.bf16.mxu0 %v3156
      %3348 = vmatpush1.bf16.msra.mxu0 %v3155
      %3349 = vmatprep.subr.bf16.mxu0 %v3158
      %3350 = vmatpush1.bf16.msra.mxu0 %v3157
      %3351 = vmatprep.subr.bf16.mxu0 %v3160
      %3352 = vmatpush1.bf16.msra.mxu0 %v3159
      %3353 = vmatprep.subr.bf16.mxu0 %v3162
      %3354 = vmatpush1.bf16.msra.mxu0 %v3161
      %3355 = vmatprep.subr.bf16.mxu0 %v3164
      %3356 = vmatpush1.bf16.msra.mxu0 %v3163
      %3357 = vmatprep.subr.bf16.mxu0 %v3166
      %3358 = vmatpush1.bf16.msra.mxu0 %v3165
      %3359 = vmatprep.subr.bf16.mxu0 %v3168
      %3360 = vmatpush1.bf16.msra.mxu0 %v3167
      %3361 = vmatprep.subr.bf16.mxu0 %v3170
      %3362 = vmatpush1.bf16.msra.mxu0 %v3169
      %3363 = vmatprep.subr.bf16.mxu0 %v3172
      %3364 = vmatpush1.bf16.msra.mxu0 %v3171
      %3365 = vmatprep.subr.bf16.mxu0 %v3174
      %3366 = vmatpush1.bf16.msra.mxu0 %v3173
      %3367 = vmatprep.subr.bf16.mxu0 %v3176
      %3368 = vmatpush1.bf16.msra.mxu0 %v3175
      %3369 = vmatprep.mubr.bf16.mxu0 %v3306
      %3370 = vmatmul.mubr.bf16.gmra.mrb[0].mxu0 %v3305
      %v3371 = vpop.f32.mrb[0].mxu0
      %v3372 = vadd.f32 %v3180, %v3371
      %v3373 = vpop.f32.mrb[0].mxu0
      %v3374 = vadd.f32 %v3180, %v3373
      %v3375 = vpop.f32.mrb[0].mxu0
      %v3376 = vadd.f32 %v3185, %v3375
      %v3377 = vpop.f32.mrb[0].mxu0
      %v3378 = vadd.f32 %v3185, %v3377
      %3379 = vmatprep.mubr.bf16.mxu0 %v3308
      %3380 = vmatmul.mubr.bf16.gmra.mrb[0].mxu0 %v3307
      %v3381 = vpop.f32.mrb[0].mxu0
      %v3382 = vadd.f32 %v3190, %v3381
      %v3383 = vpop.f32.mrb[0].mxu0
      %v3384 = vadd.f32 %v3190, %v3383
      %v3385 = vpop.f32.mrb[0].mxu0
      %v3386 = vadd.f32 %v3195, %v3385
      %v3387 = vpop.f32.mrb[0].mxu0
      %v3388 = vadd.f32 %v3195, %v3387
      %3389 = vmatprep.mubr.bf16.mxu0 %v3310
      %3390 = vmatmul.mubr.bf16.gmra.mrb[0].mxu0 %v3309
      %v3391 = vpop.f32.mrb[0].mxu0
      %v3392 = vadd.f32 %v3200, %v3391
      %v3393 = vpop.f32.mrb[0].mxu0
      %v3394 = vadd.f32 %v3200, %v3393
      %v3395 = vpop.f32.mrb[0].mxu0
      %v3396 = vadd.f32 %v3205, %v3395
      %v3397 = vpop.f32.mrb[0].mxu0
      %v3398 = vadd.f32 %v3205, %v3397
      %3399 = vmatprep.mubr.bf16.mxu0 %v3312
      %3400 = vmatmul.mubr.bf16.gmra.mrb[0].mxu0 %v3311
      %v3401 = vpop.f32.mrb[0].mxu0
      %v3402 = vadd.f32 %v3210, %v3401
      %v3403 = vpop.f32.mrb[0].mxu0
      %v3404 = vadd.f32 %v3210, %v3403
      %v3405 = vpop.f32.mrb[0].mxu0
      %v3406 = vadd.f32 %v3215, %v3405
      %v3407 = vpop.f32.mrb[0].mxu0
      %v3408 = vadd.f32 %v3215, %v3407
      %3409 = vmatprep.mubr.bf16.mxu0 %v3314
      %3410 = vmatmul.mubr.bf16.gmra.mrb[0].mxu0 %v3313
      %v3411 = vpop.f32.mrb[0].mxu0
      %v3412 = vadd.f32 %v3220, %v3411
      %v3413 = vpop.f32.mrb[0].mxu0
      %v3414 = vadd.f32 %v3220, %v3413
      %v3415 = vpop.f32.mrb[0].mxu0
      %v3416 = vadd.f32 %v3225, %v3415
      %v3417 = vpop.f32.mrb[0].mxu0
      %v3418 = vadd.f32 %v3225, %v3417
      %3419 = vmatprep.mubr.bf16.mxu0 %v3316
      %3420 = vmatmul.mubr.bf16.gmra.mrb[0].mxu0 %v3315
      %v3421 = vpop.f32.mrb[0].mxu0
      %v3422 = vadd.f32 %v3230, %v3421
      %v3423 = vpop.f32.mrb[0].mxu0
      %v3424 = vadd.f32 %v3230, %v3423
      %v3425 = vpop.f32.mrb[0].mxu0
      %v3426 = vadd.f32 %v3235, %v3425
      %v3427 = vpop.f32.mrb[0].mxu0
      %v3428 = vadd.f32 %v3235, %v3427
      %3429 = vmatprep.mubr.bf16.mxu0 %v3318
      %3430 = vmatmul.mubr.bf16.gmra.mrb[0].mxu0 %v3317
      %v3431 = vpop.f32.mrb[0].mxu0
      %v3432 = vadd.f32 %v3240, %v3431
      %v3433 = vpop.f32.mrb[0].mxu0
      %v3434 = vadd.f32 %v3240, %v3433
      %v3435 = vpop.f32.mrb[0].mxu0
      %v3436 = vadd.f32 %v3245, %v3435
      %v3437 = vpop.f32.mrb[0].mxu0
      %v3438 = vadd.f32 %v3245, %v3437
      %3439 = vmatprep.mubr.bf16.mxu0 %v3320
      %3440 = vmatmul.mubr.bf16.gmra.mrb[0].mxu0 %v3319
      %v3441 = vpop.f32.mrb[0].mxu0
      %v3442 = vadd.f32 %v3250, %v3441
      %v3443 = vpop.f32.mrb[0].mxu0
      %v3444 = vadd.f32 %v3250, %v3443
      %v3445 = vpop.f32.mrb[0].mxu0
      %v3446 = vadd.f32 %v3255, %v3445
      %v3447 = vpop.f32.mrb[0].mxu0
      %v3448 = vadd.f32 %v3255, %v3447
      %3449 = vdwg.mxu0
      %v3450 = vxor.u32 %v3372, 2147483648
      %v3451 = vxor.u32 %v3374, 2147483648
      %v3452 = vxor.u32 %v3376, 2147483648
      %v3453 = vxor.u32 %v3378, 2147483648
      %v3454 = vxor.u32 %v3382, 2147483648
      %v3455 = vxor.u32 %v3384, 2147483648
      %v3456 = vxor.u32 %v3386, 2147483648
      %v3457 = vxor.u32 %v3388, 2147483648
      %v3458 = vxor.u32 %v3392, 2147483648
      %v3459 = vxor.u32 %v3394, 2147483648
      %v3460 = vxor.u32 %v3396, 2147483648
      %v3461 = vxor.u32 %v3398, 2147483648
      %v3462 = vxor.u32 %v3402, 2147483648
      %v3463 = vxor.u32 %v3404, 2147483648
      %v3464 = vxor.u32 %v3406, 2147483648
      %v3465 = vxor.u32 %v3408, 2147483648
      %v3466 = vxor.u32 %v3412, 2147483648
      %v3467 = vxor.u32 %v3414, 2147483648
      %v3468 = vxor.u32 %v3416, 2147483648
      %v3469 = vxor.u32 %v3418, 2147483648
      %v3470 = vxor.u32 %v3422, 2147483648
      %v3471 = vxor.u32 %v3424, 2147483648
      %v3472 = vxor.u32 %v3426, 2147483648
      %v3473 = vxor.u32 %v3428, 2147483648
      %v3474 = vxor.u32 %v3432, 2147483648
      %v3475 = vxor.u32 %v3434, 2147483648
      %v3476 = vxor.u32 %v3436, 2147483648
      %v3477 = vxor.u32 %v3438, 2147483648
      %v3478 = vxor.u32 %v3442, 2147483648
      %v3479 = vxor.u32 %v3444, 2147483648
      %v3480 = vxor.u32 %v3446, 2147483648
      %v3481 = vxor.u32 %v3448, 2147483648
      %v3482 = vmul.f32 %v3450, 1.442695
      %v3483 = vpow.pop %v3482
      %v3484 = vmul.f32 %v3451, 1.442695
      %v3485 = vpow.pop %v3484
      %v3486 = vmul.f32 %v3452, 1.442695
      %v3487 = vpow.pop %v3486
      %v3488 = vmul.f32 %v3453, 1.442695
      %v3489 = vpow.pop %v3488
      %v3490 = vmul.f32 %v3454, 1.442695
      %v3491 = vpow.pop %v3490
      %v3492 = vmul.f32 %v3455, 1.442695
      %v3493 = vpow.pop %v3492
      %v3494 = vmul.f32 %v3456, 1.442695
      %v3495 = vpow.pop %v3494
      %v3496 = vmul.f32 %v3457, 1.442695
      %v3497 = vpow.pop %v3496
      %v3498 = vmul.f32 %v3458, 1.442695
      %v3499 = vpow.pop %v3498
      %v3500 = vmul.f32 %v3459, 1.442695
      %v3501 = vpow.pop %v3500
      %v3502 = vmul.f32 %v3460, 1.442695
      %v3503 = vpow.pop %v3502
      %v3504 = vmul.f32 %v3461, 1.442695
      %v3505 = vpow.pop %v3504
      %v3506 = vmul.f32 %v3462, 1.442695
      %v3507 = vpow.pop %v3506
      %v3508 = vmul.f32 %v3463, 1.442695
      %v3509 = vpow.pop %v3508
      %v3510 = vmul.f32 %v3464, 1.442695
      %v3511 = vpow.pop %v3510
      %v3512 = vmul.f32 %v3465, 1.442695
      %v3513 = vpow.pop %v3512
      %v3514 = vmul.f32 %v3466, 1.442695
      %v3515 = vpow.pop %v3514
      %v3516 = vmul.f32 %v3467, 1.442695
      %v3517 = vpow.pop %v3516
      %v3518 = vmul.f32 %v3468, 1.442695
      %v3519 = vpow.pop %v3518
      %v3520 = vmul.f32 %v3469, 1.442695
      %v3521 = vpow.pop %v3520
      %v3522 = vmul.f32 %v3470, 1.442695
      %v3523 = vpow.pop %v3522
      %v3524 = vmul.f32 %v3471, 1.442695
      %v3525 = vpow.pop %v3524
      %v3526 = vmul.f32 %v3472, 1.442695
      %v3527 = vpow.pop %v3526
      %v3528 = vmul.f32 %v3473, 1.442695
      %v3529 = vpow.pop %v3528
      %v3530 = vmul.f32 %v3474, 1.442695
      %v3531 = vpow.pop %v3530
      %v3532 = vmul.f32 %v3475, 1.442695
      %v3533 = vpow.pop %v3532
      %v3534 = vmul.f32 %v3476, 1.442695
      %v3535 = vpow.pop %v3534
      %v3536 = vmul.f32 %v3477, 1.442695
      %v3537 = vpow.pop %v3536
      %v3538 = vmul.f32 %v3478, 1.442695
      %v3539 = vpow.pop %v3538
      %v3540 = vmul.f32 %v3479, 1.442695
      %v3541 = vpow.pop %v3540
      %v3542 = vmul.f32 %v3480, 1.442695
      %v3543 = vpow.pop %v3542
      %v3544 = vmul.f32 %v3481, 1.442695
      %v3545 = vpow.pop %v3544
      %v3546 = vadd.f32 %v3483, 1.0
      %v3547 = vadd.f32 %v3485, 1.0
      %v3548 = vadd.f32 %v3487, 1.0
      %v3549 = vadd.f32 %v3489, 1.0
      %v3550 = vadd.f32 %v3491, 1.0
      %v3551 = vadd.f32 %v3493, 1.0
      %v3552 = vadd.f32 %v3495, 1.0
      %v3553 = vadd.f32 %v3497, 1.0
      %v3554 = vadd.f32 %v3499, 1.0
      %v3555 = vadd.f32 %v3501, 1.0
      %v3556 = vadd.f32 %v3503, 1.0
      %v3557 = vadd.f32 %v3505, 1.0
      %v3558 = vadd.f32 %v3507, 1.0
      %v3559 = vadd.f32 %v3509, 1.0
      %v3560 = vadd.f32 %v3511, 1.0
      %v3561 = vadd.f32 %v3513, 1.0
      %v3562 = vadd.f32 %v3515, 1.0
      %v3563 = vadd.f32 %v3517, 1.0
      %v3564 = vadd.f32 %v3519, 1.0
      %v3565 = vadd.f32 %v3521, 1.0
      %v3566 = vadd.f32 %v3523, 1.0
      %v3567 = vadd.f32 %v3525, 1.0
      %v3568 = vadd.f32 %v3527, 1.0
      %v3569 = vadd.f32 %v3529, 1.0
      %v3570 = vadd.f32 %v3531, 1.0
      %v3571 = vadd.f32 %v3533, 1.0
      %v3572 = vadd.f32 %v3535, 1.0
      %v3573 = vadd.f32 %v3537, 1.0
      %v3574 = vadd.f32 %v3539, 1.0
      %v3575 = vadd.f32 %v3541, 1.0
      %v3576 = vadd.f32 %v3543, 1.0
      %v3577 = vadd.f32 %v3545, 1.0
      %v3578 = vrcp.pop %v3546
      %v3579 = vmul.f32 1.0, %v3578
      %v3580 = vrcp.pop %v3547
      %v3581 = vmul.f32 1.0, %v3580
      %v3582 = vrcp.pop %v3548
      %v3583 = vmul.f32 1.0, %v3582
      %v3584 = vrcp.pop %v3549
      %v3585 = vmul.f32 1.0, %v3584
      %v3586 = vrcp.pop %v3550
      %v3587 = vmul.f32 1.0, %v3586
      %v3588 = vrcp.pop %v3551
      %v3589 = vmul.f32 1.0, %v3588
      %v3590 = vrcp.pop %v3552
      %v3591 = vmul.f32 1.0, %v3590
      %v3592 = vrcp.pop %v3553
      %v3593 = vmul.f32 1.0, %v3592
      %v3594 = vrcp.pop %v3554
      %v3595 = vmul.f32 1.0, %v3594
      %v3596 = vrcp.pop %v3555
      %v3597 = vmul.f32 1.0, %v3596
      %v3598 = vrcp.pop %v3556
      %v3599 = vmul.f32 1.0, %v3598
      %v3600 = vrcp.pop %v3557
      %v3601 = vmul.f32 1.0, %v3600
      %v3602 = vrcp.pop %v3558
      %v3603 = vmul.f32 1.0, %v3602
      %v3604 = vrcp.pop %v3559
      %v3605 = vmul.f32 1.0, %v3604
      %v3606 = vrcp.pop %v3560
      %v3607 = vmul.f32 1.0, %v3606
      %v3608 = vrcp.pop %v3561
      %v3609 = vmul.f32 1.0, %v3608
      %v3610 = vrcp.pop %v3562
      %v3611 = vmul.f32 1.0, %v3610
      %v3612 = vrcp.pop %v3563
      %v3613 = vmul.f32 1.0, %v3612
      %v3614 = vrcp.pop %v3564
      %v3615 = vmul.f32 1.0, %v3614
      %v3616 = vrcp.pop %v3565
      %v3617 = vmul.f32 1.0, %v3616
      %v3618 = vrcp.pop %v3566
      %v3619 = vmul.f32 1.0, %v3618
      %v3620 = vrcp.pop %v3567
      %v3621 = vmul.f32 1.0, %v3620
      %v3622 = vrcp.pop %v3568
      %v3623 = vmul.f32 1.0, %v3622
      %v3624 = vrcp.pop %v3569
      %v3625 = vmul.f32 1.0, %v3624
      %v3626 = vrcp.pop %v3570
      %v3627 = vmul.f32 1.0, %v3626
      %v3628 = vrcp.pop %v3571
      %v3629 = vmul.f32 1.0, %v3628
      %v3630 = vrcp.pop %v3572
      %v3631 = vmul.f32 1.0, %v3630
      %v3632 = vrcp.pop %v3573
      %v3633 = vmul.f32 1.0, %v3632
      %v3634 = vrcp.pop %v3574
      %v3635 = vmul.f32 1.0, %v3634
      %v3636 = vrcp.pop %v3575
      %v3637 = vmul.f32 1.0, %v3636
      %v3638 = vrcp.pop %v3576
      %v3639 = vmul.f32 1.0, %v3638
      %v3640 = vrcp.pop %v3577
      %v3641 = vmul.f32 1.0, %v3640
      %v3642 = vmul.f32 %v3372, %v3579
      %v3643 = vmul.f32 %v3374, %v3581
      %v3644 = vmul.f32 %v3376, %v3583
      %v3645 = vmul.f32 %v3378, %v3585
      %v3646 = vmul.f32 %v3382, %v3587
      %v3647 = vmul.f32 %v3384, %v3589
      %v3648 = vmul.f32 %v3386, %v3591
      %v3649 = vmul.f32 %v3388, %v3593
      %v3650 = vmul.f32 %v3392, %v3595
      %v3651 = vmul.f32 %v3394, %v3597
      %v3652 = vmul.f32 %v3396, %v3599
      %v3653 = vmul.f32 %v3398, %v3601
      %v3654 = vmul.f32 %v3402, %v3603
      %v3655 = vmul.f32 %v3404, %v3605
      %v3656 = vmul.f32 %v3406, %v3607
      %v3657 = vmul.f32 %v3408, %v3609
      %v3658 = vmul.f32 %v3412, %v3611
      %v3659 = vmul.f32 %v3414, %v3613
      %v3660 = vmul.f32 %v3416, %v3615
      %v3661 = vmul.f32 %v3418, %v3617
      %v3662 = vmul.f32 %v3422, %v3619
      %v3663 = vmul.f32 %v3424, %v3621
      %v3664 = vmul.f32 %v3426, %v3623
      %v3665 = vmul.f32 %v3428, %v3625
      %v3666 = vmul.f32 %v3432, %v3627
      %v3667 = vmul.f32 %v3434, %v3629
      %v3668 = vmul.f32 %v3436, %v3631
      %v3669 = vmul.f32 %v3438, %v3633
      %v3670 = vmul.f32 %v3442, %v3635
      %v3671 = vmul.f32 %v3444, %v3637
      %v3672 = vmul.f32 %v3446, %v3639
      %v3673 = vmul.f32 %v3448, %v3641
      %v3674 = vld [vmem:[%s11] sm:$0x3]
      %v3675 = vld [vmem:[%s12] sm:$0x7]
      %v3676 = vpack.c.bf16 %v3644, %v3642
      %v3677 = vpack.c.bf16 %v3645, %v3643
      %v3678 = vpack.c.bf16 %v3648, %v3646
      %v3679 = vpack.c.bf16 %v3649, %v3647
      %v3680 = vpack.c.bf16 %v3652, %v3650
      %v3681 = vpack.c.bf16 %v3653, %v3651
      %v3682 = vpack.c.bf16 %v3656, %v3654
      %v3683 = vpack.c.bf16 %v3657, %v3655
      %v3684 = vpack.c.bf16 %v3660, %v3658
      %v3685 = vpack.c.bf16 %v3661, %v3659
      %v3686 = vpack.c.bf16 %v3664, %v3662
      %v3687 = vpack.c.bf16 %v3665, %v3663
      %v3688 = vpack.c.bf16 %v3668, %v3666
      %v3689 = vpack.c.bf16 %v3669, %v3667
      %v3690 = vpack.c.bf16 %v3672, %v3670
      %v3691 = vpack.c.bf16 %v3673, %v3671
      %3693 = vset.pattern.permute.xlu0 0
      %3694 = vperm.xlu0 %3693, %v3675
      %v3695 = vpop.permute.xlu0 %3694
      %3697 = vmatprep.subr.bf16.mxu0 %v3677
      %3698 = vmatpush1.bf16.msra.mxu0 %v3676
      %3699 = vmatprep.subr.bf16.mxu0 %v3679
      %3700 = vmatpush1.bf16.msra.mxu0 %v3678
      %3701 = vmatprep.subr.bf16.mxu0 %v3681
      %3702 = vmatpush1.bf16.msra.mxu0 %v3680
      %3703 = vmatprep.subr.bf16.mxu0 %v3683
      %3704 = vmatpush1.bf16.msra.mxu0 %v3682
      %3705 = vmatprep.subr.bf16.mxu0 %v3685
      %3706 = vmatpush1.bf16.msra.mxu0 %v3684
      %3707 = vmatprep.subr.bf16.mxu0 %v3687
      %3708 = vmatpush1.bf16.msra.mxu0 %v3686
      %3709 = vmatprep.subr.bf16.mxu0 %v3689
      %3710 = vmatpush1.bf16.msra.mxu0 %v3688
      %3711 = vmatprep.subr.bf16.mxu0 %v3691
      %3712 = vmatpush1.bf16.msra.mxu0 %v3690
      %3713 = vmatprep.subr.bf16.mxu0 0
      %3714 = vmatpush1.bf16.msra.mxu0 0
      %3715 = vmatprep.subr.bf16.mxu0 0
      %3716 = vmatpush1.bf16.msra.mxu0 0
      %3717 = vmatprep.subr.bf16.mxu0 0
      %3718 = vmatpush1.bf16.msra.mxu0 0
      %3719 = vmatprep.subr.bf16.mxu0 0
      %3720 = vmatpush1.bf16.msra.mxu0 0
      %3721 = vmatprep.subr.bf16.mxu0 0
      %3722 = vmatpush1.bf16.msra.mxu0 0
      %3723 = vmatprep.subr.bf16.mxu0 0
      %3724 = vmatpush1.bf16.msra.mxu0 0
      %3725 = vmatprep.subr.bf16.mxu0 0
      %3726 = vmatpush1.bf16.msra.mxu0 0
      %3727 = vmatprep.subr.bf16.mxu0 0
      %3728 = vmatpush1.bf16.msra.mxu0 0
      %3729 = vmatprep.mubr.bf16.mxu0 0
      %3730 = vmatmul.mubr.bf16.gmra.mrb[0].mxu0 %v3674
      %v3731 = vpop.f32.mrb[0].mxu0
      %v3732 = vadd.f32 %v3695, %v3731
      %v3733 = vpop.f32.mrb[0].mxu0
      %v3734 = vadd.f32 %v3695, %v3733
      %v3735 = vpop.f32.mrb[0].mxu0
      %v3736 = vpop.f32.mrb[0].mxu0
      %3737 = vdwg.mxu0
      %v3738 = vtanh.pop %v3732
      %v3739 = vtanh.pop %v3734
      %v3742 = vcombine.low %v3738, %v3739
      %3744 = vst [vmem:[%s478] sm:$0x77] %v3742
      %s3745 = smul.u32 2, %s29
      %p3746 = scmp.lt.s32.totalorder %s28, 1
      %s3747 = scalar_select %p3746, %s28, 1
      %p3748 = scmp.lt.s32.totalorder %s3745, 1
      %s3749 = scalar_select %p3748, %s3745, 1
      %s3750 = smul.addr %s3747, 2
      %s3751 = sadd.s32 %s3749, %s3750
      %s3752 = smul.addr %s3751, 4
      %s3753 = scalar_lea.vmem %s13, %s3752
      // Predicated region
      $region73: #{tpu_custom_call.1} parent=71 // pred_check
        %p3754 = pneg %p336
      $region74: #{tpu_custom_call.1} parent=71 // pred_check_branch
        %3756 = sbr.rel (%p3754) target = $region76
      $region75: #{tpu_custom_call.1} parent=71 // pred_region
        %s3757 = smul.u32 2, %s29
      $region76: #{tpu_custom_call.1} parent=71 // pred_fallthru
        _
    $region72: #{tpu_custom_call.1} parent=5 // pred_fallthru
      _
    %p3758 = scmp.le.s32.totalorder 2, %s19
    // Predicated region
    $region77: #{tpu_custom_call.1} parent=5 // pred_check
      %p3759 = pneg %p3758
    $region78: #{tpu_custom_call.1} parent=5 // pred_check_branch
      %3761 = sbr.rel (%p3759) target = $region80
    $region79: #{tpu_custom_call.1} parent=5 // pred_region
      %s3762 = ssub.s32 %s19, 2
      // Predicated region
      $region81: #{tpu_custom_call.1} parent=79 // pred_check
        %p3763 = pneg %p342
      $region82: #{tpu_custom_call.1} parent=79 // pred_check_branch
        %3765 = sbr.rel (%p3763) target = $region84
      $region83: #{tpu_custom_call.1} parent=79 // pred_region
        %s3766 = smul.u32 2, %s31
        %p3767 = scmp.lt.s32.totalorder %s30, 1
        %s3768 = scalar_select %p3767, %s30, 1
        %p3769 = scmp.lt.s32.totalorder %s3766, 1
        %s3770 = scalar_select %p3769, %s3766, 1
        %s3771 = smul.addr %s3768, 2
        %s3772 = sadd.s32 %s3770, %s3771
        %s3773 = smul.addr %s3772, 4
        %s3774 = scalar_lea.vmem %s13, %s3773
      $region84: #{tpu_custom_call.1} parent=79 // pred_fallthru
        _
    $region80: #{tpu_custom_call.1} parent=5 // pred_fallthru
      _
  $region6: #{tpu_custom_call.1} parent=0 // loop_footer
    %s23 = sadd.s32 1, %s19
  $region7: #{tpu_custom_call.1} parent=0 // loop_footer_branch
    %18 = sbr.rel target = $region3
  $region8: #{tpu_custom_call.1} parent=0 // loop_exit
    _

</llo_original>
